<compile_context>
chip_gen: v7x
topology: tpu7x:2x2x1
jax: 0.10.0
libtpu: 0.0.40
codegen_flags: <defaults>
</compile_context>

<pallas_src>
import functools

import jax
import jax.numpy as jnp
from jax.experimental import pallas as pl
from jax.experimental.pallas import tpu as pltpu


def _round_up(x, m):
    return ((x + m - 1) // m) * m


# ----------------------------------------------------------------------------
# Trunk kernel: input conv + LeakyReLU + 3 residual blocks + fused bias head.
# Emits feat channels-major (K_res*H, L_pad) and the bias head (cb_pad, L_pad).
# ----------------------------------------------------------------------------
def _trunk_kernel(x_ref, w_in_ref, b_in_ref, w_res_ref, b_res_ref,
                  w_bh_ref, b_bh_ref, feat_ref, bias_ref, hp_ref, *,
                  L, L_pad, Ccond, H, K_in, K_res, neg_slope):
    f32 = jnp.float32

    def lrelu(v):
        return jnp.where(v >= 0, v, neg_slope * v)

    # ---- input conv (K_in taps), per-tap matmul accumulation ----------------
    # x_ref: (1, L + K_in - 1, Ccond), pre-padded once by the wrapper.
    w_in = w_in_ref[...]                                   # (K_in*Ccond, H)
    acc = jnp.dot(x_ref[0, pl.ds(0, L), :], w_in[0:Ccond],
                  preferred_element_type=f32)
    for k in range(1, K_in):
        acc += jnp.dot(x_ref[0, pl.ds(k, L), :],
                       w_in[k * Ccond:(k + 1) * Ccond],
                       preferred_element_type=f32)
    h = lrelu(acc + b_in_ref[...])                         # (L, H)

    # ---- residual blocks -----------------------------------------------------
    P = (K_res - 1) // 2
    # zero halo + padded-length tail once; only rows [P, P+L) are written below,
    # so positions >= L stay exactly zero (matches torch 'same' zero padding).
    hp_ref[...] = jnp.zeros(hp_ref.shape, f32)

    def conv_res(idx):
        w = w_res_ref[idx]                                 # (K_res*H, H)
        y = jnp.dot(hp_ref[pl.ds(0, L), :], w[0:H], preferred_element_type=f32)
        for k in range(1, K_res):
            y += jnp.dot(hp_ref[pl.ds(k, L), :], w[k * H:(k + 1) * H],
                         preferred_element_type=f32)
        return y + b_res_ref[pl.ds(idx, 1), :]

    for blk in range(3):
        hp_ref[pl.ds(P, L), :] = h
        t = lrelu(conv_res(2 * blk))
        hp_ref[pl.ds(P, L), :] = t
        h = h + lrelu(conv_res(2 * blk + 1))

    # ---- emit channels-major im2col'd trunk output (zero halo baked in) ------
    hp_ref[pl.ds(P, L), :] = h
    out_cat = jnp.concatenate(
        [hp_ref[pl.ds(k, L_pad), :] for k in range(K_res)], axis=-1)  # (L_pad, K*H)
    featT = out_cat.T                                                 # (K*H, L_pad)
    feat_ref[0] = featT.astype(feat_ref.dtype)

    # ---- fused bias_conv head (tiny): (cb_pad, KH) @ (KH, L_pad) -------------
    xb = featT.astype(w_bh_ref.dtype)
    bias_ref[0] = (jnp.dot(w_bh_ref[...], xb, preferred_element_type=f32)
                   + b_bh_ref[...]).astype(bias_ref.dtype)


def trunk_forward(xp, w_in2, b_in, w_res, b_res, w_bh_t, b_bh, *,
                  L, L_pad, H, K_in, K_res, neg_slope, feat_dtype):
    B, Lp_in, Ccond = xp.shape
    KH = K_res * H
    cb_pad = w_bh_t.shape[0]
    P = (K_res - 1) // 2
    kern = functools.partial(_trunk_kernel, L=L, L_pad=L_pad, Ccond=Ccond,
                             H=H, K_in=K_in, K_res=K_res, neg_slope=neg_slope)
    return pl.pallas_call(
        kern,
        out_shape=(jax.ShapeDtypeStruct((B, KH, L_pad), feat_dtype),
                   jax.ShapeDtypeStruct((B, cb_pad, L_pad), jnp.float32)),
        grid=(B,),
        in_specs=[
            pl.BlockSpec((1, Lp_in, Ccond), lambda i: (i, 0, 0)),
            pl.BlockSpec(w_in2.shape, lambda i: (0, 0)),
            pl.BlockSpec((1, H), lambda i: (0, 0)),
            pl.BlockSpec(w_res.shape, lambda i: (0, 0, 0)),
            pl.BlockSpec(b_res.shape, lambda i: (0, 0)),
            pl.BlockSpec(w_bh_t.shape, lambda i: (0, 0)),
            pl.BlockSpec((cb_pad, 1), lambda i: (0, 0)),
        ],
        out_specs=[
            pl.BlockSpec((1, KH, L_pad), lambda i: (i, 0, 0)),
            pl.BlockSpec((1, cb_pad, L_pad), lambda i: (i, 0, 0)),
        ],
        scratch_shapes=[pltpu.VMEM((L_pad + 2 * P, H), jnp.float32)],
        compiler_params=pltpu.CompilerParams(
            dimension_semantics=("parallel",),
            vmem_limit_bytes=32 * 1024 * 1024),
    )(xp, w_in2, b_in.reshape(1, H), w_res, b_res, w_bh_t, b_bh)


# ----------------------------------------------------------------------------
# Kernel head: kernel_conv as a canonical (ct, KH) @ (KH, L_pad) matmul per
# Cout tile; output written directly in NCL layout. No in-kernel transpose.
# ----------------------------------------------------------------------------
def _khead_kernel(x_ref, w_ref, b_ref, o_ref):
    acc = jnp.dot(w_ref[...], x_ref[0], preferred_element_type=jnp.float32)
    o_ref[0] = (acc + b_ref[...]).astype(o_ref.dtype)


def khead_forward(feat, w_t, b_col, *, ct):
    B, KH, L_pad = feat.shape
    ck_pad = w_t.shape[0]
    n_ct = ck_pad // ct

    w_bytes = w_t.size * w_t.dtype.itemsize
    f_bytes = KH * L_pad * feat.dtype.itemsize
    # Pick the grid order so whichever operand costs more to re-stream stays
    # VMEM-resident across the inner axis (review: weights resident across batch,
    # unless the per-tile feat re-read would exceed the weight re-read it saves).
    if (B - 1) * w_bytes >= (n_ct - 1) * B * f_bytes:
        grid = (n_ct, B)
        x_idx = lambda j, b: (b, 0, 0)
        w_idx = lambda j, b: (j, 0)
        o_idx = lambda j, b: (b, j, 0)
    else:
        grid = (B, n_ct)
        x_idx = lambda b, j: (b, 0, 0)
        w_idx = lambda b, j: (j, 0)
        o_idx = lambda b, j: (b, j, 0)

    flops = 2 * B * ck_pad * KH * L_pad
    bytes_accessed = (w_bytes + B * f_bytes + B * ck_pad * L_pad * 4
                      + b_col.size * b_col.dtype.itemsize)
    return pl.pallas_call(
        _khead_kernel,
        out_shape=jax.ShapeDtypeStruct((B, ck_pad, L_pad), jnp.float32),
        grid=grid,
        in_specs=[
            pl.BlockSpec((1, KH, L_pad), x_idx),
            pl.BlockSpec((ct, KH), w_idx),
            pl.BlockSpec((ct, 1), w_idx),
        ],
        out_specs=pl.BlockSpec((1, ct, L_pad), o_idx),
        compiler_params=pltpu.CompilerParams(
            dimension_semantics=("parallel", "parallel"),
            vmem_limit_bytes=32 * 1024 * 1024),
        cost_estimate=pl.CostEstimate(flops=int(flops), transcendentals=0,
                                      bytes_accessed=int(bytes_accessed)),
    )(feat, w_t, b_col)


# ----------------------------------------------------------------------------
# Module wrapper
# ----------------------------------------------------------------------------
class KernelPredictor:
    """JAX/Pallas port of nemo univnet_modules.KernelPredictor (forward only)."""

    def __init__(self, cond_channels, conv_in_channels, conv_out_channels,
                 conv_layers, conv_kernel_size=3, kpnet_hidden_channels=64,
                 kpnet_conv_size=3, kpnet_dropout=0.0, neg_slope=0.1,
                 head_compute_dtype=jnp.float32, key=None):
        # head_compute_dtype: f32 (exact) by default; jnp.bfloat16 halves head
        # weight / feat HBM traffic if the downstream LVC tolerates it.
        assert kpnet_conv_size % 2 == 1, "only odd ('same') kernel sizes supported"
        self.cond_channels = cond_channels
        self.conv_in_channels = conv_in_channels
        self.conv_out_channels = conv_out_channels
        self.conv_kernel_size = conv_kernel_size
        self.conv_layers = conv_layers
        self.neg_slope = neg_slope
        self.kpnet_conv_size = kpnet_conv_size
        self.hidden = kpnet_hidden_channels
        self.head_compute_dtype = head_compute_dtype

        self.ck = (conv_in_channels * conv_out_channels
                   * conv_kernel_size * conv_layers)        # kpnet_kernel_channels
        self.cb = conv_out_channels * conv_layers           # kpnet_bias_channels
        self.ck_pad = _round_up(self.ck, 256)               # divisible by ct in {128,256}
        self.cb_pad = _round_up(self.cb, 8)

        if key is None:
            key = jax.random.PRNGKey(0)

        def init_conv(k, K, cin, cout):
            kw, kb = jax.random.split(k)
            scale = 1.0 / jnp.sqrt(cin * K)
            w = jax.random.normal(kw, (K, cin, cout), jnp.float32) * scale
            b = jax.random.normal(kb, (cout,), jnp.float32) * scale
            return w, b

        keys = jax.random.split(key, 9)
        H = kpnet_hidden_channels
        K = kpnet_conv_size
        KH = K * H

        # input_conv: Conv1d(cond, hidden, 5, padding=2) + LeakyReLU
        w_in, b_in = init_conv(keys[0], 5, cond_channels, H)
        self.w_in2 = w_in.reshape(5 * cond_channels, H)
        self.b_in = b_in

        # 3 residual blocks x 2 convs, stacked (6, K*H, H) / (6, H)
        ws, bs = [], []
        for i in range(6):
            w, b = init_conv(keys[1 + i], K, H, H)
            ws.append(w.reshape(KH, H))
            bs.append(b)
        self.w_res = jnp.stack(ws)
        self.b_res = jnp.stack(bs)

        # kernel_conv head.  NOTE: to import PyTorch Conv1d weights, fold the
        # weight_norm g/||v|| into v and transpose (Cout,Cin,K) -> (K,Cin,Cout)
        # before the reshapes below.
        w_k, b_k = init_conv(keys[7], K, H, self.ck)          # (K, H, ck)
        w_k2 = jnp.pad(w_k.reshape(KH, self.ck),
                       ((0, 0), (0, self.ck_pad - self.ck)))
        self.w_k_t = w_k2.T.astype(head_compute_dtype)        # (ck_pad, KH)
        self.b_k = (jnp.pad(b_k, ((0, self.ck_pad - self.ck),))
                    .reshape(self.ck_pad, 1).astype(jnp.float32))

        # bias_conv head (tiny) - fused into the trunk kernel.
        w_b, b_b = init_conv(keys[8], K, H, self.cb)          # (K, H, cb)
        w_b2 = jnp.pad(w_b.reshape(KH, self.cb),
                       ((0, 0), (0, self.cb_pad - self.cb)))
        self.w_bh_t = w_b2.T.astype(head_compute_dtype)       # (cb_pad, KH)
        self.b_bh = (jnp.pad(b_b, ((0, self.cb_pad - self.cb),))
                     .reshape(self.cb_pad, 1).astype(jnp.float32))

    def __call__(self, c):
        """c: (batch, cond_channels, cond_length) — same layout as PyTorch."""
        B, _, L = c.shape
        L_pad = _round_up(max(L, 128), 128)                    # lane-dense output

        x = jnp.transpose(c, (0, 2, 1)).astype(jnp.float32)    # NCL -> NLC (small)
        xp = jnp.pad(x, ((0, 0), (2, 2), (0, 0)))              # pad once (K=5 conv)

        feat, bias_out = trunk_forward(
            xp, self.w_in2, self.b_in, self.w_res, self.b_res,
            self.w_bh_t, self.b_bh,
            L=L, L_pad=L_pad, H=self.hidden, K_in=5,
            K_res=self.kpnet_conv_size, neg_slope=self.neg_slope,
            feat_dtype=self.head_compute_dtype)

        # Cout tile: <=256 (v5e-friendly), shrink if the f32 output tile gets big.
        ct = 256
        while ct > 128 and 2 * ct * L_pad * 4 > (4 << 20):
            ct //= 2

        k_out = khead_forward(feat, self.w_k_t, self.b_k, ct=ct)  # (B, ck_pad, L_pad)

        # Free reshape (no copy) whenever ck_pad == ck and L_pad == L.
        k = k_out[:, :self.ck, :L]
        bn = bias_out[:, :self.cb, :L]
        kernels = k.reshape(B, self.conv_layers, self.conv_in_channels,
                            self.conv_out_channels, self.conv_kernel_size, L)
        bias = bn.reshape(B, self.conv_layers, self.conv_out_channels, L)
        return kernels, bias


# ----------------------------------------------------------------------------
# Pure-JAX reference (mirrors the head-dtype rounding at the trunk->head boundary)
# ----------------------------------------------------------------------------
def _ref_forward(model, c):
    x = jnp.transpose(c, (0, 2, 1)).astype(jnp.float32)
    L = x.shape[1]
    K = model.kpnet_conv_size

    def conv(x, w2, b, Kk, pad):
        xp = jnp.pad(x, ((0, 0), (pad, pad), (0, 0)))
        cols = jnp.concatenate([xp[:, k:k + L, :] for k in range(Kk)], axis=-1)
        return jnp.einsum('blc,co->blo', cols, w2) + b[None, None, :]

    def lrelu(v):
        return jnp.where(v >= 0, v, model.neg_slope * v)

    h = lrelu(conv(x, model.w_in2, model.b_in, 5, 2))
    P = (K - 1) // 2
    for i in range(3):
        t = lrelu(conv(h, model.w_res[2 * i], model.b_res[2 * i], K, P))
        h = h + lrelu(conv(t, model.w_res[2 * i + 1], model.b_res[2 * i + 1], K, P))

    hp = jnp.pad(h, ((0, 0), (P, P), (0, 0)))
    cols = jnp.concatenate([hp[:, k:k + L, :] for k in range(K)], axis=-1)
    cols = cols.astype(model.head_compute_dtype).astype(jnp.float32)

    w_k = model.w_k_t[:model.ck].astype(jnp.float32)      # (ck, KH)
    w_b = model.w_bh_t[:model.cb].astype(jnp.float32)     # (cb, KH)
    k_out = jnp.einsum('blc,oc->bol', cols, w_k) + model.b_k[:model.ck]
    b_out = jnp.einsum('blc,oc->bol', cols, w_b) + model.b_bh[:model.cb]
    return k_out, b_out                                    # (B, ck, L), (B, cb, L)


if __name__ == "__main__":
    key = jax.random.PRNGKey(0)
    k_param, k_input = jax.random.split(key)

    batch = 2
    cond_channels = 16
    conv_in_channels = 4
    conv_out_channels = 4
    conv_layers = 2
    conv_kernel_size = 3
    cond_length = 16

    model = KernelPredictor(
        cond_channels=cond_channels,
        conv_in_channels=conv_in_channels,
        conv_out_channels=conv_out_channels,
        conv_layers=conv_layers,
        conv_kernel_size=conv_kernel_size,
        kpnet_hidden_channels=64,
        kpnet_conv_size=3,
        kpnet_dropout=0.0,
        key=k_param,
    )

    c = jax.random.normal(k_input, (batch, cond_channels, cond_length),
                          jnp.float32)

    kernels, bias = model(c)
    kernels = jax.block_until_ready(kernels)
    bias = jax.block_until_ready(bias)

    assert kernels.shape == (batch, conv_layers, conv_in_channels,
                             conv_out_channels, conv_kernel_size, cond_length)
    assert bias.shape == (batch, conv_layers, conv_out_channels, cond_length)
    assert bool(jnp.all(jnp.isfinite(kernels))) and bool(jnp.all(jnp.isfinite(bias)))

    # correctness vs. pure-JAX reference
    k_ref, b_ref = _ref_forward(model, c)
    k_ref = k_ref.reshape(kernels.shape)
    b_ref = b_ref.reshape(bias.shape)
    err_k = float(jnp.max(jnp.abs(kernels - k_ref)))
    err_b = float(jnp.max(jnp.abs(bias - b_ref)))
    assert err_k < 2e-2 and err_b < 2e-2, (err_k, err_b)

    print("KERNEL_OK")
</pallas_src>

<mosaic_0001>
module attributes {stable_mosaic.version = 11 : i64} {
  func.func @_trunk_kernel(%arg0: i32, %arg1: memref<1x20x16xf32, #tpu.memory_space<vmem>>, %arg2: memref<80x64xf32, #tpu.memory_space<vmem>>, %arg3: memref<1x64xf32, #tpu.memory_space<vmem>>, %arg4: memref<6x192x64xf32, #tpu.memory_space<vmem>>, %arg5: memref<6x64xf32, #tpu.memory_space<vmem>>, %arg6: memref<8x192xf32, #tpu.memory_space<vmem>>, %arg7: memref<8x1xf32, #tpu.memory_space<vmem>>, %arg8: memref<1x192x128xf32, #tpu.memory_space<vmem>>, %arg9: memref<1x8x128xf32, #tpu.memory_space<vmem>>, %arg10: memref<130x64xf32, #tpu.memory_space<vmem>>) attributes {dimension_semantics = [#tpu.dimension_semantics<parallel>], iteration_bounds = array<i64: 2>, scalar_prefetch = 0 : i64, scratch_operands = 1 : i64, tpu.core_type = #tpu.core_type<tc>, window_params = [{transform_indices = @transform_0, window_bounds = array<i64: 1, 20, 16>}, {pipeline_mode = #tpu.pipeline_mode<synchronous>, transform_indices = @transform_1, window_bounds = array<i64: 80, 64>}, {pipeline_mode = #tpu.pipeline_mode<synchronous>, transform_indices = @transform_2, window_bounds = array<i64: 1, 64>}, {pipeline_mode = #tpu.pipeline_mode<synchronous>, transform_indices = @transform_3, window_bounds = array<i64: 6, 192, 64>}, {pipeline_mode = #tpu.pipeline_mode<synchronous>, transform_indices = @transform_4, window_bounds = array<i64: 6, 64>}, {pipeline_mode = #tpu.pipeline_mode<synchronous>, transform_indices = @transform_5, window_bounds = array<i64: 8, 192>}, {pipeline_mode = #tpu.pipeline_mode<synchronous>, transform_indices = @transform_6, window_bounds = array<i64: 8, 1>}, {transform_indices = @transform_7, window_bounds = array<i64: 1, 192, 128>}, {transform_indices = @transform_8, window_bounds = array<i64: 1, 8, 128>}]} {
    %c0 = arith.constant 0 : index
    %c0_0 = arith.constant 0 : index
    %0 = vector.load %arg2[%c0, %c0_0] : memref<80x64xf32, #tpu.memory_space<vmem>>, vector<80x64xf32>
    %c0_1 = arith.constant 0 : index
    %c0_2 = arith.constant 0 : index
    %c0_3 = arith.constant 0 : index
    %1 = vector.load %arg1[%c0_1, %c0_2, %c0_3] : memref<1x20x16xf32, #tpu.memory_space<vmem>>, vector<1x16x16xf32>
    %2 = vector.shape_cast %1 : vector<1x16x16xf32> to vector<16x16xf32>
    %3 = vector.extract_strided_slice %0 {offsets = [0, 0], sizes = [16, 64], strides = [1, 1]} : vector<80x64xf32> to vector<16x64xf32>
    %cst = arith.constant dense<0.000000e+00> : vector<16x64xf32>
    %4 = tpu.matmul %2, %3, %cst {dimension_numbers = #tpu.dot_dimension_numbers<[1], [0], [0], [1], [0, 0, 1, 1], [], []>} : vector<16x16xf32>, vector<16x64xf32>, vector<16x64xf32> -> vector<16x64xf32>
    %c0_4 = arith.constant 0 : index
    %c1 = arith.constant 1 : index
    %c0_5 = arith.constant 0 : index
    %5 = vector.load %arg1[%c0_4, %c1, %c0_5] : memref<1x20x16xf32, #tpu.memory_space<vmem>>, vector<1x16x16xf32>
    %6 = vector.shape_cast %5 : vector<1x16x16xf32> to vector<16x16xf32>
    %7 = vector.extract_strided_slice %0 {offsets = [16, 0], sizes = [16, 64], strides = [1, 1]} : vector<80x64xf32> to vector<16x64xf32>
    %cst_6 = arith.constant dense<0.000000e+00> : vector<16x64xf32>
    %8 = tpu.matmul %6, %7, %cst_6 {dimension_numbers = #tpu.dot_dimension_numbers<[1], [0], [0], [1], [0, 0, 1, 1], [], []>} : vector<16x16xf32>, vector<16x64xf32>, vector<16x64xf32> -> vector<16x64xf32>
    %9 = arith.addf %4, %8 : vector<16x64xf32>
    %c0_7 = arith.constant 0 : index
    %c2 = arith.constant 2 : index
    %c0_8 = arith.constant 0 : index
    %10 = vector.load %arg1[%c0_7, %c2, %c0_8] : memref<1x20x16xf32, #tpu.memory_space<vmem>>, vector<1x16x16xf32>
    %11 = vector.shape_cast %10 : vector<1x16x16xf32> to vector<16x16xf32>
    %12 = vector.extract_strided_slice %0 {offsets = [32, 0], sizes = [16, 64], strides = [1, 1]} : vector<80x64xf32> to vector<16x64xf32>
    %cst_9 = arith.constant dense<0.000000e+00> : vector<16x64xf32>
    %13 = tpu.matmul %11, %12, %cst_9 {dimension_numbers = #tpu.dot_dimension_numbers<[1], [0], [0], [1], [0, 0, 1, 1], [], []>} : vector<16x16xf32>, vector<16x64xf32>, vector<16x64xf32> -> vector<16x64xf32>
    %14 = arith.addf %9, %13 : vector<16x64xf32>
    %c0_10 = arith.constant 0 : index
    %c3 = arith.constant 3 : index
    %c0_11 = arith.constant 0 : index
    %15 = vector.load %arg1[%c0_10, %c3, %c0_11] : memref<1x20x16xf32, #tpu.memory_space<vmem>>, vector<1x16x16xf32>
    %16 = vector.shape_cast %15 : vector<1x16x16xf32> to vector<16x16xf32>
    %17 = vector.extract_strided_slice %0 {offsets = [48, 0], sizes = [16, 64], strides = [1, 1]} : vector<80x64xf32> to vector<16x64xf32>
    %cst_12 = arith.constant dense<0.000000e+00> : vector<16x64xf32>
    %18 = tpu.matmul %16, %17, %cst_12 {dimension_numbers = #tpu.dot_dimension_numbers<[1], [0], [0], [1], [0, 0, 1, 1], [], []>} : vector<16x16xf32>, vector<16x64xf32>, vector<16x64xf32> -> vector<16x64xf32>
    %19 = arith.addf %14, %18 : vector<16x64xf32>
    %c0_13 = arith.constant 0 : index
    %c4 = arith.constant 4 : index
    %c0_14 = arith.constant 0 : index
    %20 = vector.load %arg1[%c0_13, %c4, %c0_14] : memref<1x20x16xf32, #tpu.memory_space<vmem>>, vector<1x16x16xf32>
    %21 = vector.shape_cast %20 : vector<1x16x16xf32> to vector<16x16xf32>
    %22 = vector.extract_strided_slice %0 {offsets = [64, 0], sizes = [16, 64], strides = [1, 1]} : vector<80x64xf32> to vector<16x64xf32>
    %cst_15 = arith.constant dense<0.000000e+00> : vector<16x64xf32>
    %23 = tpu.matmul %21, %22, %cst_15 {dimension_numbers = #tpu.dot_dimension_numbers<[1], [0], [0], [1], [0, 0, 1, 1], [], []>} : vector<16x16xf32>, vector<16x64xf32>, vector<16x64xf32> -> vector<16x64xf32>
    %24 = arith.addf %19, %23 : vector<16x64xf32>
    %c0_16 = arith.constant 0 : index
    %c0_17 = arith.constant 0 : index
    %25 = vector.load %arg3[%c0_16, %c0_17] : memref<1x64xf32, #tpu.memory_space<vmem>>, vector<1x64xf32>
    %26 = vector.broadcast %25 : vector<1x64xf32> to vector<16x64xf32>
    %27 = arith.addf %24, %26 : vector<16x64xf32>
    %cst_18 = arith.constant 0.000000e+00 : f32
    %28 = vector.broadcast %cst_18 : f32 to vector<16x64xf32>
    %29 = arith.cmpf oge, %27, %28 : vector<16x64xf32>
    %cst_19 = arith.constant 1.000000e-01 : f32
    %30 = vector.broadcast %cst_19 : f32 to vector<16x64xf32>
    %31 = arith.mulf %30, %27 : vector<16x64xf32>
    %32 = arith.select %29, %27, %31 : vector<16x64xi1>, vector<16x64xf32>
    %cst_20 = arith.constant 0.000000e+00 : f32
    %33 = vector.broadcast %cst_20 : f32 to vector<130x64xf32>
    %c0_21 = arith.constant 0 : index
    %c0_22 = arith.constant 0 : index
    %34 = vector.load %arg10[%c0_21, %c0_22] : memref<130x64xf32, #tpu.memory_space<vmem>>, vector<130x64xf32>
    tpu.vector_store %arg10[%c0_21, %c0_22], %33 {strides = array<i32>} : memref<130x64xf32, #tpu.memory_space<vmem>>, vector<130x64xf32>,
    %c1_23 = arith.constant 1 : index
    %c0_24 = arith.constant 0 : index
    %35 = vector.load %arg10[%c1_23, %c0_24] : memref<130x64xf32, #tpu.memory_space<vmem>>, vector<16x64xf32>
    tpu.vector_store %arg10[%c1_23, %c0_24], %32 {strides = array<i32>} : memref<130x64xf32, #tpu.memory_space<vmem>>, vector<16x64xf32>,
    %c0_25 = arith.constant 0 : index
    %c0_26 = arith.constant 0 : index
    %c0_27 = arith.constant 0 : index
    %36 = vector.load %arg4[%c0_25, %c0_26, %c0_27] : memref<6x192x64xf32, #tpu.memory_space<vmem>>, vector<1x192x64xf32>
    %37 = vector.shape_cast %36 : vector<1x192x64xf32> to vector<192x64xf32>
    %c0_28 = arith.constant 0 : index
    %c0_29 = arith.constant 0 : index
    %38 = vector.load %arg10[%c0_28, %c0_29] : memref<130x64xf32, #tpu.memory_space<vmem>>, vector<16x64xf32>
    %39 = vector.extract_strided_slice %37 {offsets = [0, 0], sizes = [64, 64], strides = [1, 1]} : vector<192x64xf32> to vector<64x64xf32>
    %cst_30 = arith.constant dense<0.000000e+00> : vector<16x64xf32>
    %40 = tpu.matmul %38, %39, %cst_30 {dimension_numbers = #tpu.dot_dimension_numbers<[1], [0], [0], [1], [0, 0, 1, 1], [], []>} : vector<16x64xf32>, vector<64x64xf32>, vector<16x64xf32> -> vector<16x64xf32>
    %c1_31 = arith.constant 1 : index
    %c0_32 = arith.constant 0 : index
    %41 = vector.load %arg10[%c1_31, %c0_32] : memref<130x64xf32, #tpu.memory_space<vmem>>, vector<16x64xf32>
    %42 = vector.extract_strided_slice %37 {offsets = [64, 0], sizes = [64, 64], strides = [1, 1]} : vector<192x64xf32> to vector<64x64xf32>
    %cst_33 = arith.constant dense<0.000000e+00> : vector<16x64xf32>
    %43 = tpu.matmul %41, %42, %cst_33 {dimension_numbers = #tpu.dot_dimension_numbers<[1], [0], [0], [1], [0, 0, 1, 1], [], []>} : vector<16x64xf32>, vector<64x64xf32>, vector<16x64xf32> -> vector<16x64xf32>
    %44 = arith.addf %40, %43 : vector<16x64xf32>
    %c2_34 = arith.constant 2 : index
    %c0_35 = arith.constant 0 : index
    %45 = vector.load %arg10[%c2_34, %c0_35] : memref<130x64xf32, #tpu.memory_space<vmem>>, vector<16x64xf32>
    %46 = vector.extract_strided_slice %37 {offsets = [128, 0], sizes = [64, 64], strides = [1, 1]} : vector<192x64xf32> to vector<64x64xf32>
    %cst_36 = arith.constant dense<0.000000e+00> : vector<16x64xf32>
    %47 = tpu.matmul %45, %46, %cst_36 {dimension_numbers = #tpu.dot_dimension_numbers<[1], [0], [0], [1], [0, 0, 1, 1], [], []>} : vector<16x64xf32>, vector<64x64xf32>, vector<16x64xf32> -> vector<16x64xf32>
    %48 = arith.addf %44, %47 : vector<16x64xf32>
    %c0_37 = arith.constant 0 : index
    %c0_38 = arith.constant 0 : index
    %49 = vector.load %arg5[%c0_37, %c0_38] : memref<6x64xf32, #tpu.memory_space<vmem>>, vector<1x64xf32>
    %50 = vector.broadcast %49 : vector<1x64xf32> to vector<16x64xf32>
    %51 = arith.addf %48, %50 : vector<16x64xf32>
    %cst_39 = arith.constant 0.000000e+00 : f32
    %52 = vector.broadcast %cst_39 : f32 to vector<16x64xf32>
    %53 = arith.cmpf oge, %51, %52 : vector<16x64xf32>
    %cst_40 = arith.constant 1.000000e-01 : f32
    %54 = vector.broadcast %cst_40 : f32 to vector<16x64xf32>
    %55 = arith.mulf %54, %51 : vector<16x64xf32>
    %56 = arith.select %53, %51, %55 : vector<16x64xi1>, vector<16x64xf32>
    %c1_41 = arith.constant 1 : index
    %c0_42 = arith.constant 0 : index
    %57 = vector.load %arg10[%c1_41, %c0_42] : memref<130x64xf32, #tpu.memory_space<vmem>>, vector<16x64xf32>
    tpu.vector_store %arg10[%c1_41, %c0_42], %56 {strides = array<i32>} : memref<130x64xf32, #tpu.memory_space<vmem>>, vector<16x64xf32>,
    %c1_43 = arith.constant 1 : index
    %c0_44 = arith.constant 0 : index
    %c0_45 = arith.constant 0 : index
    %58 = vector.load %arg4[%c1_43, %c0_44, %c0_45] : memref<6x192x64xf32, #tpu.memory_space<vmem>>, vector<1x192x64xf32>
    %59 = vector.shape_cast %58 : vector<1x192x64xf32> to vector<192x64xf32>
    %c0_46 = arith.constant 0 : index
    %c0_47 = arith.constant 0 : index
    %60 = vector.load %arg10[%c0_46, %c0_47] : memref<130x64xf32, #tpu.memory_space<vmem>>, vector<16x64xf32>
    %61 = vector.extract_strided_slice %59 {offsets = [0, 0], sizes = [64, 64], strides = [1, 1]} : vector<192x64xf32> to vector<64x64xf32>
    %cst_48 = arith.constant dense<0.000000e+00> : vector<16x64xf32>
    %62 = tpu.matmul %60, %61, %cst_48 {dimension_numbers = #tpu.dot_dimension_numbers<[1], [0], [0], [1], [0, 0, 1, 1], [], []>} : vector<16x64xf32>, vector<64x64xf32>, vector<16x64xf32> -> vector<16x64xf32>
    %c1_49 = arith.constant 1 : index
    %c0_50 = arith.constant 0 : index
    %63 = vector.load %arg10[%c1_49, %c0_50] : memref<130x64xf32, #tpu.memory_space<vmem>>, vector<16x64xf32>
    %64 = vector.extract_strided_slice %59 {offsets = [64, 0], sizes = [64, 64], strides = [1, 1]} : vector<192x64xf32> to vector<64x64xf32>
    %cst_51 = arith.constant dense<0.000000e+00> : vector<16x64xf32>
    %65 = tpu.matmul %63, %64, %cst_51 {dimension_numbers = #tpu.dot_dimension_numbers<[1], [0], [0], [1], [0, 0, 1, 1], [], []>} : vector<16x64xf32>, vector<64x64xf32>, vector<16x64xf32> -> vector<16x64xf32>
    %66 = arith.addf %62, %65 : vector<16x64xf32>
    %c2_52 = arith.constant 2 : index
    %c0_53 = arith.constant 0 : index
    %67 = vector.load %arg10[%c2_52, %c0_53] : memref<130x64xf32, #tpu.memory_space<vmem>>, vector<16x64xf32>
    %68 = vector.extract_strided_slice %59 {offsets = [128, 0], sizes = [64, 64], strides = [1, 1]} : vector<192x64xf32> to vector<64x64xf32>
    %cst_54 = arith.constant dense<0.000000e+00> : vector<16x64xf32>
    %69 = tpu.matmul %67, %68, %cst_54 {dimension_numbers = #tpu.dot_dimension_numbers<[1], [0], [0], [1], [0, 0, 1, 1], [], []>} : vector<16x64xf32>, vector<64x64xf32>, vector<16x64xf32> -> vector<16x64xf32>
    %70 = arith.addf %66, %69 : vector<16x64xf32>
    %c1_55 = arith.constant 1 : index
    %c0_56 = arith.constant 0 : index
    %71 = vector.load %arg5[%c1_55, %c0_56] : memref<6x64xf32, #tpu.memory_space<vmem>>, vector<1x64xf32>
    %72 = vector.broadcast %71 : vector<1x64xf32> to vector<16x64xf32>
    %73 = arith.addf %70, %72 : vector<16x64xf32>
    %cst_57 = arith.constant 0.000000e+00 : f32
    %74 = vector.broadcast %cst_57 : f32 to vector<16x64xf32>
    %75 = arith.cmpf oge, %73, %74 : vector<16x64xf32>
    %cst_58 = arith.constant 1.000000e-01 : f32
    %76 = vector.broadcast %cst_58 : f32 to vector<16x64xf32>
    %77 = arith.mulf %76, %73 : vector<16x64xf32>
    %78 = arith.select %75, %73, %77 : vector<16x64xi1>, vector<16x64xf32>
    %79 = arith.addf %32, %78 : vector<16x64xf32>
    %c1_59 = arith.constant 1 : index
    %c0_60 = arith.constant 0 : index
    %80 = vector.load %arg10[%c1_59, %c0_60] : memref<130x64xf32, #tpu.memory_space<vmem>>, vector<16x64xf32>
    tpu.vector_store %arg10[%c1_59, %c0_60], %79 {strides = array<i32>} : memref<130x64xf32, #tpu.memory_space<vmem>>, vector<16x64xf32>,
    %c2_61 = arith.constant 2 : index
    %c0_62 = arith.constant 0 : index
    %c0_63 = arith.constant 0 : index
    %81 = vector.load %arg4[%c2_61, %c0_62, %c0_63] : memref<6x192x64xf32, #tpu.memory_space<vmem>>, vector<1x192x64xf32>
    %82 = vector.shape_cast %81 : vector<1x192x64xf32> to vector<192x64xf32>
    %c0_64 = arith.constant 0 : index
    %c0_65 = arith.constant 0 : index
    %83 = vector.load %arg10[%c0_64, %c0_65] : memref<130x64xf32, #tpu.memory_space<vmem>>, vector<16x64xf32>
    %84 = vector.extract_strided_slice %82 {offsets = [0, 0], sizes = [64, 64], strides = [1, 1]} : vector<192x64xf32> to vector<64x64xf32>
    %cst_66 = arith.constant dense<0.000000e+00> : vector<16x64xf32>
    %85 = tpu.matmul %83, %84, %cst_66 {dimension_numbers = #tpu.dot_dimension_numbers<[1], [0], [0], [1], [0, 0, 1, 1], [], []>} : vector<16x64xf32>, vector<64x64xf32>, vector<16x64xf32> -> vector<16x64xf32>
    %c1_67 = arith.constant 1 : index
    %c0_68 = arith.constant 0 : index
    %86 = vector.load %arg10[%c1_67, %c0_68] : memref<130x64xf32, #tpu.memory_space<vmem>>, vector<16x64xf32>
    %87 = vector.extract_strided_slice %82 {offsets = [64, 0], sizes = [64, 64], strides = [1, 1]} : vector<192x64xf32> to vector<64x64xf32>
    %cst_69 = arith.constant dense<0.000000e+00> : vector<16x64xf32>
    %88 = tpu.matmul %86, %87, %cst_69 {dimension_numbers = #tpu.dot_dimension_numbers<[1], [0], [0], [1], [0, 0, 1, 1], [], []>} : vector<16x64xf32>, vector<64x64xf32>, vector<16x64xf32> -> vector<16x64xf32>
    %89 = arith.addf %85, %88 : vector<16x64xf32>
    %c2_70 = arith.constant 2 : index
    %c0_71 = arith.constant 0 : index
    %90 = vector.load %arg10[%c2_70, %c0_71] : memref<130x64xf32, #tpu.memory_space<vmem>>, vector<16x64xf32>
    %91 = vector.extract_strided_slice %82 {offsets = [128, 0], sizes = [64, 64], strides = [1, 1]} : vector<192x64xf32> to vector<64x64xf32>
    %cst_72 = arith.constant dense<0.000000e+00> : vector<16x64xf32>
    %92 = tpu.matmul %90, %91, %cst_72 {dimension_numbers = #tpu.dot_dimension_numbers<[1], [0], [0], [1], [0, 0, 1, 1], [], []>} : vector<16x64xf32>, vector<64x64xf32>, vector<16x64xf32> -> vector<16x64xf32>
    %93 = arith.addf %89, %92 : vector<16x64xf32>
    %c2_73 = arith.constant 2 : index
    %c0_74 = arith.constant 0 : index
    %94 = vector.load %arg5[%c2_73, %c0_74] : memref<6x64xf32, #tpu.memory_space<vmem>>, vector<1x64xf32>
    %95 = vector.broadcast %94 : vector<1x64xf32> to vector<16x64xf32>
    %96 = arith.addf %93, %95 : vector<16x64xf32>
    %cst_75 = arith.constant 0.000000e+00 : f32
    %97 = vector.broadcast %cst_75 : f32 to vector<16x64xf32>
    %98 = arith.cmpf oge, %96, %97 : vector<16x64xf32>
    %cst_76 = arith.constant 1.000000e-01 : f32
    %99 = vector.broadcast %cst_76 : f32 to vector<16x64xf32>
    %100 = arith.mulf %99, %96 : vector<16x64xf32>
    %101 = arith.select %98, %96, %100 : vector<16x64xi1>, vector<16x64xf32>
    %c1_77 = arith.constant 1 : index
    %c0_78 = arith.constant 0 : index
    %102 = vector.load %arg10[%c1_77, %c0_78] : memref<130x64xf32, #tpu.memory_space<vmem>>, vector<16x64xf32>
    tpu.vector_store %arg10[%c1_77, %c0_78], %101 {strides = array<i32>} : memref<130x64xf32, #tpu.memory_space<vmem>>, vector<16x64xf32>,
    %c3_79 = arith.constant 3 : index
    %c0_80 = arith.constant 0 : index
    %c0_81 = arith.constant 0 : index
    %103 = vector.load %arg4[%c3_79, %c0_80, %c0_81] : memref<6x192x64xf32, #tpu.memory_space<vmem>>, vector<1x192x64xf32>
    %104 = vector.shape_cast %103 : vector<1x192x64xf32> to vector<192x64xf32>
    %c0_82 = arith.constant 0 : index
    %c0_83 = arith.constant 0 : index
    %105 = vector.load %arg10[%c0_82, %c0_83] : memref<130x64xf32, #tpu.memory_space<vmem>>, vector<16x64xf32>
    %106 = vector.extract_strided_slice %104 {offsets = [0, 0], sizes = [64, 64], strides = [1, 1]} : vector<192x64xf32> to vector<64x64xf32>
    %cst_84 = arith.constant dense<0.000000e+00> : vector<16x64xf32>
    %107 = tpu.matmul %105, %106, %cst_84 {dimension_numbers = #tpu.dot_dimension_numbers<[1], [0], [0], [1], [0, 0, 1, 1], [], []>} : vector<16x64xf32>, vector<64x64xf32>, vector<16x64xf32> -> vector<16x64xf32>
    %c1_85 = arith.constant 1 : index
    %c0_86 = arith.constant 0 : index
    %108 = vector.load %arg10[%c1_85, %c0_86] : memref<130x64xf32, #tpu.memory_space<vmem>>, vector<16x64xf32>
    %109 = vector.extract_strided_slice %104 {offsets = [64, 0], sizes = [64, 64], strides = [1, 1]} : vector<192x64xf32> to vector<64x64xf32>
    %cst_87 = arith.constant dense<0.000000e+00> : vector<16x64xf32>
    %110 = tpu.matmul %108, %109, %cst_87 {dimension_numbers = #tpu.dot_dimension_numbers<[1], [0], [0], [1], [0, 0, 1, 1], [], []>} : vector<16x64xf32>, vector<64x64xf32>, vector<16x64xf32> -> vector<16x64xf32>
    %111 = arith.addf %107, %110 : vector<16x64xf32>
    %c2_88 = arith.constant 2 : index
    %c0_89 = arith.constant 0 : index
    %112 = vector.load %arg10[%c2_88, %c0_89] : memref<130x64xf32, #tpu.memory_space<vmem>>, vector<16x64xf32>
    %113 = vector.extract_strided_slice %104 {offsets = [128, 0], sizes = [64, 64], strides = [1, 1]} : vector<192x64xf32> to vector<64x64xf32>
    %cst_90 = arith.constant dense<0.000000e+00> : vector<16x64xf32>
    %114 = tpu.matmul %112, %113, %cst_90 {dimension_numbers = #tpu.dot_dimension_numbers<[1], [0], [0], [1], [0, 0, 1, 1], [], []>} : vector<16x64xf32>, vector<64x64xf32>, vector<16x64xf32> -> vector<16x64xf32>
    %115 = arith.addf %111, %114 : vector<16x64xf32>
    %c3_91 = arith.constant 3 : index
    %c0_92 = arith.constant 0 : index
    %116 = vector.load %arg5[%c3_91, %c0_92] : memref<6x64xf32, #tpu.memory_space<vmem>>, vector<1x64xf32>
    %117 = vector.broadcast %116 : vector<1x64xf32> to vector<16x64xf32>
    %118 = arith.addf %115, %117 : vector<16x64xf32>
    %cst_93 = arith.constant 0.000000e+00 : f32
    %119 = vector.broadcast %cst_93 : f32 to vector<16x64xf32>
    %120 = arith.cmpf oge, %118, %119 : vector<16x64xf32>
    %cst_94 = arith.constant 1.000000e-01 : f32
    %121 = vector.broadcast %cst_94 : f32 to vector<16x64xf32>
    %122 = arith.mulf %121, %118 : vector<16x64xf32>
    %123 = arith.select %120, %118, %122 : vector<16x64xi1>, vector<16x64xf32>
    %124 = arith.addf %79, %123 : vector<16x64xf32>
    %c1_95 = arith.constant 1 : index
    %c0_96 = arith.constant 0 : index
    %125 = vector.load %arg10[%c1_95, %c0_96] : memref<130x64xf32, #tpu.memory_space<vmem>>, vector<16x64xf32>
    tpu.vector_store %arg10[%c1_95, %c0_96], %124 {strides = array<i32>} : memref<130x64xf32, #tpu.memory_space<vmem>>, vector<16x64xf32>,
    %c4_97 = arith.constant 4 : index
    %c0_98 = arith.constant 0 : index
    %c0_99 = arith.constant 0 : index
    %126 = vector.load %arg4[%c4_97, %c0_98, %c0_99] : memref<6x192x64xf32, #tpu.memory_space<vmem>>, vector<1x192x64xf32>
    %127 = vector.shape_cast %126 : vector<1x192x64xf32> to vector<192x64xf32>
    %c0_100 = arith.constant 0 : index
    %c0_101 = arith.constant 0 : index
    %128 = vector.load %arg10[%c0_100, %c0_101] : memref<130x64xf32, #tpu.memory_space<vmem>>, vector<16x64xf32>
    %129 = vector.extract_strided_slice %127 {offsets = [0, 0], sizes = [64, 64], strides = [1, 1]} : vector<192x64xf32> to vector<64x64xf32>
    %cst_102 = arith.constant dense<0.000000e+00> : vector<16x64xf32>
    %130 = tpu.matmul %128, %129, %cst_102 {dimension_numbers = #tpu.dot_dimension_numbers<[1], [0], [0], [1], [0, 0, 1, 1], [], []>} : vector<16x64xf32>, vector<64x64xf32>, vector<16x64xf32> -> vector<16x64xf32>
    %c1_103 = arith.constant 1 : index
    %c0_104 = arith.constant 0 : index
    %131 = vector.load %arg10[%c1_103, %c0_104] : memref<130x64xf32, #tpu.memory_space<vmem>>, vector<16x64xf32>
    %132 = vector.extract_strided_slice %127 {offsets = [64, 0], sizes = [64, 64], strides = [1, 1]} : vector<192x64xf32> to vector<64x64xf32>
    %cst_105 = arith.constant dense<0.000000e+00> : vector<16x64xf32>
    %133 = tpu.matmul %131, %132, %cst_105 {dimension_numbers = #tpu.dot_dimension_numbers<[1], [0], [0], [1], [0, 0, 1, 1], [], []>} : vector<16x64xf32>, vector<64x64xf32>, vector<16x64xf32> -> vector<16x64xf32>
    %134 = arith.addf %130, %133 : vector<16x64xf32>
    %c2_106 = arith.constant 2 : index
    %c0_107 = arith.constant 0 : index
    %135 = vector.load %arg10[%c2_106, %c0_107] : memref<130x64xf32, #tpu.memory_space<vmem>>, vector<16x64xf32>
    %136 = vector.extract_strided_slice %127 {offsets = [128, 0], sizes = [64, 64], strides = [1, 1]} : vector<192x64xf32> to vector<64x64xf32>
    %cst_108 = arith.constant dense<0.000000e+00> : vector<16x64xf32>
    %137 = tpu.matmul %135, %136, %cst_108 {dimension_numbers = #tpu.dot_dimension_numbers<[1], [0], [0], [1], [0, 0, 1, 1], [], []>} : vector<16x64xf32>, vector<64x64xf32>, vector<16x64xf32> -> vector<16x64xf32>
    %138 = arith.addf %134, %137 : vector<16x64xf32>
    %c4_109 = arith.constant 4 : index
    %c0_110 = arith.constant 0 : index
    %139 = vector.load %arg5[%c4_109, %c0_110] : memref<6x64xf32, #tpu.memory_space<vmem>>, vector<1x64xf32>
    %140 = vector.broadcast %139 : vector<1x64xf32> to vector<16x64xf32>
    %141 = arith.addf %138, %140 : vector<16x64xf32>
    %cst_111 = arith.constant 0.000000e+00 : f32
    %142 = vector.broadcast %cst_111 : f32 to vector<16x64xf32>
    %143 = arith.cmpf oge, %141, %142 : vector<16x64xf32>
    %cst_112 = arith.constant 1.000000e-01 : f32
    %144 = vector.broadcast %cst_112 : f32 to vector<16x64xf32>
    %145 = arith.mulf %144, %141 : vector<16x64xf32>
    %146 = arith.select %143, %141, %145 : vector<16x64xi1>, vector<16x64xf32>
    %c1_113 = arith.constant 1 : index
    %c0_114 = arith.constant 0 : index
    %147 = vector.load %arg10[%c1_113, %c0_114] : memref<130x64xf32, #tpu.memory_space<vmem>>, vector<16x64xf32>
    tpu.vector_store %arg10[%c1_113, %c0_114], %146 {strides = array<i32>} : memref<130x64xf32, #tpu.memory_space<vmem>>, vector<16x64xf32>,
    %c5 = arith.constant 5 : index
    %c0_115 = arith.constant 0 : index
    %c0_116 = arith.constant 0 : index
    %148 = vector.load %arg4[%c5, %c0_115, %c0_116] : memref<6x192x64xf32, #tpu.memory_space<vmem>>, vector<1x192x64xf32>
    %149 = vector.shape_cast %148 : vector<1x192x64xf32> to vector<192x64xf32>
    %c0_117 = arith.constant 0 : index
    %c0_118 = arith.constant 0 : index
    %150 = vector.load %arg10[%c0_117, %c0_118] : memref<130x64xf32, #tpu.memory_space<vmem>>, vector<16x64xf32>
    %151 = vector.extract_strided_slice %149 {offsets = [0, 0], sizes = [64, 64], strides = [1, 1]} : vector<192x64xf32> to vector<64x64xf32>
    %cst_119 = arith.constant dense<0.000000e+00> : vector<16x64xf32>
    %152 = tpu.matmul %150, %151, %cst_119 {dimension_numbers = #tpu.dot_dimension_numbers<[1], [0], [0], [1], [0, 0, 1, 1], [], []>} : vector<16x64xf32>, vector<64x64xf32>, vector<16x64xf32> -> vector<16x64xf32>
    %c1_120 = arith.constant 1 : index
    %c0_121 = arith.constant 0 : index
    %153 = vector.load %arg10[%c1_120, %c0_121] : memref<130x64xf32, #tpu.memory_space<vmem>>, vector<16x64xf32>
    %154 = vector.extract_strided_slice %149 {offsets = [64, 0], sizes = [64, 64], strides = [1, 1]} : vector<192x64xf32> to vector<64x64xf32>
    %cst_122 = arith.constant dense<0.000000e+00> : vector<16x64xf32>
    %155 = tpu.matmul %153, %154, %cst_122 {dimension_numbers = #tpu.dot_dimension_numbers<[1], [0], [0], [1], [0, 0, 1, 1], [], []>} : vector<16x64xf32>, vector<64x64xf32>, vector<16x64xf32> -> vector<16x64xf32>
    %156 = arith.addf %152, %155 : vector<16x64xf32>
    %c2_123 = arith.constant 2 : index
    %c0_124 = arith.constant 0 : index
    %157 = vector.load %arg10[%c2_123, %c0_124] : memref<130x64xf32, #tpu.memory_space<vmem>>, vector<16x64xf32>
    %158 = vector.extract_strided_slice %149 {offsets = [128, 0], sizes = [64, 64], strides = [1, 1]} : vector<192x64xf32> to vector<64x64xf32>
    %cst_125 = arith.constant dense<0.000000e+00> : vector<16x64xf32>
    %159 = tpu.matmul %157, %158, %cst_125 {dimension_numbers = #tpu.dot_dimension_numbers<[1], [0], [0], [1], [0, 0, 1, 1], [], []>} : vector<16x64xf32>, vector<64x64xf32>, vector<16x64xf32> -> vector<16x64xf32>
    %160 = arith.addf %156, %159 : vector<16x64xf32>
    %c5_126 = arith.constant 5 : index
    %c0_127 = arith.constant 0 : index
    %161 = vector.load %arg5[%c5_126, %c0_127] : memref<6x64xf32, #tpu.memory_space<vmem>>, vector<1x64xf32>
    %162 = vector.broadcast %161 : vector<1x64xf32> to vector<16x64xf32>
    %163 = arith.addf %160, %162 : vector<16x64xf32>
    %cst_128 = arith.constant 0.000000e+00 : f32
    %164 = vector.broadcast %cst_128 : f32 to vector<16x64xf32>
    %165 = arith.cmpf oge, %163, %164 : vector<16x64xf32>
    %cst_129 = arith.constant 1.000000e-01 : f32
    %166 = vector.broadcast %cst_129 : f32 to vector<16x64xf32>
    %167 = arith.mulf %166, %163 : vector<16x64xf32>
    %168 = arith.select %165, %163, %167 : vector<16x64xi1>, vector<16x64xf32>
    %169 = arith.addf %124, %168 : vector<16x64xf32>
    %c1_130 = arith.constant 1 : index
    %c0_131 = arith.constant 0 : index
    %170 = vector.load %arg10[%c1_130, %c0_131] : memref<130x64xf32, #tpu.memory_space<vmem>>, vector<16x64xf32>
    tpu.vector_store %arg10[%c1_130, %c0_131], %169 {strides = array<i32>} : memref<130x64xf32, #tpu.memory_space<vmem>>, vector<16x64xf32>,
    %c0_132 = arith.constant 0 : index
    %c0_133 = arith.constant 0 : index
    %171 = vector.load %arg10[%c0_132, %c0_133] : memref<130x64xf32, #tpu.memory_space<vmem>>, vector<128x64xf32>
    %c1_134 = arith.constant 1 : index
    %c0_135 = arith.constant 0 : index
    %172 = vector.load %arg10[%c1_134, %c0_135] : memref<130x64xf32, #tpu.memory_space<vmem>>, vector<128x64xf32>
    %c2_136 = arith.constant 2 : index
    %c0_137 = arith.constant 0 : index
    %173 = vector.load %arg10[%c2_136, %c0_137] : memref<130x64xf32, #tpu.memory_space<vmem>>, vector<128x64xf32>
    %174 = tpu.concatenate %171, %172, %173 in 1 : vector<128x64xf32>, vector<128x64xf32>, vector<128x64xf32> -> vector<128x192xf32>
    %175 = tpu.transpose %174, [1, 0] : vector<128x192xf32> -> vector<192x128xf32>
    %c0_138 = arith.constant 0 : index
    %c0_139 = arith.constant 0 : index
    %c0_140 = arith.constant 0 : index
    %176 = vector.load %arg8[%c0_138, %c0_139, %c0_140] : memref<1x192x128xf32, #tpu.memory_space<vmem>>, vector<1x192x128xf32>
    %177 = vector.shape_cast %176 : vector<1x192x128xf32> to vector<192x128xf32>
    %178 = vector.shape_cast %175 : vector<192x128xf32> to vector<1x192x128xf32>
    tpu.vector_store %arg8[%c0_138, %c0_139, %c0_140], %178 {strides = array<i32>} : memref<1x192x128xf32, #tpu.memory_space<vmem>>, vector<1x192x128xf32>,
    %c0_141 = arith.constant 0 : index
    %c0_142 = arith.constant 0 : index
    %179 = vector.load %arg6[%c0_141, %c0_142] : memref<8x192xf32, #tpu.memory_space<vmem>>, vector<8x192xf32>
    %cst_143 = arith.constant dense<0.000000e+00> : vector<8x128xf32>
    %180 = tpu.matmul %179, %175, %cst_143 {dimension_numbers = #tpu.dot_dimension_numbers<[1], [0], [0], [1], [0, 0, 1, 1], [], []>} : vector<8x192xf32>, vector<192x128xf32>, vector<8x128xf32> -> vector<8x128xf32>
    %c0_144 = arith.constant 0 : index
    %c0_145 = arith.constant 0 : index
    %181 = vector.load %arg7[%c0_144, %c0_145] : memref<8x1xf32, #tpu.memory_space<vmem>>, vector<8x1xf32>
    %182 = vector.broadcast %181 : vector<8x1xf32> to vector<8x128xf32>
    %183 = arith.addf %180, %182 : vector<8x128xf32>
    %c0_146 = arith.constant 0 : index
    %c0_147 = arith.constant 0 : index
    %c0_148 = arith.constant 0 : index
    %184 = vector.load %arg9[%c0_146, %c0_147, %c0_148] : memref<1x8x128xf32, #tpu.memory_space<vmem>>, vector<1x8x128xf32>
    %185 = vector.shape_cast %184 : vector<1x8x128xf32> to vector<8x128xf32>
    %186 = vector.shape_cast %183 : vector<8x128xf32> to vector<1x8x128xf32>
    tpu.vector_store %arg9[%c0_146, %c0_147, %c0_148], %186 {strides = array<i32>} : memref<1x8x128xf32, #tpu.memory_space<vmem>>, vector<1x8x128xf32>,
    return
  }
  func.func @transform_0(%arg0: i32) -> (i32, i32, i32) {
    %c0_i32 = arith.constant 0 : i32
    %c0_i32_0 = arith.constant 0 : i32
    %c0_i32_1 = arith.constant 0 : i32
    return %arg0, %c0_i32, %c0_i32_0 : i32, i32, i32
  }
  func.func @transform_1(%arg0: i32) -> (i32, i32) {
    %c0_i32 = arith.constant 0 : i32
    %c0_i32_0 = arith.constant 0 : i32
    %c0_i32_1 = arith.constant 0 : i32
    return %c0_i32, %c0_i32_0 : i32, i32
  }
  func.func @transform_2(%arg0: i32) -> (i32, i32) {
    %c0_i32 = arith.constant 0 : i32
    %c0_i32_0 = arith.constant 0 : i32
    %c0_i32_1 = arith.constant 0 : i32
    return %c0_i32, %c0_i32_0 : i32, i32
  }
  func.func @transform_3(%arg0: i32) -> (i32, i32, i32) {
    %c0_i32 = arith.constant 0 : i32
    %c0_i32_0 = arith.constant 0 : i32
    %c0_i32_1 = arith.constant 0 : i32
    %c0_i32_2 = arith.constant 0 : i32
    return %c0_i32, %c0_i32_0, %c0_i32_1 : i32, i32, i32
  }
  func.func @transform_4(%arg0: i32) -> (i32, i32) {
    %c0_i32 = arith.constant 0 : i32
    %c0_i32_0 = arith.constant 0 : i32
    %c0_i32_1 = arith.constant 0 : i32
    return %c0_i32, %c0_i32_0 : i32, i32
  }
  func.func @transform_5(%arg0: i32) -> (i32, i32) {
    %c0_i32 = arith.constant 0 : i32
    %c0_i32_0 = arith.constant 0 : i32
    %c0_i32_1 = arith.constant 0 : i32
    return %c0_i32, %c0_i32_0 : i32, i32
  }
  func.func @transform_6(%arg0: i32) -> (i32, i32) {
    %c0_i32 = arith.constant 0 : i32
    %c0_i32_0 = arith.constant 0 : i32
    %c0_i32_1 = arith.constant 0 : i32
    return %c0_i32, %c0_i32_0 : i32, i32
  }
  func.func @transform_7(%arg0: i32) -> (i32, i32, i32) {
    %c0_i32 = arith.constant 0 : i32
    %c0_i32_0 = arith.constant 0 : i32
    %c0_i32_1 = arith.constant 0 : i32
    return %arg0, %c0_i32, %c0_i32_0 : i32, i32, i32
  }
  func.func @transform_8(%arg0: i32) -> (i32, i32, i32) {
    %c0_i32 = arith.constant 0 : i32
    %c0_i32_0 = arith.constant 0 : i32
    %c0_i32_1 = arith.constant 0 : i32
    return %arg0, %c0_i32, %c0_i32_0 : i32, i32, i32
  }
}

</mosaic_0001>

<llo_original>
// kernel: tpu_custom_call.1
$region0: #{tpu_custom_call.1}
  #allocation0 [shape = 'u32[]', space=smem, size = 0x4, offset = 0x4, fixed_abs, tag = 'smem constant byte address 0x4 - core index']
  #allocation1 [shape = 'u32[144,128]{1,0:T(1,128)}', space=vmem, size = 0x12000, scoped, tag = 'internal scratch']
  #allocation2 [shape = 'f32[130,64]{1,0:T(8,128)}', space=vmem, size = 0x11000, scoped, tag = 'scratch operand']
  %s0 = inlined_call_operand.vmem [shape: f32[2,20,16], index: 0, kind: input, shape index: {}]
  %s1 = inlined_call_operand.vmem [shape: f32[80,64], index: 1, kind: input, shape index: {}]
  %s2 = inlined_call_operand.vmem [shape: f32[1,64], index: 2, kind: input, shape index: {}]
  %s3 = inlined_call_operand.vmem [shape: f32[6,192,64], index: 3, kind: input, shape index: {}]
  %s4 = inlined_call_operand.vmem [shape: f32[6,64], index: 4, kind: input, shape index: {}]
  %s5 = inlined_call_operand.vmem [shape: f32[8,192], index: 5, kind: input, shape index: {}]
  %s6 = inlined_call_operand.vmem [shape: f32[8,1], index: 6, kind: input, shape index: {}]
  %s7 = inlined_call_operand.hbm [shape: f32[2,192,128], index: 7, kind: output, shape index: {0}]
  %s8 = inlined_call_operand.hbm [shape: f32[2,8,128], index: 8, kind: output, shape index: {1}]
  %9 = xla_tuple %s7, %s8
  %s10 = sld [smem:[#allocation0]]
  $region69: #{tpu_custom_call.1} parent=0
    _
  %s12 = ssub.s32 1, %s10
  %s13 = scalar_select 0, %s12, %s10
  $region1: #{tpu_custom_call.1} parent=0
    #allocation3 [shape = 'u8[196608]{0}', space=vmem, size = 0x30000, scoped, tag = 'output window, operand 0']
    #allocation4 [shape = 's32[2]{0}', space=sflag, size = 0x8, scoped, tag = 'scoped memory for tpu_custom_call.1']
    #allocation5 [shape = 'u8[8192]{0}', space=vmem, size = 0x2000, scoped, tag = 'output window, operand 1']
    #allocation6 [shape = 's32[2]{0}', space=sflag, size = 0x8, scoped, tag = 'scoped memory for tpu_custom_call.1']
    %14 = vsyncpa [#allocation4], 0
    %s15 = scalar_lea.sflag [#allocation4], 1
    %16 = vsyncpa %s15, 0
    %17 = vsyncpa [#allocation6], 0
    %s18 = scalar_lea.sflag [#allocation6], 1
    %19 = vsyncpa %s18, 0
    loop: start=0, step=1, limit=4
    $region2: #{tpu_custom_call.1} parent=1 // loop_pre_header
      _
    $region3: #{tpu_custom_call.1} parent=1 // loop_header
      %s21 = sphi 0, %s25
      %p22 = scmp.ge.s32.totalorder %s21, 4
      %s31 = sphi 0, %s33
      %s34 = sphi 0, %s31
      %s35 = sphi 0, %s34
      %s51 = sphi 0, %s35
      %s55 = sphi 0, %s55
      %s57 = sphi 0, %s55
      %s58 = sphi 0, %s57
      %s72 = sphi 0, %s58
      %s76 = sphi 0, %s76
      %s78 = sphi 0, %s76
      %s79 = sphi 0, %s78
      %s93 = sphi 0, %s79
      %s97 = sphi 0, %s97
      %s99 = sphi 0, %s97
      %s100 = sphi 0, %s99
      %s114 = sphi 0, %s100
      %s118 = sphi 0, %s118
      %s120 = sphi 0, %s118
      %s121 = sphi 0, %s120
      %s135 = sphi 0, %s121
      %s139 = sphi 0, %s139
      %s141 = sphi 0, %s139
      %s142 = sphi 0, %s141
      %s156 = sphi 0, %s142
      %s160 = sphi 0, %s160
      %s162 = sphi 0, %s160
      %s163 = sphi 0, %s162
      %s177 = sphi 0, %s163
      %s183 = sphi 0, %s185
      %s186 = sphi 0, %s183
      %s187 = sphi 0, %s186
      %s203 = sphi 0, %s187
      %s209 = sphi 0, %s211
      %s212 = sphi 0, %s209
      %s213 = sphi 0, %s212
      %s229 = sphi 0, %s213
    $region4: #{tpu_custom_call.1} parent=1 // loop_header_branch
      %24 = sbr.rel (%p22) target = $region8
    $region5: #{tpu_custom_call.1} parent=1 // loop_body
      %s26 = ssub.s32 %s21, 1
      %s27 = ssub.s32 %s21, 2
      %s28 = sadd.s32 %s21, 1
      %s29 = ssub.s32 %s21, %s28
      %p30 = scmp.eq.s32.totalorder %s29, 0
      %s32 = sadd.s32 %s31, 1
      %s33 = scalar_select %p30, %s31, %s32
      %p36 = pneg %p30
      %p37 = scmp.eq.s32.totalorder %s21, 1
      %p38 = por %p36, %p37
      %p39 = scmp.ne.s32.totalorder %s31, %s34
      %p40 = scmp.eq.s32.totalorder %s21, 0
      %p41 = por %p39, %p40
      %p42 = scmp.ne.s32.totalorder %s31, %s34
      %p43 = scmp.eq.s32.totalorder %s26, 1
      %p44 = por %p42, %p43
      %p45 = scmp.ne.s32.totalorder %s34, %s35
      %p46 = scmp.eq.s32.totalorder %s26, 0
      %p47 = por %p45, %p46
      %p48 = scmp.ne.s32.totalorder %s34, %s35
      %p49 = scmp.eq.s32.totalorder %s27, 1
      %p50 = por %p48, %p49
      %p52 = scmp.ne.s32.totalorder %s35, %s51
      %p53 = scmp.eq.s32.totalorder %s27, 0
      %p54 = por %p52, %p53
      %s56 = sadd.s32 %s55, 1
      %p59 = scmp.eq.s32.totalorder %s21, 1
      %p60 = scmp.ne.s32.totalorder %s55, %s57
      %p61 = scmp.eq.s32.totalorder %s21, 0
      %p62 = por %p60, %p61
      %p63 = scmp.ne.s32.totalorder %s55, %s57
      %p64 = scmp.eq.s32.totalorder %s26, 1
      %p65 = por %p63, %p64
      %p66 = scmp.ne.s32.totalorder %s57, %s58
      %p67 = scmp.eq.s32.totalorder %s26, 0
      %p68 = por %p66, %p67
      %p69 = scmp.ne.s32.totalorder %s57, %s58
      %p70 = scmp.eq.s32.totalorder %s27, 1
      %p71 = por %p69, %p70
      %p73 = scmp.ne.s32.totalorder %s58, %s72
      %p74 = scmp.eq.s32.totalorder %s27, 0
      %p75 = por %p73, %p74
      %s77 = sadd.s32 %s76, 1
      %p80 = scmp.eq.s32.totalorder %s21, 1
      %p81 = scmp.ne.s32.totalorder %s76, %s78
      %p82 = scmp.eq.s32.totalorder %s21, 0
      %p83 = por %p81, %p82
      %p84 = scmp.ne.s32.totalorder %s76, %s78
      %p85 = scmp.eq.s32.totalorder %s26, 1
      %p86 = por %p84, %p85
      %p87 = scmp.ne.s32.totalorder %s78, %s79
      %p88 = scmp.eq.s32.totalorder %s26, 0
      %p89 = por %p87, %p88
      %p90 = scmp.ne.s32.totalorder %s78, %s79
      %p91 = scmp.eq.s32.totalorder %s27, 1
      %p92 = por %p90, %p91
      %p94 = scmp.ne.s32.totalorder %s79, %s93
      %p95 = scmp.eq.s32.totalorder %s27, 0
      %p96 = por %p94, %p95
      %s98 = sadd.s32 %s97, 1
      %p101 = scmp.eq.s32.totalorder %s21, 1
      %p102 = scmp.ne.s32.totalorder %s97, %s99
      %p103 = scmp.eq.s32.totalorder %s21, 0
      %p104 = por %p102, %p103
      %p105 = scmp.ne.s32.totalorder %s97, %s99
      %p106 = scmp.eq.s32.totalorder %s26, 1
      %p107 = por %p105, %p106
      %p108 = scmp.ne.s32.totalorder %s99, %s100
      %p109 = scmp.eq.s32.totalorder %s26, 0
      %p110 = por %p108, %p109
      %p111 = scmp.ne.s32.totalorder %s99, %s100
      %p112 = scmp.eq.s32.totalorder %s27, 1
      %p113 = por %p111, %p112
      %p115 = scmp.ne.s32.totalorder %s100, %s114
      %p116 = scmp.eq.s32.totalorder %s27, 0
      %p117 = por %p115, %p116
      %s119 = sadd.s32 %s118, 1
      %p122 = scmp.eq.s32.totalorder %s21, 1
      %p123 = scmp.ne.s32.totalorder %s118, %s120
      %p124 = scmp.eq.s32.totalorder %s21, 0
      %p125 = por %p123, %p124
      %p126 = scmp.ne.s32.totalorder %s118, %s120
      %p127 = scmp.eq.s32.totalorder %s26, 1
      %p128 = por %p126, %p127
      %p129 = scmp.ne.s32.totalorder %s120, %s121
      %p130 = scmp.eq.s32.totalorder %s26, 0
      %p131 = por %p129, %p130
      %p132 = scmp.ne.s32.totalorder %s120, %s121
      %p133 = scmp.eq.s32.totalorder %s27, 1
      %p134 = por %p132, %p133
      %p136 = scmp.ne.s32.totalorder %s121, %s135
      %p137 = scmp.eq.s32.totalorder %s27, 0
      %p138 = por %p136, %p137
      %s140 = sadd.s32 %s139, 1
      %p143 = scmp.eq.s32.totalorder %s21, 1
      %p144 = scmp.ne.s32.totalorder %s139, %s141
      %p145 = scmp.eq.s32.totalorder %s21, 0
      %p146 = por %p144, %p145
      %p147 = scmp.ne.s32.totalorder %s139, %s141
      %p148 = scmp.eq.s32.totalorder %s26, 1
      %p149 = por %p147, %p148
      %p150 = scmp.ne.s32.totalorder %s141, %s142
      %p151 = scmp.eq.s32.totalorder %s26, 0
      %p152 = por %p150, %p151
      %p153 = scmp.ne.s32.totalorder %s141, %s142
      %p154 = scmp.eq.s32.totalorder %s27, 1
      %p155 = por %p153, %p154
      %p157 = scmp.ne.s32.totalorder %s142, %s156
      %p158 = scmp.eq.s32.totalorder %s27, 0
      %p159 = por %p157, %p158
      %s161 = sadd.s32 %s160, 1
      %p164 = scmp.eq.s32.totalorder %s21, 1
      %p165 = scmp.ne.s32.totalorder %s160, %s162
      %p166 = scmp.eq.s32.totalorder %s21, 0
      %p167 = por %p165, %p166
      %p168 = scmp.ne.s32.totalorder %s160, %s162
      %p169 = scmp.eq.s32.totalorder %s26, 1
      %p170 = por %p168, %p169
      %p171 = scmp.ne.s32.totalorder %s162, %s163
      %p172 = scmp.eq.s32.totalorder %s26, 0
      %p173 = por %p171, %p172
      %p174 = scmp.ne.s32.totalorder %s162, %s163
      %p175 = scmp.eq.s32.totalorder %s27, 1
      %p176 = por %p174, %p175
      %p178 = scmp.ne.s32.totalorder %s163, %s177
      %p179 = scmp.eq.s32.totalorder %s27, 0
      %p180 = por %p178, %p179
      %s181 = ssub.s32 %s21, %s28
      %p182 = scmp.eq.s32.totalorder %s181, 0
      %s184 = sadd.s32 %s183, 1
      %s185 = scalar_select %p182, %s183, %s184
      %p188 = pneg %p182
      %p189 = scmp.eq.s32.totalorder %s21, 1
      %p190 = por %p188, %p189
      %p191 = scmp.ne.s32.totalorder %s183, %s186
      %p192 = scmp.eq.s32.totalorder %s21, 0
      %p193 = por %p191, %p192
      %p194 = scmp.ne.s32.totalorder %s183, %s186
      %p195 = scmp.eq.s32.totalorder %s26, 1
      %p196 = por %p194, %p195
      %p197 = scmp.ne.s32.totalorder %s186, %s187
      %p198 = scmp.eq.s32.totalorder %s26, 0
      %p199 = por %p197, %p198
      %p200 = scmp.ne.s32.totalorder %s186, %s187
      %p201 = scmp.eq.s32.totalorder %s27, 1
      %p202 = por %p200, %p201
      %p204 = scmp.ne.s32.totalorder %s187, %s203
      %p205 = scmp.eq.s32.totalorder %s27, 0
      %p206 = por %p204, %p205
      %s207 = ssub.s32 %s21, %s28
      %p208 = scmp.eq.s32.totalorder %s207, 0
      %s210 = sadd.s32 %s209, 1
      %s211 = scalar_select %p208, %s209, %s210
      %p214 = pneg %p208
      %p215 = scmp.eq.s32.totalorder %s21, 1
      %p216 = por %p214, %p215
      %p217 = scmp.ne.s32.totalorder %s209, %s212
      %p218 = scmp.eq.s32.totalorder %s21, 0
      %p219 = por %p217, %p218
      %p220 = scmp.ne.s32.totalorder %s209, %s212
      %p221 = scmp.eq.s32.totalorder %s26, 1
      %p222 = por %p220, %p221
      %p223 = scmp.ne.s32.totalorder %s212, %s213
      %p224 = scmp.eq.s32.totalorder %s26, 0
      %p225 = por %p223, %p224
      %p226 = scmp.ne.s32.totalorder %s212, %s213
      %p227 = scmp.eq.s32.totalorder %s27, 1
      %p228 = por %p226, %p227
      %p230 = scmp.ne.s32.totalorder %s213, %s229
      %p231 = scmp.eq.s32.totalorder %s27, 0
      %p232 = por %p230, %p231
      %p233 = scmp.le.s32.totalorder 1, %s21
      %p234 = scmp.lt.s32.totalorder %s21, 3
      %p235 = pnand %p233, %p234
      %p236 = pneg %p235
      // Predicated region
      $region9: #{tpu_custom_call.1} parent=5 // pred_check
        _
      $region10: #{tpu_custom_call.1} parent=5 // pred_check_branch
        %238 = sbr.rel (%p235) target = $region12
      $region11: #{tpu_custom_call.1} parent=5 // pred_region
        %s239 = ssub.s32 %s21, 1
        // Predicated region
        $region13: #{tpu_custom_call.1} parent=11 // pred_check
          %p240 = pneg %p68
        $region14: #{tpu_custom_call.1} parent=11 // pred_check_branch
          %242 = sbr.rel (%p240) target = $region16
        $region15: #{tpu_custom_call.1} parent=11 // pred_region
          _
        $region16: #{tpu_custom_call.1} parent=11 // pred_fallthru
          _
        // Predicated region
        $region17: #{tpu_custom_call.1} parent=11 // pred_check
          %p243 = pneg %p89
        $region18: #{tpu_custom_call.1} parent=11 // pred_check_branch
          %245 = sbr.rel (%p243) target = $region20
        $region19: #{tpu_custom_call.1} parent=11 // pred_region
          _
        $region20: #{tpu_custom_call.1} parent=11 // pred_fallthru
          _
        // Predicated region
        $region21: #{tpu_custom_call.1} parent=11 // pred_check
          %p246 = pneg %p110
        $region22: #{tpu_custom_call.1} parent=11 // pred_check_branch
          %248 = sbr.rel (%p246) target = $region24
        $region23: #{tpu_custom_call.1} parent=11 // pred_region
          _
        $region24: #{tpu_custom_call.1} parent=11 // pred_fallthru
          _
        // Predicated region
        $region25: #{tpu_custom_call.1} parent=11 // pred_check
          %p249 = pneg %p131
        $region26: #{tpu_custom_call.1} parent=11 // pred_check_branch
          %251 = sbr.rel (%p249) target = $region28
        $region27: #{tpu_custom_call.1} parent=11 // pred_region
          _
        $region28: #{tpu_custom_call.1} parent=11 // pred_fallthru
          _
        // Predicated region
        $region29: #{tpu_custom_call.1} parent=11 // pred_check
          %p252 = pneg %p152
        $region30: #{tpu_custom_call.1} parent=11 // pred_check_branch
          %254 = sbr.rel (%p252) target = $region32
        $region31: #{tpu_custom_call.1} parent=11 // pred_region
          _
        $region32: #{tpu_custom_call.1} parent=11 // pred_fallthru
          _
        // Predicated region
        $region33: #{tpu_custom_call.1} parent=11 // pred_check
          %p255 = pneg %p173
        $region34: #{tpu_custom_call.1} parent=11 // pred_check_branch
          %257 = sbr.rel (%p255) target = $region36
        $region35: #{tpu_custom_call.1} parent=11 // pred_region
          _
        $region36: #{tpu_custom_call.1} parent=11 // pred_fallthru
          _
      $region12: #{tpu_custom_call.1} parent=5 // pred_fallthru
        _
      %p258 = scmp.lt.s32.totalorder %s21, 2
      // Predicated region
      $region37: #{tpu_custom_call.1} parent=5 // pred_check
        %p259 = pneg %p258
      $region38: #{tpu_custom_call.1} parent=5 // pred_check_branch
        %261 = sbr.rel (%p259) target = $region40
      $region39: #{tpu_custom_call.1} parent=5 // pred_region
        // Predicated region
        $region41: #{tpu_custom_call.1} parent=39 // pred_check
          %p262 = pneg %p41
        $region42: #{tpu_custom_call.1} parent=39 // pred_check_branch
          %264 = sbr.rel (%p262) target = $region44
        $region43: #{tpu_custom_call.1} parent=39 // pred_region
          %p265 = scmp.lt.s32.totalorder %s21, 1
          %s266 = scalar_select %p265, %s21, 1
          %s267 = smul.addr %s266, 3
          %s268 = smul.addr %s267, 8
          %s269 = scalar_lea.vmem %s0, %s268
        $region44: #{tpu_custom_call.1} parent=39 // pred_fallthru
          _
      $region40: #{tpu_custom_call.1} parent=5 // pred_fallthru
        _
      %p270 = scmp.le.s32.totalorder 1, %s21
      %p271 = scmp.lt.s32.totalorder %s21, 3
      %p272 = pnand %p270, %p271
      %p273 = pneg %p272
      // Predicated region
      $region45: #{tpu_custom_call.1} parent=5 // pred_check
        _
      $region46: #{tpu_custom_call.1} parent=5 // pred_check_branch
        %275 = sbr.rel (%p272) target = $region48
      $region47: #{tpu_custom_call.1} parent=5 // pred_region
        %s276 = ssub.s32 %s21, 1
        %p277 = scmp.lt.s32.totalorder %s26, 1
        %s278 = scalar_select %p277, %s26, 1
        %s279 = smul.addr %s278, 3
        %s280 = smul.addr %s279, 8
        %s281 = scalar_lea.vmem %s0, %s280
        %p282 = pneg %p47
        %p283 = pneg %p44
        %p284 = pneg %p68
        %p285 = pneg %p65
        %p286 = pneg %p89
        %p287 = pneg %p86
        %p288 = pneg %p110
        %p289 = pneg %p107
        %p290 = pneg %p131
        %p291 = pneg %p128
        %p292 = pneg %p152
        %p293 = pneg %p149
        %p294 = pneg %p173
        %p295 = pneg %p170
        %p296 = pneg %p199
        %p297 = pneg %p196
        %s298 = sand.u32 %s186, 1
        %s299 = scalar_lea.sflag [#allocation4], %s298
        %s300 = sand.u32 %s186, 1
        %s301 = smul.addr %s300, 192
        %s302 = scalar_lea.vmem [#allocation3], %s301
        %p303 = pneg %p225
        %p304 = pneg %p222
        %s305 = sand.u32 %s212, 1
        %s306 = scalar_lea.sflag [#allocation6], %s305
        %s307 = sand.u32 %s212, 1
        %s308 = smul.addr %s307, 8
        %s309 = scalar_lea.vmem [#allocation5], %s308
        %p310 = scmp.lt.s32.totalorder %s26, 1
        %s311 = scalar_select %p310, %s26, 1
        %s312 = smul.addr %s311, 3
        %s313 = smul.addr %s312, 8
        %s314 = scalar_lea.vmem %s0, %s313
        %v315 = vld [vmem:[%s1] sm:$0xff]
        %v316 = vld [vmem:[%s1 + $0x8] sm:$0xff]
        %v317 = vld [vmem:[%s1 + $0x10] sm:$0xff]
        %v318 = vld [vmem:[%s1 + $0x18] sm:$0xff]
        %v319 = vld [vmem:[%s1 + $0x20] sm:$0xff]
        %v320 = vld [vmem:[%s1 + $0x28] sm:$0xff]
        %v321 = vld [vmem:[%s1 + $0x30] sm:$0xff]
        %v322 = vld [vmem:[%s1 + $0x38] sm:$0xff]
        %v323 = vld [vmem:[%s1 + $0x40] sm:$0xff]
        %v324 = vld [vmem:[%s1 + $0x48] sm:$0xff]
        %v325 = vld [vmem:[%s314] sm:$0xff]
        %v326 = vld [vmem:[%s314 + $0x8] sm:$0xff]
        %v327 = vld [vmem:[%s314 + $0x1] sm:$0xff]
        %v328 = vld [vmem:[%s314 + $0x9] sm:$0xff]
        %vm329 = vcmask 130048
        %v331 = vsel %vm329, %v327, 0
        %v334 = vsel %vm329, %v328, 0
        %336 = vmatprep.subr.mxu0 0.0
        %337 = vmatpush1.msra.mxu0 %v317
        %338 = vmatprep.subr.mxu0 0.0
        %339 = vmatpush1.msra.mxu0 %v318
        %340 = vmatprep.subr.mxu0 0.0
        %341 = vmatpush1.msra.mxu0 0.0
        %342 = vmatprep.subr.mxu0 0.0
        %343 = vmatpush1.msra.mxu0 0.0
        %344 = vmatprep.subr.mxu0 0.0
        %345 = vmatpush1.msra.mxu0 0.0
        %346 = vmatprep.subr.mxu0 0.0
        %347 = vmatpush1.msra.mxu0 0.0
        %348 = vmatprep.subr.mxu0 0.0
        %349 = vmatpush1.msra.mxu0 0.0
        %350 = vmatprep.subr.mxu0 0.0
        %351 = vmatpush1.msra.mxu0 0.0
        %352 = vmatprep.subr.mxu0 0.0
        %353 = vmatpush1.msra.mxu0 0.0
        %354 = vmatprep.subr.mxu0 0.0
        %355 = vmatpush1.msra.mxu0 0.0
        %356 = vmatprep.subr.mxu0 0.0
        %357 = vmatpush1.msra.mxu0 0.0
        %358 = vmatprep.subr.mxu0 0.0
        %359 = vmatpush1.msra.mxu0 0.0
        %360 = vmatprep.subr.mxu0 0.0
        %361 = vmatpush1.msra.mxu0 0.0
        %362 = vmatprep.subr.mxu0 0.0
        %363 = vmatpush1.msra.mxu0 0.0
        %364 = vmatprep.subr.mxu0 0.0
        %365 = vmatpush1.msra.mxu0 0.0
        %366 = vmatprep.subr.mxu0 0.0
        %367 = vmatpush1.msra.mxu0 0.0
        %368 = vmatprep.subr.mxu0 0.0
        %369 = vmatpush1.msra.mxu0 0.0
        %370 = vmatprep.subr.mxu0 0.0
        %371 = vmatpush1.msra.mxu0 0.0
        %372 = vmatprep.subr.mxu0 0.0
        %373 = vmatpush1.msra.mxu0 0.0
        %374 = vmatprep.subr.mxu0 0.0
        %375 = vmatpush1.msra.mxu0 0.0
        %376 = vmatprep.subr.mxu0 0.0
        %377 = vmatpush1.msra.mxu0 0.0
        %378 = vmatprep.subr.mxu0 0.0
        %379 = vmatpush1.msra.mxu0 0.0
        %380 = vmatprep.subr.mxu0 0.0
        %381 = vmatpush1.msra.mxu0 0.0
        %382 = vmatprep.subr.mxu0 0.0
        %383 = vmatpush1.msra.mxu0 0.0
        %384 = vmatprep.subr.mxu0 0.0
        %385 = vmatpush1.msra.mxu0 0.0
        %386 = vmatprep.subr.mxu0 0.0
        %387 = vmatpush1.msra.mxu0 0.0
        %388 = vmatprep.subr.mxu0 0.0
        %389 = vmatpush1.msra.mxu0 0.0
        %390 = vmatprep.subr.mxu0 0.0
        %391 = vmatpush1.msra.mxu0 0.0
        %392 = vmatprep.subr.mxu0 0.0
        %393 = vmatpush1.msra.mxu0 0.0
        %394 = vmatprep.subr.mxu0 0.0
        %395 = vmatpush1.msra.mxu0 0.0
        %396 = vmatprep.subr.mxu0 0.0
        %397 = vmatpush1.msra.mxu0 0.0
        %398 = vmatprep.subr.mxu0 0.0
        %399 = vmatpush1.msra.mxu0 0.0
        %400 = vmatprep.mubr.f32.mxu0 0.0
        %401 = vmatmul.mubr.f32.gmra.mrb[0].mxu0 %v331
        %v402 = vpop.f32.mrb[0].mxu0
        %v403 = vadd.f32 0.0, %v402
        %v404 = vpop.f32.mrb[0].mxu0
        %405 = vmatprep.mubr.f32.mxu0 0.0
        %406 = vmatmul.mubr.f32.gmra.mrb[0].mxu0 %v334
        %v407 = vpop.f32.mrb[0].mxu0
        %v408 = vadd.f32 0.0, %v407
        %v409 = vpop.f32.mrb[0].mxu0
        %410 = vdwg.mxu0
        %v412 = vsel %vm329, %v325, 0
        %v415 = vsel %vm329, %v326, 0
        %417 = vmatprep.subr.mxu0 0.0
        %418 = vmatpush1.msra.mxu0 %v315
        %419 = vmatprep.subr.mxu0 0.0
        %420 = vmatpush1.msra.mxu0 %v316
        %421 = vmatprep.subr.mxu0 0.0
        %422 = vmatpush1.msra.mxu0 0.0
        %423 = vmatprep.subr.mxu0 0.0
        %424 = vmatpush1.msra.mxu0 0.0
        %425 = vmatprep.subr.mxu0 0.0
        %426 = vmatpush1.msra.mxu0 0.0
        %427 = vmatprep.subr.mxu0 0.0
        %428 = vmatpush1.msra.mxu0 0.0
        %429 = vmatprep.subr.mxu0 0.0
        %430 = vmatpush1.msra.mxu0 0.0
        %431 = vmatprep.subr.mxu0 0.0
        %432 = vmatpush1.msra.mxu0 0.0
        %433 = vmatprep.subr.mxu0 0.0
        %434 = vmatpush1.msra.mxu0 0.0
        %435 = vmatprep.subr.mxu0 0.0
        %436 = vmatpush1.msra.mxu0 0.0
        %437 = vmatprep.subr.mxu0 0.0
        %438 = vmatpush1.msra.mxu0 0.0
        %439 = vmatprep.subr.mxu0 0.0
        %440 = vmatpush1.msra.mxu0 0.0
        %441 = vmatprep.subr.mxu0 0.0
        %442 = vmatpush1.msra.mxu0 0.0
        %443 = vmatprep.subr.mxu0 0.0
        %444 = vmatpush1.msra.mxu0 0.0
        %445 = vmatprep.subr.mxu0 0.0
        %446 = vmatpush1.msra.mxu0 0.0
        %447 = vmatprep.subr.mxu0 0.0
        %448 = vmatpush1.msra.mxu0 0.0
        %449 = vmatprep.subr.mxu0 0.0
        %450 = vmatpush1.msra.mxu0 0.0
        %451 = vmatprep.subr.mxu0 0.0
        %452 = vmatpush1.msra.mxu0 0.0
        %453 = vmatprep.subr.mxu0 0.0
        %454 = vmatpush1.msra.mxu0 0.0
        %455 = vmatprep.subr.mxu0 0.0
        %456 = vmatpush1.msra.mxu0 0.0
        %457 = vmatprep.subr.mxu0 0.0
        %458 = vmatpush1.msra.mxu0 0.0
        %459 = vmatprep.subr.mxu0 0.0
        %460 = vmatpush1.msra.mxu0 0.0
        %461 = vmatprep.subr.mxu0 0.0
        %462 = vmatpush1.msra.mxu0 0.0
        %463 = vmatprep.subr.mxu0 0.0
        %464 = vmatpush1.msra.mxu0 0.0
        %465 = vmatprep.subr.mxu0 0.0
        %466 = vmatpush1.msra.mxu0 0.0
        %467 = vmatprep.subr.mxu0 0.0
        %468 = vmatpush1.msra.mxu0 0.0
        %469 = vmatprep.subr.mxu0 0.0
        %470 = vmatpush1.msra.mxu0 0.0
        %471 = vmatprep.subr.mxu0 0.0
        %472 = vmatpush1.msra.mxu0 0.0
        %473 = vmatprep.subr.mxu0 0.0
        %474 = vmatpush1.msra.mxu0 0.0
        %475 = vmatprep.subr.mxu0 0.0
        %476 = vmatpush1.msra.mxu0 0.0
        %477 = vmatprep.subr.mxu0 0.0
        %478 = vmatpush1.msra.mxu0 0.0
        %479 = vmatprep.subr.mxu0 0.0
        %480 = vmatpush1.msra.mxu0 0.0
        %481 = vmatprep.mubr.f32.mxu0 0.0
        %482 = vmatmul.mubr.f32.gmra.mrb[0].mxu0 %v412
        %v483 = vpop.f32.mrb[0].mxu0
        %v484 = vadd.f32 %v403, %v483
        %v485 = vpop.f32.mrb[0].mxu0
        %486 = vmatprep.mubr.f32.mxu0 0.0
        %487 = vmatmul.mubr.f32.gmra.mrb[0].mxu0 %v415
        %v488 = vpop.f32.mrb[0].mxu0
        %v489 = vadd.f32 %v408, %v488
        %v490 = vpop.f32.mrb[0].mxu0
        %491 = vdwg.mxu0
        %v492 = vld [vmem:[%s314 + $0x2] sm:$0xff]
        %v493 = vld [vmem:[%s314 + $0xa] sm:$0xff]
        %v495 = vsel %vm329, %v492, 0
        %v498 = vsel %vm329, %v493, 0
        %500 = vmatprep.subr.mxu0 0.0
        %501 = vmatpush1.msra.mxu0 %v319
        %502 = vmatprep.subr.mxu0 0.0
        %503 = vmatpush1.msra.mxu0 %v320
        %504 = vmatprep.subr.mxu0 0.0
        %505 = vmatpush1.msra.mxu0 0.0
        %506 = vmatprep.subr.mxu0 0.0
        %507 = vmatpush1.msra.mxu0 0.0
        %508 = vmatprep.subr.mxu0 0.0
        %509 = vmatpush1.msra.mxu0 0.0
        %510 = vmatprep.subr.mxu0 0.0
        %511 = vmatpush1.msra.mxu0 0.0
        %512 = vmatprep.subr.mxu0 0.0
        %513 = vmatpush1.msra.mxu0 0.0
        %514 = vmatprep.subr.mxu0 0.0
        %515 = vmatpush1.msra.mxu0 0.0
        %516 = vmatprep.subr.mxu0 0.0
        %517 = vmatpush1.msra.mxu0 0.0
        %518 = vmatprep.subr.mxu0 0.0
        %519 = vmatpush1.msra.mxu0 0.0
        %520 = vmatprep.subr.mxu0 0.0
        %521 = vmatpush1.msra.mxu0 0.0
        %522 = vmatprep.subr.mxu0 0.0
        %523 = vmatpush1.msra.mxu0 0.0
        %524 = vmatprep.subr.mxu0 0.0
        %525 = vmatpush1.msra.mxu0 0.0
        %526 = vmatprep.subr.mxu0 0.0
        %527 = vmatpush1.msra.mxu0 0.0
        %528 = vmatprep.subr.mxu0 0.0
        %529 = vmatpush1.msra.mxu0 0.0
        %530 = vmatprep.subr.mxu0 0.0
        %531 = vmatpush1.msra.mxu0 0.0
        %532 = vmatprep.subr.mxu0 0.0
        %533 = vmatpush1.msra.mxu0 0.0
        %534 = vmatprep.subr.mxu0 0.0
        %535 = vmatpush1.msra.mxu0 0.0
        %536 = vmatprep.subr.mxu0 0.0
        %537 = vmatpush1.msra.mxu0 0.0
        %538 = vmatprep.subr.mxu0 0.0
        %539 = vmatpush1.msra.mxu0 0.0
        %540 = vmatprep.subr.mxu0 0.0
        %541 = vmatpush1.msra.mxu0 0.0
        %542 = vmatprep.subr.mxu0 0.0
        %543 = vmatpush1.msra.mxu0 0.0
        %544 = vmatprep.subr.mxu0 0.0
        %545 = vmatpush1.msra.mxu0 0.0
        %546 = vmatprep.subr.mxu0 0.0
        %547 = vmatpush1.msra.mxu0 0.0
        %548 = vmatprep.subr.mxu0 0.0
        %549 = vmatpush1.msra.mxu0 0.0
        %550 = vmatprep.subr.mxu0 0.0
        %551 = vmatpush1.msra.mxu0 0.0
        %552 = vmatprep.subr.mxu0 0.0
        %553 = vmatpush1.msra.mxu0 0.0
        %554 = vmatprep.subr.mxu0 0.0
        %555 = vmatpush1.msra.mxu0 0.0
        %556 = vmatprep.subr.mxu0 0.0
        %557 = vmatpush1.msra.mxu0 0.0
        %558 = vmatprep.subr.mxu0 0.0
        %559 = vmatpush1.msra.mxu0 0.0
        %560 = vmatprep.subr.mxu0 0.0
        %561 = vmatpush1.msra.mxu0 0.0
        %562 = vmatprep.subr.mxu0 0.0
        %563 = vmatpush1.msra.mxu0 0.0
        %564 = vmatprep.mubr.f32.mxu0 0.0
        %565 = vmatmul.mubr.f32.gmra.mrb[0].mxu0 %v495
        %v566 = vpop.f32.mrb[0].mxu0
        %v567 = vadd.f32 0.0, %v566
        %v568 = vpop.f32.mrb[0].mxu0
        %569 = vmatprep.mubr.f32.mxu0 0.0
        %570 = vmatmul.mubr.f32.gmra.mrb[0].mxu0 %v498
        %v571 = vpop.f32.mrb[0].mxu0
        %v572 = vadd.f32 0.0, %v571
        %v573 = vpop.f32.mrb[0].mxu0
        %574 = vdwg.mxu0
        %v575 = vadd.f32 %v484, %v567
        %v576 = vadd.f32 %v489, %v572
        %v577 = vld [vmem:[%s314 + $0x3] sm:$0xff]
        %v578 = vld [vmem:[%s314 + $0xb] sm:$0xff]
        %v580 = vsel %vm329, %v577, 0
        %v583 = vsel %vm329, %v578, 0
        %585 = vmatprep.subr.mxu0 0.0
        %586 = vmatpush1.msra.mxu0 %v321
        %587 = vmatprep.subr.mxu0 0.0
        %588 = vmatpush1.msra.mxu0 %v322
        %589 = vmatprep.subr.mxu0 0.0
        %590 = vmatpush1.msra.mxu0 0.0
        %591 = vmatprep.subr.mxu0 0.0
        %592 = vmatpush1.msra.mxu0 0.0
        %593 = vmatprep.subr.mxu0 0.0
        %594 = vmatpush1.msra.mxu0 0.0
        %595 = vmatprep.subr.mxu0 0.0
        %596 = vmatpush1.msra.mxu0 0.0
        %597 = vmatprep.subr.mxu0 0.0
        %598 = vmatpush1.msra.mxu0 0.0
        %599 = vmatprep.subr.mxu0 0.0
        %600 = vmatpush1.msra.mxu0 0.0
        %601 = vmatprep.subr.mxu0 0.0
        %602 = vmatpush1.msra.mxu0 0.0
        %603 = vmatprep.subr.mxu0 0.0
        %604 = vmatpush1.msra.mxu0 0.0
        %605 = vmatprep.subr.mxu0 0.0
        %606 = vmatpush1.msra.mxu0 0.0
        %607 = vmatprep.subr.mxu0 0.0
        %608 = vmatpush1.msra.mxu0 0.0
        %609 = vmatprep.subr.mxu0 0.0
        %610 = vmatpush1.msra.mxu0 0.0
        %611 = vmatprep.subr.mxu0 0.0
        %612 = vmatpush1.msra.mxu0 0.0
        %613 = vmatprep.subr.mxu0 0.0
        %614 = vmatpush1.msra.mxu0 0.0
        %615 = vmatprep.subr.mxu0 0.0
        %616 = vmatpush1.msra.mxu0 0.0
        %617 = vmatprep.subr.mxu0 0.0
        %618 = vmatpush1.msra.mxu0 0.0
        %619 = vmatprep.subr.mxu0 0.0
        %620 = vmatpush1.msra.mxu0 0.0
        %621 = vmatprep.subr.mxu0 0.0
        %622 = vmatpush1.msra.mxu0 0.0
        %623 = vmatprep.subr.mxu0 0.0
        %624 = vmatpush1.msra.mxu0 0.0
        %625 = vmatprep.subr.mxu0 0.0
        %626 = vmatpush1.msra.mxu0 0.0
        %627 = vmatprep.subr.mxu0 0.0
        %628 = vmatpush1.msra.mxu0 0.0
        %629 = vmatprep.subr.mxu0 0.0
        %630 = vmatpush1.msra.mxu0 0.0
        %631 = vmatprep.subr.mxu0 0.0
        %632 = vmatpush1.msra.mxu0 0.0
        %633 = vmatprep.subr.mxu0 0.0
        %634 = vmatpush1.msra.mxu0 0.0
        %635 = vmatprep.subr.mxu0 0.0
        %636 = vmatpush1.msra.mxu0 0.0
        %637 = vmatprep.subr.mxu0 0.0
        %638 = vmatpush1.msra.mxu0 0.0
        %639 = vmatprep.subr.mxu0 0.0
        %640 = vmatpush1.msra.mxu0 0.0
        %641 = vmatprep.subr.mxu0 0.0
        %642 = vmatpush1.msra.mxu0 0.0
        %643 = vmatprep.subr.mxu0 0.0
        %644 = vmatpush1.msra.mxu0 0.0
        %645 = vmatprep.subr.mxu0 0.0
        %646 = vmatpush1.msra.mxu0 0.0
        %647 = vmatprep.subr.mxu0 0.0
        %648 = vmatpush1.msra.mxu0 0.0
        %649 = vmatprep.mubr.f32.mxu0 0.0
        %650 = vmatmul.mubr.f32.gmra.mrb[0].mxu0 %v580
        %v651 = vpop.f32.mrb[0].mxu0
        %v652 = vadd.f32 0.0, %v651
        %v653 = vpop.f32.mrb[0].mxu0
        %654 = vmatprep.mubr.f32.mxu0 0.0
        %655 = vmatmul.mubr.f32.gmra.mrb[0].mxu0 %v583
        %v656 = vpop.f32.mrb[0].mxu0
        %v657 = vadd.f32 0.0, %v656
        %v658 = vpop.f32.mrb[0].mxu0
        %659 = vdwg.mxu0
        %v660 = vadd.f32 %v575, %v652
        %v661 = vadd.f32 %v576, %v657
        %v662 = vld [vmem:[%s314 + $0x4] sm:$0xff]
        %v663 = vld [vmem:[%s314 + $0xc] sm:$0xff]
        %v665 = vsel %vm329, %v662, 0
        %v668 = vsel %vm329, %v663, 0
        %670 = vmatprep.subr.mxu0 0.0
        %671 = vmatpush1.msra.mxu0 %v323
        %672 = vmatprep.subr.mxu0 0.0
        %673 = vmatpush1.msra.mxu0 %v324
        %674 = vmatprep.subr.mxu0 0.0
        %675 = vmatpush1.msra.mxu0 0.0
        %676 = vmatprep.subr.mxu0 0.0
        %677 = vmatpush1.msra.mxu0 0.0
        %678 = vmatprep.subr.mxu0 0.0
        %679 = vmatpush1.msra.mxu0 0.0
        %680 = vmatprep.subr.mxu0 0.0
        %681 = vmatpush1.msra.mxu0 0.0
        %682 = vmatprep.subr.mxu0 0.0
        %683 = vmatpush1.msra.mxu0 0.0
        %684 = vmatprep.subr.mxu0 0.0
        %685 = vmatpush1.msra.mxu0 0.0
        %686 = vmatprep.subr.mxu0 0.0
        %687 = vmatpush1.msra.mxu0 0.0
        %688 = vmatprep.subr.mxu0 0.0
        %689 = vmatpush1.msra.mxu0 0.0
        %690 = vmatprep.subr.mxu0 0.0
        %691 = vmatpush1.msra.mxu0 0.0
        %692 = vmatprep.subr.mxu0 0.0
        %693 = vmatpush1.msra.mxu0 0.0
        %694 = vmatprep.subr.mxu0 0.0
        %695 = vmatpush1.msra.mxu0 0.0
        %696 = vmatprep.subr.mxu0 0.0
        %697 = vmatpush1.msra.mxu0 0.0
        %698 = vmatprep.subr.mxu0 0.0
        %699 = vmatpush1.msra.mxu0 0.0
        %700 = vmatprep.subr.mxu0 0.0
        %701 = vmatpush1.msra.mxu0 0.0
        %702 = vmatprep.subr.mxu0 0.0
        %703 = vmatpush1.msra.mxu0 0.0
        %704 = vmatprep.subr.mxu0 0.0
        %705 = vmatpush1.msra.mxu0 0.0
        %706 = vmatprep.subr.mxu0 0.0
        %707 = vmatpush1.msra.mxu0 0.0
        %708 = vmatprep.subr.mxu0 0.0
        %709 = vmatpush1.msra.mxu0 0.0
        %710 = vmatprep.subr.mxu0 0.0
        %711 = vmatpush1.msra.mxu0 0.0
        %712 = vmatprep.subr.mxu0 0.0
        %713 = vmatpush1.msra.mxu0 0.0
        %714 = vmatprep.subr.mxu0 0.0
        %715 = vmatpush1.msra.mxu0 0.0
        %716 = vmatprep.subr.mxu0 0.0
        %717 = vmatpush1.msra.mxu0 0.0
        %718 = vmatprep.subr.mxu0 0.0
        %719 = vmatpush1.msra.mxu0 0.0
        %720 = vmatprep.subr.mxu0 0.0
        %721 = vmatpush1.msra.mxu0 0.0
        %722 = vmatprep.subr.mxu0 0.0
        %723 = vmatpush1.msra.mxu0 0.0
        %724 = vmatprep.subr.mxu0 0.0
        %725 = vmatpush1.msra.mxu0 0.0
        %726 = vmatprep.subr.mxu0 0.0
        %727 = vmatpush1.msra.mxu0 0.0
        %728 = vmatprep.subr.mxu0 0.0
        %729 = vmatpush1.msra.mxu0 0.0
        %730 = vmatprep.subr.mxu0 0.0
        %731 = vmatpush1.msra.mxu0 0.0
        %732 = vmatprep.subr.mxu0 0.0
        %733 = vmatpush1.msra.mxu0 0.0
        %734 = vmatprep.mubr.f32.mxu0 0.0
        %735 = vmatmul.mubr.f32.gmra.mrb[0].mxu0 %v665
        %v736 = vpop.f32.mrb[0].mxu0
        %v737 = vadd.f32 0.0, %v736
        %v738 = vpop.f32.mrb[0].mxu0
        %739 = vmatprep.mubr.f32.mxu0 0.0
        %740 = vmatmul.mubr.f32.gmra.mrb[0].mxu0 %v668
        %v741 = vpop.f32.mrb[0].mxu0
        %v742 = vadd.f32 0.0, %v741
        %v743 = vpop.f32.mrb[0].mxu0
        %744 = vdwg.mxu0
        %v745 = vadd.f32 %v660, %v737
        %v746 = vadd.f32 %v661, %v742
        %v747 = vld [vmem:[%s2] sm:$0x1]
        %v749 = vlaneseq
        %v750 = vshrl.u32 %v749, 7
        %v751 = vsub.s32 0, %v750
        %v752 = vrot.slane %v747, %v751
        %v754 = vadd.f32 %v745, %v752
        %v755 = vadd.f32 %v746, %v752
        %vm756 = vcmp.ge.f32.partialorder %v754, 0.0
        %vm757 = vcmp.ge.f32.partialorder %v755, 0.0
        %v758 = vmul.f32 %v754, 0.1
        %v759 = vmul.f32 %v755, 0.1
        %v760 = vsel %vm756, %v754, %v758
        %v761 = vsel %vm757, %v755, %v759
        %vm762 = vcmask 523264
        %763 = vst.msk [vmem:[#allocation2] sm:$0xff] %vm762, 0.0
        %764 = vst.msk [vmem:[#allocation2 + $0x8] sm:$0xff] %vm762, 0.0
        %765 = vst.msk [vmem:[#allocation2 + $0x10] sm:$0xff] %vm762, 0.0
        %766 = vst.msk [vmem:[#allocation2 + $0x18] sm:$0xff] %vm762, 0.0
        %767 = vst.msk [vmem:[#allocation2 + $0x20] sm:$0xff] %vm762, 0.0
        %768 = vst.msk [vmem:[#allocation2 + $0x28] sm:$0xff] %vm762, 0.0
        %769 = vst.msk [vmem:[#allocation2 + $0x30] sm:$0xff] %vm762, 0.0
        %770 = vst.msk [vmem:[#allocation2 + $0x38] sm:$0xff] %vm762, 0.0
        %771 = vst.msk [vmem:[#allocation2 + $0x40] sm:$0xff] %vm762, 0.0
        %772 = vst.msk [vmem:[#allocation2 + $0x48] sm:$0xff] %vm762, 0.0
        %773 = vst.msk [vmem:[#allocation2 + $0x50] sm:$0xff] %vm762, 0.0
        %774 = vst.msk [vmem:[#allocation2 + $0x58] sm:$0xff] %vm762, 0.0
        %775 = vst.msk [vmem:[#allocation2 + $0x60] sm:$0xff] %vm762, 0.0
        %776 = vst.msk [vmem:[#allocation2 + $0x68] sm:$0xff] %vm762, 0.0
        %777 = vst.msk [vmem:[#allocation2 + $0x70] sm:$0xff] %vm762, 0.0
        %778 = vst.msk [vmem:[#allocation2 + $0x78] sm:$0xff] %vm762, 0.0
        %vm779 = vcmask 517120
        %780 = vst.msk [vmem:[#allocation2 + $0x80] sm:$0x3] %vm779, 0.0
        %781 = vst.msk [vmem:[#allocation2 + $0x1] sm:$0xff] %vm762, %v760
        %782 = vst.msk [vmem:[#allocation2 + $0x9] sm:$0xff] %vm762, %v761
        %v783 = vld [vmem:[%s3] sm:$0xff]
        %v784 = vld [vmem:[%s3 + $0x8] sm:$0xff]
        %v785 = vld [vmem:[%s3 + $0x10] sm:$0xff]
        %v786 = vld [vmem:[%s3 + $0x18] sm:$0xff]
        %v787 = vld [vmem:[%s3 + $0x20] sm:$0xff]
        %v788 = vld [vmem:[%s3 + $0x28] sm:$0xff]
        %v789 = vld [vmem:[%s3 + $0x30] sm:$0xff]
        %v790 = vld [vmem:[%s3 + $0x38] sm:$0xff]
        %v791 = vld [vmem:[%s3 + $0x40] sm:$0xff]
        %v792 = vld [vmem:[%s3 + $0x48] sm:$0xff]
        %v793 = vld [vmem:[%s3 + $0x50] sm:$0xff]
        %v794 = vld [vmem:[%s3 + $0x58] sm:$0xff]
        %v795 = vld [vmem:[%s3 + $0x60] sm:$0xff]
        %v796 = vld [vmem:[%s3 + $0x68] sm:$0xff]
        %v797 = vld [vmem:[%s3 + $0x70] sm:$0xff]
        %v798 = vld [vmem:[%s3 + $0x78] sm:$0xff]
        %v799 = vld [vmem:[%s3 + $0x80] sm:$0xff]
        %v800 = vld [vmem:[%s3 + $0x88] sm:$0xff]
        %v801 = vld [vmem:[%s3 + $0x90] sm:$0xff]
        %v802 = vld [vmem:[%s3 + $0x98] sm:$0xff]
        %v803 = vld [vmem:[%s3 + $0xa0] sm:$0xff]
        %v804 = vld [vmem:[%s3 + $0xa8] sm:$0xff]
        %v805 = vld [vmem:[%s3 + $0xb0] sm:$0xff]
        %v806 = vld [vmem:[%s3 + $0xb8] sm:$0xff]
        %v807 = vld [vmem:[#allocation2] sm:$0xff]
        %v808 = vld [vmem:[#allocation2 + $0x8] sm:$0xff]
        %v809 = vld [vmem:[#allocation2 + $0x1] sm:$0xff]
        %v810 = vld [vmem:[#allocation2 + $0x9] sm:$0xff]
        %v812 = vsel %vm762, %v809, 0
        %v815 = vsel %vm762, %v810, 0
        %817 = vmatprep.subr.mxu0 0.0
        %818 = vmatpush1.msra.mxu0 %v791
        %819 = vmatprep.subr.mxu0 0.0
        %820 = vmatpush1.msra.mxu0 %v792
        %821 = vmatprep.subr.mxu0 0.0
        %822 = vmatpush1.msra.mxu0 %v793
        %823 = vmatprep.subr.mxu0 0.0
        %824 = vmatpush1.msra.mxu0 %v794
        %825 = vmatprep.subr.mxu0 0.0
        %826 = vmatpush1.msra.mxu0 %v795
        %827 = vmatprep.subr.mxu0 0.0
        %828 = vmatpush1.msra.mxu0 %v796
        %829 = vmatprep.subr.mxu0 0.0
        %830 = vmatpush1.msra.mxu0 %v797
        %831 = vmatprep.subr.mxu0 0.0
        %832 = vmatpush1.msra.mxu0 %v798
        %833 = vmatprep.subr.mxu0 0.0
        %834 = vmatpush1.msra.mxu0 0.0
        %835 = vmatprep.subr.mxu0 0.0
        %836 = vmatpush1.msra.mxu0 0.0
        %837 = vmatprep.subr.mxu0 0.0
        %838 = vmatpush1.msra.mxu0 0.0
        %839 = vmatprep.subr.mxu0 0.0
        %840 = vmatpush1.msra.mxu0 0.0
        %841 = vmatprep.subr.mxu0 0.0
        %842 = vmatpush1.msra.mxu0 0.0
        %843 = vmatprep.subr.mxu0 0.0
        %844 = vmatpush1.msra.mxu0 0.0
        %845 = vmatprep.subr.mxu0 0.0
        %846 = vmatpush1.msra.mxu0 0.0
        %847 = vmatprep.subr.mxu0 0.0
        %848 = vmatpush1.msra.mxu0 0.0
        %849 = vmatprep.subr.mxu0 0.0
        %850 = vmatpush1.msra.mxu0 0.0
        %851 = vmatprep.subr.mxu0 0.0
        %852 = vmatpush1.msra.mxu0 0.0
        %853 = vmatprep.subr.mxu0 0.0
        %854 = vmatpush1.msra.mxu0 0.0
        %855 = vmatprep.subr.mxu0 0.0
        %856 = vmatpush1.msra.mxu0 0.0
        %857 = vmatprep.subr.mxu0 0.0
        %858 = vmatpush1.msra.mxu0 0.0
        %859 = vmatprep.subr.mxu0 0.0
        %860 = vmatpush1.msra.mxu0 0.0
        %861 = vmatprep.subr.mxu0 0.0
        %862 = vmatpush1.msra.mxu0 0.0
        %863 = vmatprep.subr.mxu0 0.0
        %864 = vmatpush1.msra.mxu0 0.0
        %865 = vmatprep.subr.mxu0 0.0
        %866 = vmatpush1.msra.mxu0 0.0
        %867 = vmatprep.subr.mxu0 0.0
        %868 = vmatpush1.msra.mxu0 0.0
        %869 = vmatprep.subr.mxu0 0.0
        %870 = vmatpush1.msra.mxu0 0.0
        %871 = vmatprep.subr.mxu0 0.0
        %872 = vmatpush1.msra.mxu0 0.0
        %873 = vmatprep.subr.mxu0 0.0
        %874 = vmatpush1.msra.mxu0 0.0
        %875 = vmatprep.subr.mxu0 0.0
        %876 = vmatpush1.msra.mxu0 0.0
        %877 = vmatprep.subr.mxu0 0.0
        %878 = vmatpush1.msra.mxu0 0.0
        %879 = vmatprep.subr.mxu0 0.0
        %880 = vmatpush1.msra.mxu0 0.0
        %881 = vmatprep.mubr.f32.mxu0 0.0
        %882 = vmatmul.mubr.f32.gmra.mrb[0].mxu0 %v812
        %v883 = vpop.f32.mrb[0].mxu0
        %v884 = vadd.f32 0.0, %v883
        %v885 = vpop.f32.mrb[0].mxu0
        %886 = vmatprep.mubr.f32.mxu0 0.0
        %887 = vmatmul.mubr.f32.gmra.mrb[0].mxu0 %v815
        %v888 = vpop.f32.mrb[0].mxu0
        %v889 = vadd.f32 0.0, %v888
        %v890 = vpop.f32.mrb[0].mxu0
        %891 = vdwg.mxu0
        %v893 = vsel %vm762, %v807, 0
        %v896 = vsel %vm762, %v808, 0
        %898 = vmatprep.subr.mxu0 0.0
        %899 = vmatpush1.msra.mxu0 %v783
        %900 = vmatprep.subr.mxu0 0.0
        %901 = vmatpush1.msra.mxu0 %v784
        %902 = vmatprep.subr.mxu0 0.0
        %903 = vmatpush1.msra.mxu0 %v785
        %904 = vmatprep.subr.mxu0 0.0
        %905 = vmatpush1.msra.mxu0 %v786
        %906 = vmatprep.subr.mxu0 0.0
        %907 = vmatpush1.msra.mxu0 %v787
        %908 = vmatprep.subr.mxu0 0.0
        %909 = vmatpush1.msra.mxu0 %v788
        %910 = vmatprep.subr.mxu0 0.0
        %911 = vmatpush1.msra.mxu0 %v789
        %912 = vmatprep.subr.mxu0 0.0
        %913 = vmatpush1.msra.mxu0 %v790
        %914 = vmatprep.subr.mxu0 0.0
        %915 = vmatpush1.msra.mxu0 0.0
        %916 = vmatprep.subr.mxu0 0.0
        %917 = vmatpush1.msra.mxu0 0.0
        %918 = vmatprep.subr.mxu0 0.0
        %919 = vmatpush1.msra.mxu0 0.0
        %920 = vmatprep.subr.mxu0 0.0
        %921 = vmatpush1.msra.mxu0 0.0
        %922 = vmatprep.subr.mxu0 0.0
        %923 = vmatpush1.msra.mxu0 0.0
        %924 = vmatprep.subr.mxu0 0.0
        %925 = vmatpush1.msra.mxu0 0.0
        %926 = vmatprep.subr.mxu0 0.0
        %927 = vmatpush1.msra.mxu0 0.0
        %928 = vmatprep.subr.mxu0 0.0
        %929 = vmatpush1.msra.mxu0 0.0
        %930 = vmatprep.subr.mxu0 0.0
        %931 = vmatpush1.msra.mxu0 0.0
        %932 = vmatprep.subr.mxu0 0.0
        %933 = vmatpush1.msra.mxu0 0.0
        %934 = vmatprep.subr.mxu0 0.0
        %935 = vmatpush1.msra.mxu0 0.0
        %936 = vmatprep.subr.mxu0 0.0
        %937 = vmatpush1.msra.mxu0 0.0
        %938 = vmatprep.subr.mxu0 0.0
        %939 = vmatpush1.msra.mxu0 0.0
        %940 = vmatprep.subr.mxu0 0.0
        %941 = vmatpush1.msra.mxu0 0.0
        %942 = vmatprep.subr.mxu0 0.0
        %943 = vmatpush1.msra.mxu0 0.0
        %944 = vmatprep.subr.mxu0 0.0
        %945 = vmatpush1.msra.mxu0 0.0
        %946 = vmatprep.subr.mxu0 0.0
        %947 = vmatpush1.msra.mxu0 0.0
        %948 = vmatprep.subr.mxu0 0.0
        %949 = vmatpush1.msra.mxu0 0.0
        %950 = vmatprep.subr.mxu0 0.0
        %951 = vmatpush1.msra.mxu0 0.0
        %952 = vmatprep.subr.mxu0 0.0
        %953 = vmatpush1.msra.mxu0 0.0
        %954 = vmatprep.subr.mxu0 0.0
        %955 = vmatpush1.msra.mxu0 0.0
        %956 = vmatprep.subr.mxu0 0.0
        %957 = vmatpush1.msra.mxu0 0.0
        %958 = vmatprep.subr.mxu0 0.0
        %959 = vmatpush1.msra.mxu0 0.0
        %960 = vmatprep.subr.mxu0 0.0
        %961 = vmatpush1.msra.mxu0 0.0
        %962 = vmatprep.mubr.f32.mxu0 0.0
        %963 = vmatmul.mubr.f32.gmra.mrb[0].mxu0 %v893
        %v964 = vpop.f32.mrb[0].mxu0
        %v965 = vadd.f32 %v884, %v964
        %v966 = vpop.f32.mrb[0].mxu0
        %967 = vmatprep.mubr.f32.mxu0 0.0
        %968 = vmatmul.mubr.f32.gmra.mrb[0].mxu0 %v896
        %v969 = vpop.f32.mrb[0].mxu0
        %v970 = vadd.f32 %v889, %v969
        %v971 = vpop.f32.mrb[0].mxu0
        %972 = vdwg.mxu0
        %v973 = vld [vmem:[#allocation2 + $0x2] sm:$0xff]
        %v974 = vld [vmem:[#allocation2 + $0xa] sm:$0xff]
        %v976 = vsel %vm762, %v973, 0
        %v979 = vsel %vm762, %v974, 0
        %981 = vmatprep.subr.mxu0 0.0
        %982 = vmatpush1.msra.mxu0 %v799
        %983 = vmatprep.subr.mxu0 0.0
        %984 = vmatpush1.msra.mxu0 %v800
        %985 = vmatprep.subr.mxu0 0.0
        %986 = vmatpush1.msra.mxu0 %v801
        %987 = vmatprep.subr.mxu0 0.0
        %988 = vmatpush1.msra.mxu0 %v802
        %989 = vmatprep.subr.mxu0 0.0
        %990 = vmatpush1.msra.mxu0 %v803
        %991 = vmatprep.subr.mxu0 0.0
        %992 = vmatpush1.msra.mxu0 %v804
        %993 = vmatprep.subr.mxu0 0.0
        %994 = vmatpush1.msra.mxu0 %v805
        %995 = vmatprep.subr.mxu0 0.0
        %996 = vmatpush1.msra.mxu0 %v806
        %997 = vmatprep.subr.mxu0 0.0
        %998 = vmatpush1.msra.mxu0 0.0
        %999 = vmatprep.subr.mxu0 0.0
        %1000 = vmatpush1.msra.mxu0 0.0
        %1001 = vmatprep.subr.mxu0 0.0
        %1002 = vmatpush1.msra.mxu0 0.0
        %1003 = vmatprep.subr.mxu0 0.0
        %1004 = vmatpush1.msra.mxu0 0.0
        %1005 = vmatprep.subr.mxu0 0.0
        %1006 = vmatpush1.msra.mxu0 0.0
        %1007 = vmatprep.subr.mxu0 0.0
        %1008 = vmatpush1.msra.mxu0 0.0
        %1009 = vmatprep.subr.mxu0 0.0
        %1010 = vmatpush1.msra.mxu0 0.0
        %1011 = vmatprep.subr.mxu0 0.0
        %1012 = vmatpush1.msra.mxu0 0.0
        %1013 = vmatprep.subr.mxu0 0.0
        %1014 = vmatpush1.msra.mxu0 0.0
        %1015 = vmatprep.subr.mxu0 0.0
        %1016 = vmatpush1.msra.mxu0 0.0
        %1017 = vmatprep.subr.mxu0 0.0
        %1018 = vmatpush1.msra.mxu0 0.0
        %1019 = vmatprep.subr.mxu0 0.0
        %1020 = vmatpush1.msra.mxu0 0.0
        %1021 = vmatprep.subr.mxu0 0.0
        %1022 = vmatpush1.msra.mxu0 0.0
        %1023 = vmatprep.subr.mxu0 0.0
        %1024 = vmatpush1.msra.mxu0 0.0
        %1025 = vmatprep.subr.mxu0 0.0
        %1026 = vmatpush1.msra.mxu0 0.0
        %1027 = vmatprep.subr.mxu0 0.0
        %1028 = vmatpush1.msra.mxu0 0.0
        %1029 = vmatprep.subr.mxu0 0.0
        %1030 = vmatpush1.msra.mxu0 0.0
        %1031 = vmatprep.subr.mxu0 0.0
        %1032 = vmatpush1.msra.mxu0 0.0
        %1033 = vmatprep.subr.mxu0 0.0
        %1034 = vmatpush1.msra.mxu0 0.0
        %1035 = vmatprep.subr.mxu0 0.0
        %1036 = vmatpush1.msra.mxu0 0.0
        %1037 = vmatprep.subr.mxu0 0.0
        %1038 = vmatpush1.msra.mxu0 0.0
        %1039 = vmatprep.subr.mxu0 0.0
        %1040 = vmatpush1.msra.mxu0 0.0
        %1041 = vmatprep.subr.mxu0 0.0
        %1042 = vmatpush1.msra.mxu0 0.0
        %1043 = vmatprep.subr.mxu0 0.0
        %1044 = vmatpush1.msra.mxu0 0.0
        %1045 = vmatprep.mubr.f32.mxu0 0.0
        %1046 = vmatmul.mubr.f32.gmra.mrb[0].mxu0 %v976
        %v1047 = vpop.f32.mrb[0].mxu0
        %v1048 = vadd.f32 0.0, %v1047
        %v1049 = vpop.f32.mrb[0].mxu0
        %1050 = vmatprep.mubr.f32.mxu0 0.0
        %1051 = vmatmul.mubr.f32.gmra.mrb[0].mxu0 %v979
        %v1052 = vpop.f32.mrb[0].mxu0
        %v1053 = vadd.f32 0.0, %v1052
        %v1054 = vpop.f32.mrb[0].mxu0
        %1055 = vdwg.mxu0
        %v1056 = vadd.f32 %v965, %v1048
        %v1057 = vadd.f32 %v970, %v1053
        %v1058 = vld [vmem:[%s4] sm:$0x1]
        %v1059 = vlaneseq
        %v1060 = vshrl.u32 %v1059, 7
        %v1061 = vsub.s32 0, %v1060
        %v1062 = vrot.slane %v1058, %v1061
        %v1063 = vadd.f32 %v1056, %v1062
        %v1064 = vadd.f32 %v1057, %v1062
        %vm1065 = vcmp.ge.f32.partialorder %v1063, 0.0
        %vm1066 = vcmp.ge.f32.partialorder %v1064, 0.0
        %v1067 = vmul.f32 %v1063, 0.1
        %v1068 = vmul.f32 %v1064, 0.1
        %v1069 = vsel %vm1065, %v1063, %v1067
        %v1070 = vsel %vm1066, %v1064, %v1068
        %1071 = vst.msk [vmem:[#allocation2 + $0x1] sm:$0xff] %vm762, %v1069
        %1072 = vst.msk [vmem:[#allocation2 + $0x9] sm:$0xff] %vm762, %v1070
        %s1073 = scalar_lea.vmem %s3, 192
        %v1074 = vld [vmem:[%s1073] sm:$0xff]
        %v1075 = vld [vmem:[%s1073 + $0x8] sm:$0xff]
        %v1076 = vld [vmem:[%s1073 + $0x10] sm:$0xff]
        %v1077 = vld [vmem:[%s1073 + $0x18] sm:$0xff]
        %v1078 = vld [vmem:[%s1073 + $0x20] sm:$0xff]
        %v1079 = vld [vmem:[%s1073 + $0x28] sm:$0xff]
        %v1080 = vld [vmem:[%s1073 + $0x30] sm:$0xff]
        %v1081 = vld [vmem:[%s1073 + $0x38] sm:$0xff]
        %v1082 = vld [vmem:[%s1073 + $0x40] sm:$0xff]
        %v1083 = vld [vmem:[%s1073 + $0x48] sm:$0xff]
        %v1084 = vld [vmem:[%s1073 + $0x50] sm:$0xff]
        %v1085 = vld [vmem:[%s1073 + $0x58] sm:$0xff]
        %v1086 = vld [vmem:[%s1073 + $0x60] sm:$0xff]
        %v1087 = vld [vmem:[%s1073 + $0x68] sm:$0xff]
        %v1088 = vld [vmem:[%s1073 + $0x70] sm:$0xff]
        %v1089 = vld [vmem:[%s1073 + $0x78] sm:$0xff]
        %v1090 = vld [vmem:[%s1073 + $0x80] sm:$0xff]
        %v1091 = vld [vmem:[%s1073 + $0x88] sm:$0xff]
        %v1092 = vld [vmem:[%s1073 + $0x90] sm:$0xff]
        %v1093 = vld [vmem:[%s1073 + $0x98] sm:$0xff]
        %v1094 = vld [vmem:[%s1073 + $0xa0] sm:$0xff]
        %v1095 = vld [vmem:[%s1073 + $0xa8] sm:$0xff]
        %v1096 = vld [vmem:[%s1073 + $0xb0] sm:$0xff]
        %v1097 = vld [vmem:[%s1073 + $0xb8] sm:$0xff]
        %v1098 = vld [vmem:[#allocation2] sm:$0xff]
        %v1099 = vld [vmem:[#allocation2 + $0x8] sm:$0xff]
        %v1100 = vld [vmem:[#allocation2 + $0x1] sm:$0xff]
        %v1101 = vld [vmem:[#allocation2 + $0x9] sm:$0xff]
        %v1103 = vsel %vm762, %v1100, 0
        %v1106 = vsel %vm762, %v1101, 0
        %1108 = vmatprep.subr.mxu0 0.0
        %1109 = vmatpush1.msra.mxu0 %v1082
        %1110 = vmatprep.subr.mxu0 0.0
        %1111 = vmatpush1.msra.mxu0 %v1083
        %1112 = vmatprep.subr.mxu0 0.0
        %1113 = vmatpush1.msra.mxu0 %v1084
        %1114 = vmatprep.subr.mxu0 0.0
        %1115 = vmatpush1.msra.mxu0 %v1085
        %1116 = vmatprep.subr.mxu0 0.0
        %1117 = vmatpush1.msra.mxu0 %v1086
        %1118 = vmatprep.subr.mxu0 0.0
        %1119 = vmatpush1.msra.mxu0 %v1087
        %1120 = vmatprep.subr.mxu0 0.0
        %1121 = vmatpush1.msra.mxu0 %v1088
        %1122 = vmatprep.subr.mxu0 0.0
        %1123 = vmatpush1.msra.mxu0 %v1089
        %1124 = vmatprep.subr.mxu0 0.0
        %1125 = vmatpush1.msra.mxu0 0.0
        %1126 = vmatprep.subr.mxu0 0.0
        %1127 = vmatpush1.msra.mxu0 0.0
        %1128 = vmatprep.subr.mxu0 0.0
        %1129 = vmatpush1.msra.mxu0 0.0
        %1130 = vmatprep.subr.mxu0 0.0
        %1131 = vmatpush1.msra.mxu0 0.0
        %1132 = vmatprep.subr.mxu0 0.0
        %1133 = vmatpush1.msra.mxu0 0.0
        %1134 = vmatprep.subr.mxu0 0.0
        %1135 = vmatpush1.msra.mxu0 0.0
        %1136 = vmatprep.subr.mxu0 0.0
        %1137 = vmatpush1.msra.mxu0 0.0
        %1138 = vmatprep.subr.mxu0 0.0
        %1139 = vmatpush1.msra.mxu0 0.0
        %1140 = vmatprep.subr.mxu0 0.0
        %1141 = vmatpush1.msra.mxu0 0.0
        %1142 = vmatprep.subr.mxu0 0.0
        %1143 = vmatpush1.msra.mxu0 0.0
        %1144 = vmatprep.subr.mxu0 0.0
        %1145 = vmatpush1.msra.mxu0 0.0
        %1146 = vmatprep.subr.mxu0 0.0
        %1147 = vmatpush1.msra.mxu0 0.0
        %1148 = vmatprep.subr.mxu0 0.0
        %1149 = vmatpush1.msra.mxu0 0.0
        %1150 = vmatprep.subr.mxu0 0.0
        %1151 = vmatpush1.msra.mxu0 0.0
        %1152 = vmatprep.subr.mxu0 0.0
        %1153 = vmatpush1.msra.mxu0 0.0
        %1154 = vmatprep.subr.mxu0 0.0
        %1155 = vmatpush1.msra.mxu0 0.0
        %1156 = vmatprep.subr.mxu0 0.0
        %1157 = vmatpush1.msra.mxu0 0.0
        %1158 = vmatprep.subr.mxu0 0.0
        %1159 = vmatpush1.msra.mxu0 0.0
        %1160 = vmatprep.subr.mxu0 0.0
        %1161 = vmatpush1.msra.mxu0 0.0
        %1162 = vmatprep.subr.mxu0 0.0
        %1163 = vmatpush1.msra.mxu0 0.0
        %1164 = vmatprep.subr.mxu0 0.0
        %1165 = vmatpush1.msra.mxu0 0.0
        %1166 = vmatprep.subr.mxu0 0.0
        %1167 = vmatpush1.msra.mxu0 0.0
        %1168 = vmatprep.subr.mxu0 0.0
        %1169 = vmatpush1.msra.mxu0 0.0
        %1170 = vmatprep.subr.mxu0 0.0
        %1171 = vmatpush1.msra.mxu0 0.0
        %1172 = vmatprep.mubr.f32.mxu0 0.0
        %1173 = vmatmul.mubr.f32.gmra.mrb[0].mxu0 %v1103
        %v1174 = vpop.f32.mrb[0].mxu0
        %v1175 = vadd.f32 0.0, %v1174
        %v1176 = vpop.f32.mrb[0].mxu0
        %1177 = vmatprep.mubr.f32.mxu0 0.0
        %1178 = vmatmul.mubr.f32.gmra.mrb[0].mxu0 %v1106
        %v1179 = vpop.f32.mrb[0].mxu0
        %v1180 = vadd.f32 0.0, %v1179
        %v1181 = vpop.f32.mrb[0].mxu0
        %1182 = vdwg.mxu0
        %v1184 = vsel %vm762, %v1098, 0
        %v1187 = vsel %vm762, %v1099, 0
        %1189 = vmatprep.subr.mxu0 0.0
        %1190 = vmatpush1.msra.mxu0 %v1074
        %1191 = vmatprep.subr.mxu0 0.0
        %1192 = vmatpush1.msra.mxu0 %v1075
        %1193 = vmatprep.subr.mxu0 0.0
        %1194 = vmatpush1.msra.mxu0 %v1076
        %1195 = vmatprep.subr.mxu0 0.0
        %1196 = vmatpush1.msra.mxu0 %v1077
        %1197 = vmatprep.subr.mxu0 0.0
        %1198 = vmatpush1.msra.mxu0 %v1078
        %1199 = vmatprep.subr.mxu0 0.0
        %1200 = vmatpush1.msra.mxu0 %v1079
        %1201 = vmatprep.subr.mxu0 0.0
        %1202 = vmatpush1.msra.mxu0 %v1080
        %1203 = vmatprep.subr.mxu0 0.0
        %1204 = vmatpush1.msra.mxu0 %v1081
        %1205 = vmatprep.subr.mxu0 0.0
        %1206 = vmatpush1.msra.mxu0 0.0
        %1207 = vmatprep.subr.mxu0 0.0
        %1208 = vmatpush1.msra.mxu0 0.0
        %1209 = vmatprep.subr.mxu0 0.0
        %1210 = vmatpush1.msra.mxu0 0.0
        %1211 = vmatprep.subr.mxu0 0.0
        %1212 = vmatpush1.msra.mxu0 0.0
        %1213 = vmatprep.subr.mxu0 0.0
        %1214 = vmatpush1.msra.mxu0 0.0
        %1215 = vmatprep.subr.mxu0 0.0
        %1216 = vmatpush1.msra.mxu0 0.0
        %1217 = vmatprep.subr.mxu0 0.0
        %1218 = vmatpush1.msra.mxu0 0.0
        %1219 = vmatprep.subr.mxu0 0.0
        %1220 = vmatpush1.msra.mxu0 0.0
        %1221 = vmatprep.subr.mxu0 0.0
        %1222 = vmatpush1.msra.mxu0 0.0
        %1223 = vmatprep.subr.mxu0 0.0
        %1224 = vmatpush1.msra.mxu0 0.0
        %1225 = vmatprep.subr.mxu0 0.0
        %1226 = vmatpush1.msra.mxu0 0.0
        %1227 = vmatprep.subr.mxu0 0.0
        %1228 = vmatpush1.msra.mxu0 0.0
        %1229 = vmatprep.subr.mxu0 0.0
        %1230 = vmatpush1.msra.mxu0 0.0
        %1231 = vmatprep.subr.mxu0 0.0
        %1232 = vmatpush1.msra.mxu0 0.0
        %1233 = vmatprep.subr.mxu0 0.0
        %1234 = vmatpush1.msra.mxu0 0.0
        %1235 = vmatprep.subr.mxu0 0.0
        %1236 = vmatpush1.msra.mxu0 0.0
        %1237 = vmatprep.subr.mxu0 0.0
        %1238 = vmatpush1.msra.mxu0 0.0
        %1239 = vmatprep.subr.mxu0 0.0
        %1240 = vmatpush1.msra.mxu0 0.0
        %1241 = vmatprep.subr.mxu0 0.0
        %1242 = vmatpush1.msra.mxu0 0.0
        %1243 = vmatprep.subr.mxu0 0.0
        %1244 = vmatpush1.msra.mxu0 0.0
        %1245 = vmatprep.subr.mxu0 0.0
        %1246 = vmatpush1.msra.mxu0 0.0
        %1247 = vmatprep.subr.mxu0 0.0
        %1248 = vmatpush1.msra.mxu0 0.0
        %1249 = vmatprep.subr.mxu0 0.0
        %1250 = vmatpush1.msra.mxu0 0.0
        %1251 = vmatprep.subr.mxu0 0.0
        %1252 = vmatpush1.msra.mxu0 0.0
        %1253 = vmatprep.mubr.f32.mxu0 0.0
        %1254 = vmatmul.mubr.f32.gmra.mrb[0].mxu0 %v1184
        %v1255 = vpop.f32.mrb[0].mxu0
        %v1256 = vadd.f32 %v1175, %v1255
        %v1257 = vpop.f32.mrb[0].mxu0
        %1258 = vmatprep.mubr.f32.mxu0 0.0
        %1259 = vmatmul.mubr.f32.gmra.mrb[0].mxu0 %v1187
        %v1260 = vpop.f32.mrb[0].mxu0
        %v1261 = vadd.f32 %v1180, %v1260
        %v1262 = vpop.f32.mrb[0].mxu0
        %1263 = vdwg.mxu0
        %v1264 = vld [vmem:[#allocation2 + $0x2] sm:$0xff]
        %v1265 = vld [vmem:[#allocation2 + $0xa] sm:$0xff]
        %v1267 = vsel %vm762, %v1264, 0
        %v1270 = vsel %vm762, %v1265, 0
        %1272 = vmatprep.subr.mxu0 0.0
        %1273 = vmatpush1.msra.mxu0 %v1090
        %1274 = vmatprep.subr.mxu0 0.0
        %1275 = vmatpush1.msra.mxu0 %v1091
        %1276 = vmatprep.subr.mxu0 0.0
        %1277 = vmatpush1.msra.mxu0 %v1092
        %1278 = vmatprep.subr.mxu0 0.0
        %1279 = vmatpush1.msra.mxu0 %v1093
        %1280 = vmatprep.subr.mxu0 0.0
        %1281 = vmatpush1.msra.mxu0 %v1094
        %1282 = vmatprep.subr.mxu0 0.0
        %1283 = vmatpush1.msra.mxu0 %v1095
        %1284 = vmatprep.subr.mxu0 0.0
        %1285 = vmatpush1.msra.mxu0 %v1096
        %1286 = vmatprep.subr.mxu0 0.0
        %1287 = vmatpush1.msra.mxu0 %v1097
        %1288 = vmatprep.subr.mxu0 0.0
        %1289 = vmatpush1.msra.mxu0 0.0
        %1290 = vmatprep.subr.mxu0 0.0
        %1291 = vmatpush1.msra.mxu0 0.0
        %1292 = vmatprep.subr.mxu0 0.0
        %1293 = vmatpush1.msra.mxu0 0.0
        %1294 = vmatprep.subr.mxu0 0.0
        %1295 = vmatpush1.msra.mxu0 0.0
        %1296 = vmatprep.subr.mxu0 0.0
        %1297 = vmatpush1.msra.mxu0 0.0
        %1298 = vmatprep.subr.mxu0 0.0
        %1299 = vmatpush1.msra.mxu0 0.0
        %1300 = vmatprep.subr.mxu0 0.0
        %1301 = vmatpush1.msra.mxu0 0.0
        %1302 = vmatprep.subr.mxu0 0.0
        %1303 = vmatpush1.msra.mxu0 0.0
        %1304 = vmatprep.subr.mxu0 0.0
        %1305 = vmatpush1.msra.mxu0 0.0
        %1306 = vmatprep.subr.mxu0 0.0
        %1307 = vmatpush1.msra.mxu0 0.0
        %1308 = vmatprep.subr.mxu0 0.0
        %1309 = vmatpush1.msra.mxu0 0.0
        %1310 = vmatprep.subr.mxu0 0.0
        %1311 = vmatpush1.msra.mxu0 0.0
        %1312 = vmatprep.subr.mxu0 0.0
        %1313 = vmatpush1.msra.mxu0 0.0
        %1314 = vmatprep.subr.mxu0 0.0
        %1315 = vmatpush1.msra.mxu0 0.0
        %1316 = vmatprep.subr.mxu0 0.0
        %1317 = vmatpush1.msra.mxu0 0.0
        %1318 = vmatprep.subr.mxu0 0.0
        %1319 = vmatpush1.msra.mxu0 0.0
        %1320 = vmatprep.subr.mxu0 0.0
        %1321 = vmatpush1.msra.mxu0 0.0
        %1322 = vmatprep.subr.mxu0 0.0
        %1323 = vmatpush1.msra.mxu0 0.0
        %1324 = vmatprep.subr.mxu0 0.0
        %1325 = vmatpush1.msra.mxu0 0.0
        %1326 = vmatprep.subr.mxu0 0.0
        %1327 = vmatpush1.msra.mxu0 0.0
        %1328 = vmatprep.subr.mxu0 0.0
        %1329 = vmatpush1.msra.mxu0 0.0
        %1330 = vmatprep.subr.mxu0 0.0
        %1331 = vmatpush1.msra.mxu0 0.0
        %1332 = vmatprep.subr.mxu0 0.0
        %1333 = vmatpush1.msra.mxu0 0.0
        %1334 = vmatprep.subr.mxu0 0.0
        %1335 = vmatpush1.msra.mxu0 0.0
        %1336 = vmatprep.mubr.f32.mxu0 0.0
        %1337 = vmatmul.mubr.f32.gmra.mrb[0].mxu0 %v1267
        %v1338 = vpop.f32.mrb[0].mxu0
        %v1339 = vadd.f32 0.0, %v1338
        %v1340 = vpop.f32.mrb[0].mxu0
        %1341 = vmatprep.mubr.f32.mxu0 0.0
        %1342 = vmatmul.mubr.f32.gmra.mrb[0].mxu0 %v1270
        %v1343 = vpop.f32.mrb[0].mxu0
        %v1344 = vadd.f32 0.0, %v1343
        %v1345 = vpop.f32.mrb[0].mxu0
        %1346 = vdwg.mxu0
        %v1347 = vadd.f32 %v1256, %v1339
        %v1348 = vadd.f32 %v1261, %v1344
        %v1349 = vld [vmem:[%s4 + $0x1] sm:$0x1]
        %v1350 = vlaneseq
        %v1351 = vshrl.u32 %v1350, 7
        %v1352 = vsub.s32 0, %v1351
        %v1353 = vrot.slane %v1349, %v1352
        %v1354 = vadd.f32 %v1347, %v1353
        %v1355 = vadd.f32 %v1348, %v1353
        %vm1356 = vcmp.ge.f32.partialorder %v1354, 0.0
        %vm1357 = vcmp.ge.f32.partialorder %v1355, 0.0
        %v1358 = vmul.f32 %v1354, 0.1
        %v1359 = vmul.f32 %v1355, 0.1
        %v1360 = vsel %vm1356, %v1354, %v1358
        %v1361 = vsel %vm1357, %v1355, %v1359
        %v1362 = vadd.f32 %v760, %v1360
        %v1363 = vadd.f32 %v761, %v1361
        %1364 = vst.msk [vmem:[#allocation2 + $0x1] sm:$0xff] %vm762, %v1362
        %1365 = vst.msk [vmem:[#allocation2 + $0x9] sm:$0xff] %vm762, %v1363
        %s1366 = scalar_lea.vmem %s3, 384
        %v1367 = vld [vmem:[%s1366] sm:$0xff]
        %v1368 = vld [vmem:[%s1366 + $0x8] sm:$0xff]
        %v1369 = vld [vmem:[%s1366 + $0x10] sm:$0xff]
        %v1370 = vld [vmem:[%s1366 + $0x18] sm:$0xff]
        %v1371 = vld [vmem:[%s1366 + $0x20] sm:$0xff]
        %v1372 = vld [vmem:[%s1366 + $0x28] sm:$0xff]
        %v1373 = vld [vmem:[%s1366 + $0x30] sm:$0xff]
        %v1374 = vld [vmem:[%s1366 + $0x38] sm:$0xff]
        %v1375 = vld [vmem:[%s1366 + $0x40] sm:$0xff]
        %v1376 = vld [vmem:[%s1366 + $0x48] sm:$0xff]
        %v1377 = vld [vmem:[%s1366 + $0x50] sm:$0xff]
        %v1378 = vld [vmem:[%s1366 + $0x58] sm:$0xff]
        %v1379 = vld [vmem:[%s1366 + $0x60] sm:$0xff]
        %v1380 = vld [vmem:[%s1366 + $0x68] sm:$0xff]
        %v1381 = vld [vmem:[%s1366 + $0x70] sm:$0xff]
        %v1382 = vld [vmem:[%s1366 + $0x78] sm:$0xff]
        %v1383 = vld [vmem:[%s1366 + $0x80] sm:$0xff]
        %v1384 = vld [vmem:[%s1366 + $0x88] sm:$0xff]
        %v1385 = vld [vmem:[%s1366 + $0x90] sm:$0xff]
        %v1386 = vld [vmem:[%s1366 + $0x98] sm:$0xff]
        %v1387 = vld [vmem:[%s1366 + $0xa0] sm:$0xff]
        %v1388 = vld [vmem:[%s1366 + $0xa8] sm:$0xff]
        %v1389 = vld [vmem:[%s1366 + $0xb0] sm:$0xff]
        %v1390 = vld [vmem:[%s1366 + $0xb8] sm:$0xff]
        %v1391 = vld [vmem:[#allocation2] sm:$0xff]
        %v1392 = vld [vmem:[#allocation2 + $0x8] sm:$0xff]
        %v1393 = vld [vmem:[#allocation2 + $0x1] sm:$0xff]
        %v1394 = vld [vmem:[#allocation2 + $0x9] sm:$0xff]
        %v1396 = vsel %vm762, %v1393, 0
        %v1399 = vsel %vm762, %v1394, 0
        %1401 = vmatprep.subr.mxu0 0.0
        %1402 = vmatpush1.msra.mxu0 %v1375
        %1403 = vmatprep.subr.mxu0 0.0
        %1404 = vmatpush1.msra.mxu0 %v1376
        %1405 = vmatprep.subr.mxu0 0.0
        %1406 = vmatpush1.msra.mxu0 %v1377
        %1407 = vmatprep.subr.mxu0 0.0
        %1408 = vmatpush1.msra.mxu0 %v1378
        %1409 = vmatprep.subr.mxu0 0.0
        %1410 = vmatpush1.msra.mxu0 %v1379
        %1411 = vmatprep.subr.mxu0 0.0
        %1412 = vmatpush1.msra.mxu0 %v1380
        %1413 = vmatprep.subr.mxu0 0.0
        %1414 = vmatpush1.msra.mxu0 %v1381
        %1415 = vmatprep.subr.mxu0 0.0
        %1416 = vmatpush1.msra.mxu0 %v1382
        %1417 = vmatprep.subr.mxu0 0.0
        %1418 = vmatpush1.msra.mxu0 0.0
        %1419 = vmatprep.subr.mxu0 0.0
        %1420 = vmatpush1.msra.mxu0 0.0
        %1421 = vmatprep.subr.mxu0 0.0
        %1422 = vmatpush1.msra.mxu0 0.0
        %1423 = vmatprep.subr.mxu0 0.0
        %1424 = vmatpush1.msra.mxu0 0.0
        %1425 = vmatprep.subr.mxu0 0.0
        %1426 = vmatpush1.msra.mxu0 0.0
        %1427 = vmatprep.subr.mxu0 0.0
        %1428 = vmatpush1.msra.mxu0 0.0
        %1429 = vmatprep.subr.mxu0 0.0
        %1430 = vmatpush1.msra.mxu0 0.0
        %1431 = vmatprep.subr.mxu0 0.0
        %1432 = vmatpush1.msra.mxu0 0.0
        %1433 = vmatprep.subr.mxu0 0.0
        %1434 = vmatpush1.msra.mxu0 0.0
        %1435 = vmatprep.subr.mxu0 0.0
        %1436 = vmatpush1.msra.mxu0 0.0
        %1437 = vmatprep.subr.mxu0 0.0
        %1438 = vmatpush1.msra.mxu0 0.0
        %1439 = vmatprep.subr.mxu0 0.0
        %1440 = vmatpush1.msra.mxu0 0.0
        %1441 = vmatprep.subr.mxu0 0.0
        %1442 = vmatpush1.msra.mxu0 0.0
        %1443 = vmatprep.subr.mxu0 0.0
        %1444 = vmatpush1.msra.mxu0 0.0
        %1445 = vmatprep.subr.mxu0 0.0
        %1446 = vmatpush1.msra.mxu0 0.0
        %1447 = vmatprep.subr.mxu0 0.0
        %1448 = vmatpush1.msra.mxu0 0.0
        %1449 = vmatprep.subr.mxu0 0.0
        %1450 = vmatpush1.msra.mxu0 0.0
        %1451 = vmatprep.subr.mxu0 0.0
        %1452 = vmatpush1.msra.mxu0 0.0
        %1453 = vmatprep.subr.mxu0 0.0
        %1454 = vmatpush1.msra.mxu0 0.0
        %1455 = vmatprep.subr.mxu0 0.0
        %1456 = vmatpush1.msra.mxu0 0.0
        %1457 = vmatprep.subr.mxu0 0.0
        %1458 = vmatpush1.msra.mxu0 0.0
        %1459 = vmatprep.subr.mxu0 0.0
        %1460 = vmatpush1.msra.mxu0 0.0
        %1461 = vmatprep.subr.mxu0 0.0
        %1462 = vmatpush1.msra.mxu0 0.0
        %1463 = vmatprep.subr.mxu0 0.0
        %1464 = vmatpush1.msra.mxu0 0.0
        %1465 = vmatprep.mubr.f32.mxu0 0.0
        %1466 = vmatmul.mubr.f32.gmra.mrb[0].mxu0 %v1396
        %v1467 = vpop.f32.mrb[0].mxu0
        %v1468 = vadd.f32 0.0, %v1467
        %v1469 = vpop.f32.mrb[0].mxu0
        %1470 = vmatprep.mubr.f32.mxu0 0.0
        %1471 = vmatmul.mubr.f32.gmra.mrb[0].mxu0 %v1399
        %v1472 = vpop.f32.mrb[0].mxu0
        %v1473 = vadd.f32 0.0, %v1472
        %v1474 = vpop.f32.mrb[0].mxu0
        %1475 = vdwg.mxu0
        %v1477 = vsel %vm762, %v1391, 0
        %v1480 = vsel %vm762, %v1392, 0
        %1482 = vmatprep.subr.mxu0 0.0
        %1483 = vmatpush1.msra.mxu0 %v1367
        %1484 = vmatprep.subr.mxu0 0.0
        %1485 = vmatpush1.msra.mxu0 %v1368
        %1486 = vmatprep.subr.mxu0 0.0
        %1487 = vmatpush1.msra.mxu0 %v1369
        %1488 = vmatprep.subr.mxu0 0.0
        %1489 = vmatpush1.msra.mxu0 %v1370
        %1490 = vmatprep.subr.mxu0 0.0
        %1491 = vmatpush1.msra.mxu0 %v1371
        %1492 = vmatprep.subr.mxu0 0.0
        %1493 = vmatpush1.msra.mxu0 %v1372
        %1494 = vmatprep.subr.mxu0 0.0
        %1495 = vmatpush1.msra.mxu0 %v1373
        %1496 = vmatprep.subr.mxu0 0.0
        %1497 = vmatpush1.msra.mxu0 %v1374
        %1498 = vmatprep.subr.mxu0 0.0
        %1499 = vmatpush1.msra.mxu0 0.0
        %1500 = vmatprep.subr.mxu0 0.0
        %1501 = vmatpush1.msra.mxu0 0.0
        %1502 = vmatprep.subr.mxu0 0.0
        %1503 = vmatpush1.msra.mxu0 0.0
        %1504 = vmatprep.subr.mxu0 0.0
        %1505 = vmatpush1.msra.mxu0 0.0
        %1506 = vmatprep.subr.mxu0 0.0
        %1507 = vmatpush1.msra.mxu0 0.0
        %1508 = vmatprep.subr.mxu0 0.0
        %1509 = vmatpush1.msra.mxu0 0.0
        %1510 = vmatprep.subr.mxu0 0.0
        %1511 = vmatpush1.msra.mxu0 0.0
        %1512 = vmatprep.subr.mxu0 0.0
        %1513 = vmatpush1.msra.mxu0 0.0
        %1514 = vmatprep.subr.mxu0 0.0
        %1515 = vmatpush1.msra.mxu0 0.0
        %1516 = vmatprep.subr.mxu0 0.0
        %1517 = vmatpush1.msra.mxu0 0.0
        %1518 = vmatprep.subr.mxu0 0.0
        %1519 = vmatpush1.msra.mxu0 0.0
        %1520 = vmatprep.subr.mxu0 0.0
        %1521 = vmatpush1.msra.mxu0 0.0
        %1522 = vmatprep.subr.mxu0 0.0
        %1523 = vmatpush1.msra.mxu0 0.0
        %1524 = vmatprep.subr.mxu0 0.0
        %1525 = vmatpush1.msra.mxu0 0.0
        %1526 = vmatprep.subr.mxu0 0.0
        %1527 = vmatpush1.msra.mxu0 0.0
        %1528 = vmatprep.subr.mxu0 0.0
        %1529 = vmatpush1.msra.mxu0 0.0
        %1530 = vmatprep.subr.mxu0 0.0
        %1531 = vmatpush1.msra.mxu0 0.0
        %1532 = vmatprep.subr.mxu0 0.0
        %1533 = vmatpush1.msra.mxu0 0.0
        %1534 = vmatprep.subr.mxu0 0.0
        %1535 = vmatpush1.msra.mxu0 0.0
        %1536 = vmatprep.subr.mxu0 0.0
        %1537 = vmatpush1.msra.mxu0 0.0
        %1538 = vmatprep.subr.mxu0 0.0
        %1539 = vmatpush1.msra.mxu0 0.0
        %1540 = vmatprep.subr.mxu0 0.0
        %1541 = vmatpush1.msra.mxu0 0.0
        %1542 = vmatprep.subr.mxu0 0.0
        %1543 = vmatpush1.msra.mxu0 0.0
        %1544 = vmatprep.subr.mxu0 0.0
        %1545 = vmatpush1.msra.mxu0 0.0
        %1546 = vmatprep.mubr.f32.mxu0 0.0
        %1547 = vmatmul.mubr.f32.gmra.mrb[0].mxu0 %v1477
        %v1548 = vpop.f32.mrb[0].mxu0
        %v1549 = vadd.f32 %v1468, %v1548
        %v1550 = vpop.f32.mrb[0].mxu0
        %1551 = vmatprep.mubr.f32.mxu0 0.0
        %1552 = vmatmul.mubr.f32.gmra.mrb[0].mxu0 %v1480
        %v1553 = vpop.f32.mrb[0].mxu0
        %v1554 = vadd.f32 %v1473, %v1553
        %v1555 = vpop.f32.mrb[0].mxu0
        %1556 = vdwg.mxu0
        %v1557 = vld [vmem:[#allocation2 + $0x2] sm:$0xff]
        %v1558 = vld [vmem:[#allocation2 + $0xa] sm:$0xff]
        %v1560 = vsel %vm762, %v1557, 0
        %v1563 = vsel %vm762, %v1558, 0
        %1565 = vmatprep.subr.mxu0 0.0
        %1566 = vmatpush1.msra.mxu0 %v1383
        %1567 = vmatprep.subr.mxu0 0.0
        %1568 = vmatpush1.msra.mxu0 %v1384
        %1569 = vmatprep.subr.mxu0 0.0
        %1570 = vmatpush1.msra.mxu0 %v1385
        %1571 = vmatprep.subr.mxu0 0.0
        %1572 = vmatpush1.msra.mxu0 %v1386
        %1573 = vmatprep.subr.mxu0 0.0
        %1574 = vmatpush1.msra.mxu0 %v1387
        %1575 = vmatprep.subr.mxu0 0.0
        %1576 = vmatpush1.msra.mxu0 %v1388
        %1577 = vmatprep.subr.mxu0 0.0
        %1578 = vmatpush1.msra.mxu0 %v1389
        %1579 = vmatprep.subr.mxu0 0.0
        %1580 = vmatpush1.msra.mxu0 %v1390
        %1581 = vmatprep.subr.mxu0 0.0
        %1582 = vmatpush1.msra.mxu0 0.0
        %1583 = vmatprep.subr.mxu0 0.0
        %1584 = vmatpush1.msra.mxu0 0.0
        %1585 = vmatprep.subr.mxu0 0.0
        %1586 = vmatpush1.msra.mxu0 0.0
        %1587 = vmatprep.subr.mxu0 0.0
        %1588 = vmatpush1.msra.mxu0 0.0
        %1589 = vmatprep.subr.mxu0 0.0
        %1590 = vmatpush1.msra.mxu0 0.0
        %1591 = vmatprep.subr.mxu0 0.0
        %1592 = vmatpush1.msra.mxu0 0.0
        %1593 = vmatprep.subr.mxu0 0.0
        %1594 = vmatpush1.msra.mxu0 0.0
        %1595 = vmatprep.subr.mxu0 0.0
        %1596 = vmatpush1.msra.mxu0 0.0
        %1597 = vmatprep.subr.mxu0 0.0
        %1598 = vmatpush1.msra.mxu0 0.0
        %1599 = vmatprep.subr.mxu0 0.0
        %1600 = vmatpush1.msra.mxu0 0.0
        %1601 = vmatprep.subr.mxu0 0.0
        %1602 = vmatpush1.msra.mxu0 0.0
        %1603 = vmatprep.subr.mxu0 0.0
        %1604 = vmatpush1.msra.mxu0 0.0
        %1605 = vmatprep.subr.mxu0 0.0
        %1606 = vmatpush1.msra.mxu0 0.0
        %1607 = vmatprep.subr.mxu0 0.0
        %1608 = vmatpush1.msra.mxu0 0.0
        %1609 = vmatprep.subr.mxu0 0.0
        %1610 = vmatpush1.msra.mxu0 0.0
        %1611 = vmatprep.subr.mxu0 0.0
        %1612 = vmatpush1.msra.mxu0 0.0
        %1613 = vmatprep.subr.mxu0 0.0
        %1614 = vmatpush1.msra.mxu0 0.0
        %1615 = vmatprep.subr.mxu0 0.0
        %1616 = vmatpush1.msra.mxu0 0.0
        %1617 = vmatprep.subr.mxu0 0.0
        %1618 = vmatpush1.msra.mxu0 0.0
        %1619 = vmatprep.subr.mxu0 0.0
        %1620 = vmatpush1.msra.mxu0 0.0
        %1621 = vmatprep.subr.mxu0 0.0
        %1622 = vmatpush1.msra.mxu0 0.0
        %1623 = vmatprep.subr.mxu0 0.0
        %1624 = vmatpush1.msra.mxu0 0.0
        %1625 = vmatprep.subr.mxu0 0.0
        %1626 = vmatpush1.msra.mxu0 0.0
        %1627 = vmatprep.subr.mxu0 0.0
        %1628 = vmatpush1.msra.mxu0 0.0
        %1629 = vmatprep.mubr.f32.mxu0 0.0
        %1630 = vmatmul.mubr.f32.gmra.mrb[0].mxu0 %v1560
        %v1631 = vpop.f32.mrb[0].mxu0
        %v1632 = vadd.f32 0.0, %v1631
        %v1633 = vpop.f32.mrb[0].mxu0
        %1634 = vmatprep.mubr.f32.mxu0 0.0
        %1635 = vmatmul.mubr.f32.gmra.mrb[0].mxu0 %v1563
        %v1636 = vpop.f32.mrb[0].mxu0
        %v1637 = vadd.f32 0.0, %v1636
        %v1638 = vpop.f32.mrb[0].mxu0
        %1639 = vdwg.mxu0
        %v1640 = vadd.f32 %v1549, %v1632
        %v1641 = vadd.f32 %v1554, %v1637
        %v1642 = vld [vmem:[%s4 + $0x2] sm:$0x1]
        %v1643 = vlaneseq
        %v1644 = vshrl.u32 %v1643, 7
        %v1645 = vsub.s32 0, %v1644
        %v1646 = vrot.slane %v1642, %v1645
        %v1647 = vadd.f32 %v1640, %v1646
        %v1648 = vadd.f32 %v1641, %v1646
        %vm1649 = vcmp.ge.f32.partialorder %v1647, 0.0
        %vm1650 = vcmp.ge.f32.partialorder %v1648, 0.0
        %v1651 = vmul.f32 %v1647, 0.1
        %v1652 = vmul.f32 %v1648, 0.1
        %v1653 = vsel %vm1649, %v1647, %v1651
        %v1654 = vsel %vm1650, %v1648, %v1652
        %1655 = vst.msk [vmem:[#allocation2 + $0x1] sm:$0xff] %vm762, %v1653
        %1656 = vst.msk [vmem:[#allocation2 + $0x9] sm:$0xff] %vm762, %v1654
        %s1657 = scalar_lea.vmem %s3, 576
        %v1658 = vld [vmem:[%s1657] sm:$0xff]
        %v1659 = vld [vmem:[%s1657 + $0x8] sm:$0xff]
        %v1660 = vld [vmem:[%s1657 + $0x10] sm:$0xff]
        %v1661 = vld [vmem:[%s1657 + $0x18] sm:$0xff]
        %v1662 = vld [vmem:[%s1657 + $0x20] sm:$0xff]
        %v1663 = vld [vmem:[%s1657 + $0x28] sm:$0xff]
        %v1664 = vld [vmem:[%s1657 + $0x30] sm:$0xff]
        %v1665 = vld [vmem:[%s1657 + $0x38] sm:$0xff]
        %v1666 = vld [vmem:[%s1657 + $0x40] sm:$0xff]
        %v1667 = vld [vmem:[%s1657 + $0x48] sm:$0xff]
        %v1668 = vld [vmem:[%s1657 + $0x50] sm:$0xff]
        %v1669 = vld [vmem:[%s1657 + $0x58] sm:$0xff]
        %v1670 = vld [vmem:[%s1657 + $0x60] sm:$0xff]
        %v1671 = vld [vmem:[%s1657 + $0x68] sm:$0xff]
        %v1672 = vld [vmem:[%s1657 + $0x70] sm:$0xff]
        %v1673 = vld [vmem:[%s1657 + $0x78] sm:$0xff]
        %v1674 = vld [vmem:[%s1657 + $0x80] sm:$0xff]
        %v1675 = vld [vmem:[%s1657 + $0x88] sm:$0xff]
        %v1676 = vld [vmem:[%s1657 + $0x90] sm:$0xff]
        %v1677 = vld [vmem:[%s1657 + $0x98] sm:$0xff]
        %v1678 = vld [vmem:[%s1657 + $0xa0] sm:$0xff]
        %v1679 = vld [vmem:[%s1657 + $0xa8] sm:$0xff]
        %v1680 = vld [vmem:[%s1657 + $0xb0] sm:$0xff]
        %v1681 = vld [vmem:[%s1657 + $0xb8] sm:$0xff]
        %v1682 = vld [vmem:[#allocation2] sm:$0xff]
        %v1683 = vld [vmem:[#allocation2 + $0x8] sm:$0xff]
        %v1684 = vld [vmem:[#allocation2 + $0x1] sm:$0xff]
        %v1685 = vld [vmem:[#allocation2 + $0x9] sm:$0xff]
        %v1687 = vsel %vm762, %v1684, 0
        %v1690 = vsel %vm762, %v1685, 0
        %1692 = vmatprep.subr.mxu0 0.0
        %1693 = vmatpush1.msra.mxu0 %v1666
        %1694 = vmatprep.subr.mxu0 0.0
        %1695 = vmatpush1.msra.mxu0 %v1667
        %1696 = vmatprep.subr.mxu0 0.0
        %1697 = vmatpush1.msra.mxu0 %v1668
        %1698 = vmatprep.subr.mxu0 0.0
        %1699 = vmatpush1.msra.mxu0 %v1669
        %1700 = vmatprep.subr.mxu0 0.0
        %1701 = vmatpush1.msra.mxu0 %v1670
        %1702 = vmatprep.subr.mxu0 0.0
        %1703 = vmatpush1.msra.mxu0 %v1671
        %1704 = vmatprep.subr.mxu0 0.0
        %1705 = vmatpush1.msra.mxu0 %v1672
        %1706 = vmatprep.subr.mxu0 0.0
        %1707 = vmatpush1.msra.mxu0 %v1673
        %1708 = vmatprep.subr.mxu0 0.0
        %1709 = vmatpush1.msra.mxu0 0.0
        %1710 = vmatprep.subr.mxu0 0.0
        %1711 = vmatpush1.msra.mxu0 0.0
        %1712 = vmatprep.subr.mxu0 0.0
        %1713 = vmatpush1.msra.mxu0 0.0
        %1714 = vmatprep.subr.mxu0 0.0
        %1715 = vmatpush1.msra.mxu0 0.0
        %1716 = vmatprep.subr.mxu0 0.0
        %1717 = vmatpush1.msra.mxu0 0.0
        %1718 = vmatprep.subr.mxu0 0.0
        %1719 = vmatpush1.msra.mxu0 0.0
        %1720 = vmatprep.subr.mxu0 0.0
        %1721 = vmatpush1.msra.mxu0 0.0
        %1722 = vmatprep.subr.mxu0 0.0
        %1723 = vmatpush1.msra.mxu0 0.0
        %1724 = vmatprep.subr.mxu0 0.0
        %1725 = vmatpush1.msra.mxu0 0.0
        %1726 = vmatprep.subr.mxu0 0.0
        %1727 = vmatpush1.msra.mxu0 0.0
        %1728 = vmatprep.subr.mxu0 0.0
        %1729 = vmatpush1.msra.mxu0 0.0
        %1730 = vmatprep.subr.mxu0 0.0
        %1731 = vmatpush1.msra.mxu0 0.0
        %1732 = vmatprep.subr.mxu0 0.0
        %1733 = vmatpush1.msra.mxu0 0.0
        %1734 = vmatprep.subr.mxu0 0.0
        %1735 = vmatpush1.msra.mxu0 0.0
        %1736 = vmatprep.subr.mxu0 0.0
        %1737 = vmatpush1.msra.mxu0 0.0
        %1738 = vmatprep.subr.mxu0 0.0
        %1739 = vmatpush1.msra.mxu0 0.0
        %1740 = vmatprep.subr.mxu0 0.0
        %1741 = vmatpush1.msra.mxu0 0.0
        %1742 = vmatprep.subr.mxu0 0.0
        %1743 = vmatpush1.msra.mxu0 0.0
        %1744 = vmatprep.subr.mxu0 0.0
        %1745 = vmatpush1.msra.mxu0 0.0
        %1746 = vmatprep.subr.mxu0 0.0
        %1747 = vmatpush1.msra.mxu0 0.0
        %1748 = vmatprep.subr.mxu0 0.0
        %1749 = vmatpush1.msra.mxu0 0.0
        %1750 = vmatprep.subr.mxu0 0.0
        %1751 = vmatpush1.msra.mxu0 0.0
        %1752 = vmatprep.subr.mxu0 0.0
        %1753 = vmatpush1.msra.mxu0 0.0
        %1754 = vmatprep.subr.mxu0 0.0
        %1755 = vmatpush1.msra.mxu0 0.0
        %1756 = vmatprep.mubr.f32.mxu0 0.0
        %1757 = vmatmul.mubr.f32.gmra.mrb[0].mxu0 %v1687
        %v1758 = vpop.f32.mrb[0].mxu0
        %v1759 = vadd.f32 0.0, %v1758
        %v1760 = vpop.f32.mrb[0].mxu0
        %1761 = vmatprep.mubr.f32.mxu0 0.0
        %1762 = vmatmul.mubr.f32.gmra.mrb[0].mxu0 %v1690
        %v1763 = vpop.f32.mrb[0].mxu0
        %v1764 = vadd.f32 0.0, %v1763
        %v1765 = vpop.f32.mrb[0].mxu0
        %1766 = vdwg.mxu0
        %v1768 = vsel %vm762, %v1682, 0
        %v1771 = vsel %vm762, %v1683, 0
        %1773 = vmatprep.subr.mxu0 0.0
        %1774 = vmatpush1.msra.mxu0 %v1658
        %1775 = vmatprep.subr.mxu0 0.0
        %1776 = vmatpush1.msra.mxu0 %v1659
        %1777 = vmatprep.subr.mxu0 0.0
        %1778 = vmatpush1.msra.mxu0 %v1660
        %1779 = vmatprep.subr.mxu0 0.0
        %1780 = vmatpush1.msra.mxu0 %v1661
        %1781 = vmatprep.subr.mxu0 0.0
        %1782 = vmatpush1.msra.mxu0 %v1662
        %1783 = vmatprep.subr.mxu0 0.0
        %1784 = vmatpush1.msra.mxu0 %v1663
        %1785 = vmatprep.subr.mxu0 0.0
        %1786 = vmatpush1.msra.mxu0 %v1664
        %1787 = vmatprep.subr.mxu0 0.0
        %1788 = vmatpush1.msra.mxu0 %v1665
        %1789 = vmatprep.subr.mxu0 0.0
        %1790 = vmatpush1.msra.mxu0 0.0
        %1791 = vmatprep.subr.mxu0 0.0
        %1792 = vmatpush1.msra.mxu0 0.0
        %1793 = vmatprep.subr.mxu0 0.0
        %1794 = vmatpush1.msra.mxu0 0.0
        %1795 = vmatprep.subr.mxu0 0.0
        %1796 = vmatpush1.msra.mxu0 0.0
        %1797 = vmatprep.subr.mxu0 0.0
        %1798 = vmatpush1.msra.mxu0 0.0
        %1799 = vmatprep.subr.mxu0 0.0
        %1800 = vmatpush1.msra.mxu0 0.0
        %1801 = vmatprep.subr.mxu0 0.0
        %1802 = vmatpush1.msra.mxu0 0.0
        %1803 = vmatprep.subr.mxu0 0.0
        %1804 = vmatpush1.msra.mxu0 0.0
        %1805 = vmatprep.subr.mxu0 0.0
        %1806 = vmatpush1.msra.mxu0 0.0
        %1807 = vmatprep.subr.mxu0 0.0
        %1808 = vmatpush1.msra.mxu0 0.0
        %1809 = vmatprep.subr.mxu0 0.0
        %1810 = vmatpush1.msra.mxu0 0.0
        %1811 = vmatprep.subr.mxu0 0.0
        %1812 = vmatpush1.msra.mxu0 0.0
        %1813 = vmatprep.subr.mxu0 0.0
        %1814 = vmatpush1.msra.mxu0 0.0
        %1815 = vmatprep.subr.mxu0 0.0
        %1816 = vmatpush1.msra.mxu0 0.0
        %1817 = vmatprep.subr.mxu0 0.0
        %1818 = vmatpush1.msra.mxu0 0.0
        %1819 = vmatprep.subr.mxu0 0.0
        %1820 = vmatpush1.msra.mxu0 0.0
        %1821 = vmatprep.subr.mxu0 0.0
        %1822 = vmatpush1.msra.mxu0 0.0
        %1823 = vmatprep.subr.mxu0 0.0
        %1824 = vmatpush1.msra.mxu0 0.0
        %1825 = vmatprep.subr.mxu0 0.0
        %1826 = vmatpush1.msra.mxu0 0.0
        %1827 = vmatprep.subr.mxu0 0.0
        %1828 = vmatpush1.msra.mxu0 0.0
        %1829 = vmatprep.subr.mxu0 0.0
        %1830 = vmatpush1.msra.mxu0 0.0
        %1831 = vmatprep.subr.mxu0 0.0
        %1832 = vmatpush1.msra.mxu0 0.0
        %1833 = vmatprep.subr.mxu0 0.0
        %1834 = vmatpush1.msra.mxu0 0.0
        %1835 = vmatprep.subr.mxu0 0.0
        %1836 = vmatpush1.msra.mxu0 0.0
        %1837 = vmatprep.mubr.f32.mxu0 0.0
        %1838 = vmatmul.mubr.f32.gmra.mrb[0].mxu0 %v1768
        %v1839 = vpop.f32.mrb[0].mxu0
        %v1840 = vadd.f32 %v1759, %v1839
        %v1841 = vpop.f32.mrb[0].mxu0
        %1842 = vmatprep.mubr.f32.mxu0 0.0
        %1843 = vmatmul.mubr.f32.gmra.mrb[0].mxu0 %v1771
        %v1844 = vpop.f32.mrb[0].mxu0
        %v1845 = vadd.f32 %v1764, %v1844
        %v1846 = vpop.f32.mrb[0].mxu0
        %1847 = vdwg.mxu0
        %v1848 = vld [vmem:[#allocation2 + $0x2] sm:$0xff]
        %v1849 = vld [vmem:[#allocation2 + $0xa] sm:$0xff]
        %v1851 = vsel %vm762, %v1848, 0
        %v1854 = vsel %vm762, %v1849, 0
        %1856 = vmatprep.subr.mxu0 0.0
        %1857 = vmatpush1.msra.mxu0 %v1674
        %1858 = vmatprep.subr.mxu0 0.0
        %1859 = vmatpush1.msra.mxu0 %v1675
        %1860 = vmatprep.subr.mxu0 0.0
        %1861 = vmatpush1.msra.mxu0 %v1676
        %1862 = vmatprep.subr.mxu0 0.0
        %1863 = vmatpush1.msra.mxu0 %v1677
        %1864 = vmatprep.subr.mxu0 0.0
        %1865 = vmatpush1.msra.mxu0 %v1678
        %1866 = vmatprep.subr.mxu0 0.0
        %1867 = vmatpush1.msra.mxu0 %v1679
        %1868 = vmatprep.subr.mxu0 0.0
        %1869 = vmatpush1.msra.mxu0 %v1680
        %1870 = vmatprep.subr.mxu0 0.0
        %1871 = vmatpush1.msra.mxu0 %v1681
        %1872 = vmatprep.subr.mxu0 0.0
        %1873 = vmatpush1.msra.mxu0 0.0
        %1874 = vmatprep.subr.mxu0 0.0
        %1875 = vmatpush1.msra.mxu0 0.0
        %1876 = vmatprep.subr.mxu0 0.0
        %1877 = vmatpush1.msra.mxu0 0.0
        %1878 = vmatprep.subr.mxu0 0.0
        %1879 = vmatpush1.msra.mxu0 0.0
        %1880 = vmatprep.subr.mxu0 0.0
        %1881 = vmatpush1.msra.mxu0 0.0
        %1882 = vmatprep.subr.mxu0 0.0
        %1883 = vmatpush1.msra.mxu0 0.0
        %1884 = vmatprep.subr.mxu0 0.0
        %1885 = vmatpush1.msra.mxu0 0.0
        %1886 = vmatprep.subr.mxu0 0.0
        %1887 = vmatpush1.msra.mxu0 0.0
        %1888 = vmatprep.subr.mxu0 0.0
        %1889 = vmatpush1.msra.mxu0 0.0
        %1890 = vmatprep.subr.mxu0 0.0
        %1891 = vmatpush1.msra.mxu0 0.0
        %1892 = vmatprep.subr.mxu0 0.0
        %1893 = vmatpush1.msra.mxu0 0.0
        %1894 = vmatprep.subr.mxu0 0.0
        %1895 = vmatpush1.msra.mxu0 0.0
        %1896 = vmatprep.subr.mxu0 0.0
        %1897 = vmatpush1.msra.mxu0 0.0
        %1898 = vmatprep.subr.mxu0 0.0
        %1899 = vmatpush1.msra.mxu0 0.0
        %1900 = vmatprep.subr.mxu0 0.0
        %1901 = vmatpush1.msra.mxu0 0.0
        %1902 = vmatprep.subr.mxu0 0.0
        %1903 = vmatpush1.msra.mxu0 0.0
        %1904 = vmatprep.subr.mxu0 0.0
        %1905 = vmatpush1.msra.mxu0 0.0
        %1906 = vmatprep.subr.mxu0 0.0
        %1907 = vmatpush1.msra.mxu0 0.0
        %1908 = vmatprep.subr.mxu0 0.0
        %1909 = vmatpush1.msra.mxu0 0.0
        %1910 = vmatprep.subr.mxu0 0.0
        %1911 = vmatpush1.msra.mxu0 0.0
        %1912 = vmatprep.subr.mxu0 0.0
        %1913 = vmatpush1.msra.mxu0 0.0
        %1914 = vmatprep.subr.mxu0 0.0
        %1915 = vmatpush1.msra.mxu0 0.0
        %1916 = vmatprep.subr.mxu0 0.0
        %1917 = vmatpush1.msra.mxu0 0.0
        %1918 = vmatprep.subr.mxu0 0.0
        %1919 = vmatpush1.msra.mxu0 0.0
        %1920 = vmatprep.mubr.f32.mxu0 0.0
        %1921 = vmatmul.mubr.f32.gmra.mrb[0].mxu0 %v1851
        %v1922 = vpop.f32.mrb[0].mxu0
        %v1923 = vadd.f32 0.0, %v1922
        %v1924 = vpop.f32.mrb[0].mxu0
        %1925 = vmatprep.mubr.f32.mxu0 0.0
        %1926 = vmatmul.mubr.f32.gmra.mrb[0].mxu0 %v1854
        %v1927 = vpop.f32.mrb[0].mxu0
        %v1928 = vadd.f32 0.0, %v1927
        %v1929 = vpop.f32.mrb[0].mxu0
        %1930 = vdwg.mxu0
        %v1931 = vadd.f32 %v1840, %v1923
        %v1932 = vadd.f32 %v1845, %v1928
        %v1933 = vld [vmem:[%s4 + $0x3] sm:$0x1]
        %v1934 = vlaneseq
        %v1935 = vshrl.u32 %v1934, 7
        %v1936 = vsub.s32 0, %v1935
        %v1937 = vrot.slane %v1933, %v1936
        %v1938 = vadd.f32 %v1931, %v1937
        %v1939 = vadd.f32 %v1932, %v1937
        %vm1940 = vcmp.ge.f32.partialorder %v1938, 0.0
        %vm1941 = vcmp.ge.f32.partialorder %v1939, 0.0
        %v1942 = vmul.f32 %v1938, 0.1
        %v1943 = vmul.f32 %v1939, 0.1
        %v1944 = vsel %vm1940, %v1938, %v1942
        %v1945 = vsel %vm1941, %v1939, %v1943
        %v1946 = vadd.f32 %v1362, %v1944
        %v1947 = vadd.f32 %v1363, %v1945
        %1948 = vst.msk [vmem:[#allocation2 + $0x1] sm:$0xff] %vm762, %v1946
        %1949 = vst.msk [vmem:[#allocation2 + $0x9] sm:$0xff] %vm762, %v1947
        %s1950 = scalar_lea.vmem %s3, 768
        %v1951 = vld [vmem:[%s1950] sm:$0xff]
        %v1952 = vld [vmem:[%s1950 + $0x8] sm:$0xff]
        %v1953 = vld [vmem:[%s1950 + $0x10] sm:$0xff]
        %v1954 = vld [vmem:[%s1950 + $0x18] sm:$0xff]
        %v1955 = vld [vmem:[%s1950 + $0x20] sm:$0xff]
        %v1956 = vld [vmem:[%s1950 + $0x28] sm:$0xff]
        %v1957 = vld [vmem:[%s1950 + $0x30] sm:$0xff]
        %v1958 = vld [vmem:[%s1950 + $0x38] sm:$0xff]
        %v1959 = vld [vmem:[%s1950 + $0x40] sm:$0xff]
        %v1960 = vld [vmem:[%s1950 + $0x48] sm:$0xff]
        %v1961 = vld [vmem:[%s1950 + $0x50] sm:$0xff]
        %v1962 = vld [vmem:[%s1950 + $0x58] sm:$0xff]
        %v1963 = vld [vmem:[%s1950 + $0x60] sm:$0xff]
        %v1964 = vld [vmem:[%s1950 + $0x68] sm:$0xff]
        %v1965 = vld [vmem:[%s1950 + $0x70] sm:$0xff]
        %v1966 = vld [vmem:[%s1950 + $0x78] sm:$0xff]
        %v1967 = vld [vmem:[%s1950 + $0x80] sm:$0xff]
        %v1968 = vld [vmem:[%s1950 + $0x88] sm:$0xff]
        %v1969 = vld [vmem:[%s1950 + $0x90] sm:$0xff]
        %v1970 = vld [vmem:[%s1950 + $0x98] sm:$0xff]
        %v1971 = vld [vmem:[%s1950 + $0xa0] sm:$0xff]
        %v1972 = vld [vmem:[%s1950 + $0xa8] sm:$0xff]
        %v1973 = vld [vmem:[%s1950 + $0xb0] sm:$0xff]
        %v1974 = vld [vmem:[%s1950 + $0xb8] sm:$0xff]
        %v1975 = vld [vmem:[#allocation2] sm:$0xff]
        %v1976 = vld [vmem:[#allocation2 + $0x8] sm:$0xff]
        %v1977 = vld [vmem:[#allocation2 + $0x1] sm:$0xff]
        %v1978 = vld [vmem:[#allocation2 + $0x9] sm:$0xff]
        %v1980 = vsel %vm762, %v1977, 0
        %v1983 = vsel %vm762, %v1978, 0
        %1985 = vmatprep.subr.mxu0 0.0
        %1986 = vmatpush1.msra.mxu0 %v1959
        %1987 = vmatprep.subr.mxu0 0.0
        %1988 = vmatpush1.msra.mxu0 %v1960
        %1989 = vmatprep.subr.mxu0 0.0
        %1990 = vmatpush1.msra.mxu0 %v1961
        %1991 = vmatprep.subr.mxu0 0.0
        %1992 = vmatpush1.msra.mxu0 %v1962
        %1993 = vmatprep.subr.mxu0 0.0
        %1994 = vmatpush1.msra.mxu0 %v1963
        %1995 = vmatprep.subr.mxu0 0.0
        %1996 = vmatpush1.msra.mxu0 %v1964
        %1997 = vmatprep.subr.mxu0 0.0
        %1998 = vmatpush1.msra.mxu0 %v1965
        %1999 = vmatprep.subr.mxu0 0.0
        %2000 = vmatpush1.msra.mxu0 %v1966
        %2001 = vmatprep.subr.mxu0 0.0
        %2002 = vmatpush1.msra.mxu0 0.0
        %2003 = vmatprep.subr.mxu0 0.0
        %2004 = vmatpush1.msra.mxu0 0.0
        %2005 = vmatprep.subr.mxu0 0.0
        %2006 = vmatpush1.msra.mxu0 0.0
        %2007 = vmatprep.subr.mxu0 0.0
        %2008 = vmatpush1.msra.mxu0 0.0
        %2009 = vmatprep.subr.mxu0 0.0
        %2010 = vmatpush1.msra.mxu0 0.0
        %2011 = vmatprep.subr.mxu0 0.0
        %2012 = vmatpush1.msra.mxu0 0.0
        %2013 = vmatprep.subr.mxu0 0.0
        %2014 = vmatpush1.msra.mxu0 0.0
        %2015 = vmatprep.subr.mxu0 0.0
        %2016 = vmatpush1.msra.mxu0 0.0
        %2017 = vmatprep.subr.mxu0 0.0
        %2018 = vmatpush1.msra.mxu0 0.0
        %2019 = vmatprep.subr.mxu0 0.0
        %2020 = vmatpush1.msra.mxu0 0.0
        %2021 = vmatprep.subr.mxu0 0.0
        %2022 = vmatpush1.msra.mxu0 0.0
        %2023 = vmatprep.subr.mxu0 0.0
        %2024 = vmatpush1.msra.mxu0 0.0
        %2025 = vmatprep.subr.mxu0 0.0
        %2026 = vmatpush1.msra.mxu0 0.0
        %2027 = vmatprep.subr.mxu0 0.0
        %2028 = vmatpush1.msra.mxu0 0.0
        %2029 = vmatprep.subr.mxu0 0.0
        %2030 = vmatpush1.msra.mxu0 0.0
        %2031 = vmatprep.subr.mxu0 0.0
        %2032 = vmatpush1.msra.mxu0 0.0
        %2033 = vmatprep.subr.mxu0 0.0
        %2034 = vmatpush1.msra.mxu0 0.0
        %2035 = vmatprep.subr.mxu0 0.0
        %2036 = vmatpush1.msra.mxu0 0.0
        %2037 = vmatprep.subr.mxu0 0.0
        %2038 = vmatpush1.msra.mxu0 0.0
        %2039 = vmatprep.subr.mxu0 0.0
        %2040 = vmatpush1.msra.mxu0 0.0
        %2041 = vmatprep.subr.mxu0 0.0
        %2042 = vmatpush1.msra.mxu0 0.0
        %2043 = vmatprep.subr.mxu0 0.0
        %2044 = vmatpush1.msra.mxu0 0.0
        %2045 = vmatprep.subr.mxu0 0.0
        %2046 = vmatpush1.msra.mxu0 0.0
        %2047 = vmatprep.subr.mxu0 0.0
        %2048 = vmatpush1.msra.mxu0 0.0
        %2049 = vmatprep.mubr.f32.mxu0 0.0
        %2050 = vmatmul.mubr.f32.gmra.mrb[0].mxu0 %v1980
        %v2051 = vpop.f32.mrb[0].mxu0
        %v2052 = vadd.f32 0.0, %v2051
        %v2053 = vpop.f32.mrb[0].mxu0
        %2054 = vmatprep.mubr.f32.mxu0 0.0
        %2055 = vmatmul.mubr.f32.gmra.mrb[0].mxu0 %v1983
        %v2056 = vpop.f32.mrb[0].mxu0
        %v2057 = vadd.f32 0.0, %v2056
        %v2058 = vpop.f32.mrb[0].mxu0
        %2059 = vdwg.mxu0
        %v2061 = vsel %vm762, %v1975, 0
        %v2064 = vsel %vm762, %v1976, 0
        %2066 = vmatprep.subr.mxu0 0.0
        %2067 = vmatpush1.msra.mxu0 %v1951
        %2068 = vmatprep.subr.mxu0 0.0
        %2069 = vmatpush1.msra.mxu0 %v1952
        %2070 = vmatprep.subr.mxu0 0.0
        %2071 = vmatpush1.msra.mxu0 %v1953
        %2072 = vmatprep.subr.mxu0 0.0
        %2073 = vmatpush1.msra.mxu0 %v1954
        %2074 = vmatprep.subr.mxu0 0.0
        %2075 = vmatpush1.msra.mxu0 %v1955
        %2076 = vmatprep.subr.mxu0 0.0
        %2077 = vmatpush1.msra.mxu0 %v1956
        %2078 = vmatprep.subr.mxu0 0.0
        %2079 = vmatpush1.msra.mxu0 %v1957
        %2080 = vmatprep.subr.mxu0 0.0
        %2081 = vmatpush1.msra.mxu0 %v1958
        %2082 = vmatprep.subr.mxu0 0.0
        %2083 = vmatpush1.msra.mxu0 0.0
        %2084 = vmatprep.subr.mxu0 0.0
        %2085 = vmatpush1.msra.mxu0 0.0
        %2086 = vmatprep.subr.mxu0 0.0
        %2087 = vmatpush1.msra.mxu0 0.0
        %2088 = vmatprep.subr.mxu0 0.0
        %2089 = vmatpush1.msra.mxu0 0.0
        %2090 = vmatprep.subr.mxu0 0.0
        %2091 = vmatpush1.msra.mxu0 0.0
        %2092 = vmatprep.subr.mxu0 0.0
        %2093 = vmatpush1.msra.mxu0 0.0
        %2094 = vmatprep.subr.mxu0 0.0
        %2095 = vmatpush1.msra.mxu0 0.0
        %2096 = vmatprep.subr.mxu0 0.0
        %2097 = vmatpush1.msra.mxu0 0.0
        %2098 = vmatprep.subr.mxu0 0.0
        %2099 = vmatpush1.msra.mxu0 0.0
        %2100 = vmatprep.subr.mxu0 0.0
        %2101 = vmatpush1.msra.mxu0 0.0
        %2102 = vmatprep.subr.mxu0 0.0
        %2103 = vmatpush1.msra.mxu0 0.0
        %2104 = vmatprep.subr.mxu0 0.0
        %2105 = vmatpush1.msra.mxu0 0.0
        %2106 = vmatprep.subr.mxu0 0.0
        %2107 = vmatpush1.msra.mxu0 0.0
        %2108 = vmatprep.subr.mxu0 0.0
        %2109 = vmatpush1.msra.mxu0 0.0
        %2110 = vmatprep.subr.mxu0 0.0
        %2111 = vmatpush1.msra.mxu0 0.0
        %2112 = vmatprep.subr.mxu0 0.0
        %2113 = vmatpush1.msra.mxu0 0.0
        %2114 = vmatprep.subr.mxu0 0.0
        %2115 = vmatpush1.msra.mxu0 0.0
        %2116 = vmatprep.subr.mxu0 0.0
        %2117 = vmatpush1.msra.mxu0 0.0
        %2118 = vmatprep.subr.mxu0 0.0
        %2119 = vmatpush1.msra.mxu0 0.0
        %2120 = vmatprep.subr.mxu0 0.0
        %2121 = vmatpush1.msra.mxu0 0.0
        %2122 = vmatprep.subr.mxu0 0.0
        %2123 = vmatpush1.msra.mxu0 0.0
        %2124 = vmatprep.subr.mxu0 0.0
        %2125 = vmatpush1.msra.mxu0 0.0
        %2126 = vmatprep.subr.mxu0 0.0
        %2127 = vmatpush1.msra.mxu0 0.0
        %2128 = vmatprep.subr.mxu0 0.0
        %2129 = vmatpush1.msra.mxu0 0.0
        %2130 = vmatprep.mubr.f32.mxu0 0.0
        %2131 = vmatmul.mubr.f32.gmra.mrb[0].mxu0 %v2061
        %v2132 = vpop.f32.mrb[0].mxu0
        %v2133 = vadd.f32 %v2052, %v2132
        %v2134 = vpop.f32.mrb[0].mxu0
        %2135 = vmatprep.mubr.f32.mxu0 0.0
        %2136 = vmatmul.mubr.f32.gmra.mrb[0].mxu0 %v2064
        %v2137 = vpop.f32.mrb[0].mxu0
        %v2138 = vadd.f32 %v2057, %v2137
        %v2139 = vpop.f32.mrb[0].mxu0
        %2140 = vdwg.mxu0
        %v2141 = vld [vmem:[#allocation2 + $0x2] sm:$0xff]
        %v2142 = vld [vmem:[#allocation2 + $0xa] sm:$0xff]
        %v2144 = vsel %vm762, %v2141, 0
        %v2147 = vsel %vm762, %v2142, 0
        %2149 = vmatprep.subr.mxu0 0.0
        %2150 = vmatpush1.msra.mxu0 %v1967
        %2151 = vmatprep.subr.mxu0 0.0
        %2152 = vmatpush1.msra.mxu0 %v1968
        %2153 = vmatprep.subr.mxu0 0.0
        %2154 = vmatpush1.msra.mxu0 %v1969
        %2155 = vmatprep.subr.mxu0 0.0
        %2156 = vmatpush1.msra.mxu0 %v1970
        %2157 = vmatprep.subr.mxu0 0.0
        %2158 = vmatpush1.msra.mxu0 %v1971
        %2159 = vmatprep.subr.mxu0 0.0
        %2160 = vmatpush1.msra.mxu0 %v1972
        %2161 = vmatprep.subr.mxu0 0.0
        %2162 = vmatpush1.msra.mxu0 %v1973
        %2163 = vmatprep.subr.mxu0 0.0
        %2164 = vmatpush1.msra.mxu0 %v1974
        %2165 = vmatprep.subr.mxu0 0.0
        %2166 = vmatpush1.msra.mxu0 0.0
        %2167 = vmatprep.subr.mxu0 0.0
        %2168 = vmatpush1.msra.mxu0 0.0
        %2169 = vmatprep.subr.mxu0 0.0
        %2170 = vmatpush1.msra.mxu0 0.0
        %2171 = vmatprep.subr.mxu0 0.0
        %2172 = vmatpush1.msra.mxu0 0.0
        %2173 = vmatprep.subr.mxu0 0.0
        %2174 = vmatpush1.msra.mxu0 0.0
        %2175 = vmatprep.subr.mxu0 0.0
        %2176 = vmatpush1.msra.mxu0 0.0
        %2177 = vmatprep.subr.mxu0 0.0
        %2178 = vmatpush1.msra.mxu0 0.0
        %2179 = vmatprep.subr.mxu0 0.0
        %2180 = vmatpush1.msra.mxu0 0.0
        %2181 = vmatprep.subr.mxu0 0.0
        %2182 = vmatpush1.msra.mxu0 0.0
        %2183 = vmatprep.subr.mxu0 0.0
        %2184 = vmatpush1.msra.mxu0 0.0
        %2185 = vmatprep.subr.mxu0 0.0
        %2186 = vmatpush1.msra.mxu0 0.0
        %2187 = vmatprep.subr.mxu0 0.0
        %2188 = vmatpush1.msra.mxu0 0.0
        %2189 = vmatprep.subr.mxu0 0.0
        %2190 = vmatpush1.msra.mxu0 0.0
        %2191 = vmatprep.subr.mxu0 0.0
        %2192 = vmatpush1.msra.mxu0 0.0
        %2193 = vmatprep.subr.mxu0 0.0
        %2194 = vmatpush1.msra.mxu0 0.0
        %2195 = vmatprep.subr.mxu0 0.0
        %2196 = vmatpush1.msra.mxu0 0.0
        %2197 = vmatprep.subr.mxu0 0.0
        %2198 = vmatpush1.msra.mxu0 0.0
        %2199 = vmatprep.subr.mxu0 0.0
        %2200 = vmatpush1.msra.mxu0 0.0
        %2201 = vmatprep.subr.mxu0 0.0
        %2202 = vmatpush1.msra.mxu0 0.0
        %2203 = vmatprep.subr.mxu0 0.0
        %2204 = vmatpush1.msra.mxu0 0.0
        %2205 = vmatprep.subr.mxu0 0.0
        %2206 = vmatpush1.msra.mxu0 0.0
        %2207 = vmatprep.subr.mxu0 0.0
        %2208 = vmatpush1.msra.mxu0 0.0
        %2209 = vmatprep.subr.mxu0 0.0
        %2210 = vmatpush1.msra.mxu0 0.0
        %2211 = vmatprep.subr.mxu0 0.0
        %2212 = vmatpush1.msra.mxu0 0.0
        %2213 = vmatprep.mubr.f32.mxu0 0.0
        %2214 = vmatmul.mubr.f32.gmra.mrb[0].mxu0 %v2144
        %v2215 = vpop.f32.mrb[0].mxu0
        %v2216 = vadd.f32 0.0, %v2215
        %v2217 = vpop.f32.mrb[0].mxu0
        %2218 = vmatprep.mubr.f32.mxu0 0.0
        %2219 = vmatmul.mubr.f32.gmra.mrb[0].mxu0 %v2147
        %v2220 = vpop.f32.mrb[0].mxu0
        %v2221 = vadd.f32 0.0, %v2220
        %v2222 = vpop.f32.mrb[0].mxu0
        %2223 = vdwg.mxu0
        %v2224 = vadd.f32 %v2133, %v2216
        %v2225 = vadd.f32 %v2138, %v2221
        %v2226 = vld [vmem:[%s4 + $0x4] sm:$0x1]
        %v2227 = vlaneseq
        %v2228 = vshrl.u32 %v2227, 7
        %v2229 = vsub.s32 0, %v2228
        %v2230 = vrot.slane %v2226, %v2229
        %v2231 = vadd.f32 %v2224, %v2230
        %v2232 = vadd.f32 %v2225, %v2230
        %vm2233 = vcmp.ge.f32.partialorder %v2231, 0.0
        %vm2234 = vcmp.ge.f32.partialorder %v2232, 0.0
        %v2235 = vmul.f32 %v2231, 0.1
        %v2236 = vmul.f32 %v2232, 0.1
        %v2237 = vsel %vm2233, %v2231, %v2235
        %v2238 = vsel %vm2234, %v2232, %v2236
        %2239 = vst.msk [vmem:[#allocation2 + $0x1] sm:$0xff] %vm762, %v2237
        %2240 = vst.msk [vmem:[#allocation2 + $0x9] sm:$0xff] %vm762, %v2238
        %s2241 = scalar_lea.vmem %s3, 960
        %v2242 = vld [vmem:[%s2241] sm:$0xff]
        %v2243 = vld [vmem:[%s2241 + $0x8] sm:$0xff]
        %v2244 = vld [vmem:[%s2241 + $0x10] sm:$0xff]
        %v2245 = vld [vmem:[%s2241 + $0x18] sm:$0xff]
        %v2246 = vld [vmem:[%s2241 + $0x20] sm:$0xff]
        %v2247 = vld [vmem:[%s2241 + $0x28] sm:$0xff]
        %v2248 = vld [vmem:[%s2241 + $0x30] sm:$0xff]
        %v2249 = vld [vmem:[%s2241 + $0x38] sm:$0xff]
        %v2250 = vld [vmem:[%s2241 + $0x40] sm:$0xff]
        %v2251 = vld [vmem:[%s2241 + $0x48] sm:$0xff]
        %v2252 = vld [vmem:[%s2241 + $0x50] sm:$0xff]
        %v2253 = vld [vmem:[%s2241 + $0x58] sm:$0xff]
        %v2254 = vld [vmem:[%s2241 + $0x60] sm:$0xff]
        %v2255 = vld [vmem:[%s2241 + $0x68] sm:$0xff]
        %v2256 = vld [vmem:[%s2241 + $0x70] sm:$0xff]
        %v2257 = vld [vmem:[%s2241 + $0x78] sm:$0xff]
        %v2258 = vld [vmem:[%s2241 + $0x80] sm:$0xff]
        %v2259 = vld [vmem:[%s2241 + $0x88] sm:$0xff]
        %v2260 = vld [vmem:[%s2241 + $0x90] sm:$0xff]
        %v2261 = vld [vmem:[%s2241 + $0x98] sm:$0xff]
        %v2262 = vld [vmem:[%s2241 + $0xa0] sm:$0xff]
        %v2263 = vld [vmem:[%s2241 + $0xa8] sm:$0xff]
        %v2264 = vld [vmem:[%s2241 + $0xb0] sm:$0xff]
        %v2265 = vld [vmem:[%s2241 + $0xb8] sm:$0xff]
        %v2266 = vld [vmem:[#allocation2] sm:$0xff]
        %v2267 = vld [vmem:[#allocation2 + $0x8] sm:$0xff]
        %v2268 = vld [vmem:[#allocation2 + $0x1] sm:$0xff]
        %v2269 = vld [vmem:[#allocation2 + $0x9] sm:$0xff]
        %v2271 = vsel %vm762, %v2268, 0
        %v2274 = vsel %vm762, %v2269, 0
        %2276 = vmatprep.subr.mxu0 0.0
        %2277 = vmatpush1.msra.mxu0 %v2250
        %2278 = vmatprep.subr.mxu0 0.0
        %2279 = vmatpush1.msra.mxu0 %v2251
        %2280 = vmatprep.subr.mxu0 0.0
        %2281 = vmatpush1.msra.mxu0 %v2252
        %2282 = vmatprep.subr.mxu0 0.0
        %2283 = vmatpush1.msra.mxu0 %v2253
        %2284 = vmatprep.subr.mxu0 0.0
        %2285 = vmatpush1.msra.mxu0 %v2254
        %2286 = vmatprep.subr.mxu0 0.0
        %2287 = vmatpush1.msra.mxu0 %v2255
        %2288 = vmatprep.subr.mxu0 0.0
        %2289 = vmatpush1.msra.mxu0 %v2256
        %2290 = vmatprep.subr.mxu0 0.0
        %2291 = vmatpush1.msra.mxu0 %v2257
        %2292 = vmatprep.subr.mxu0 0.0
        %2293 = vmatpush1.msra.mxu0 0.0
        %2294 = vmatprep.subr.mxu0 0.0
        %2295 = vmatpush1.msra.mxu0 0.0
        %2296 = vmatprep.subr.mxu0 0.0
        %2297 = vmatpush1.msra.mxu0 0.0
        %2298 = vmatprep.subr.mxu0 0.0
        %2299 = vmatpush1.msra.mxu0 0.0
        %2300 = vmatprep.subr.mxu0 0.0
        %2301 = vmatpush1.msra.mxu0 0.0
        %2302 = vmatprep.subr.mxu0 0.0
        %2303 = vmatpush1.msra.mxu0 0.0
        %2304 = vmatprep.subr.mxu0 0.0
        %2305 = vmatpush1.msra.mxu0 0.0
        %2306 = vmatprep.subr.mxu0 0.0
        %2307 = vmatpush1.msra.mxu0 0.0
        %2308 = vmatprep.subr.mxu0 0.0
        %2309 = vmatpush1.msra.mxu0 0.0
        %2310 = vmatprep.subr.mxu0 0.0
        %2311 = vmatpush1.msra.mxu0 0.0
        %2312 = vmatprep.subr.mxu0 0.0
        %2313 = vmatpush1.msra.mxu0 0.0
        %2314 = vmatprep.subr.mxu0 0.0
        %2315 = vmatpush1.msra.mxu0 0.0
        %2316 = vmatprep.subr.mxu0 0.0
        %2317 = vmatpush1.msra.mxu0 0.0
        %2318 = vmatprep.subr.mxu0 0.0
        %2319 = vmatpush1.msra.mxu0 0.0
        %2320 = vmatprep.subr.mxu0 0.0
        %2321 = vmatpush1.msra.mxu0 0.0
        %2322 = vmatprep.subr.mxu0 0.0
        %2323 = vmatpush1.msra.mxu0 0.0
        %2324 = vmatprep.subr.mxu0 0.0
        %2325 = vmatpush1.msra.mxu0 0.0
        %2326 = vmatprep.subr.mxu0 0.0
        %2327 = vmatpush1.msra.mxu0 0.0
        %2328 = vmatprep.subr.mxu0 0.0
        %2329 = vmatpush1.msra.mxu0 0.0
        %2330 = vmatprep.subr.mxu0 0.0
        %2331 = vmatpush1.msra.mxu0 0.0
        %2332 = vmatprep.subr.mxu0 0.0
        %2333 = vmatpush1.msra.mxu0 0.0
        %2334 = vmatprep.subr.mxu0 0.0
        %2335 = vmatpush1.msra.mxu0 0.0
        %2336 = vmatprep.subr.mxu0 0.0
        %2337 = vmatpush1.msra.mxu0 0.0
        %2338 = vmatprep.subr.mxu0 0.0
        %2339 = vmatpush1.msra.mxu0 0.0
        %2340 = vmatprep.mubr.f32.mxu0 0.0
        %2341 = vmatmul.mubr.f32.gmra.mrb[0].mxu0 %v2271
        %v2342 = vpop.f32.mrb[0].mxu0
        %v2343 = vadd.f32 0.0, %v2342
        %v2344 = vpop.f32.mrb[0].mxu0
        %2345 = vmatprep.mubr.f32.mxu0 0.0
        %2346 = vmatmul.mubr.f32.gmra.mrb[0].mxu0 %v2274
        %v2347 = vpop.f32.mrb[0].mxu0
        %v2348 = vadd.f32 0.0, %v2347
        %v2349 = vpop.f32.mrb[0].mxu0
        %2350 = vdwg.mxu0
        %v2352 = vsel %vm762, %v2266, 0
        %v2355 = vsel %vm762, %v2267, 0
        %2357 = vmatprep.subr.mxu0 0.0
        %2358 = vmatpush1.msra.mxu0 %v2242
        %2359 = vmatprep.subr.mxu0 0.0
        %2360 = vmatpush1.msra.mxu0 %v2243
        %2361 = vmatprep.subr.mxu0 0.0
        %2362 = vmatpush1.msra.mxu0 %v2244
        %2363 = vmatprep.subr.mxu0 0.0
        %2364 = vmatpush1.msra.mxu0 %v2245
        %2365 = vmatprep.subr.mxu0 0.0
        %2366 = vmatpush1.msra.mxu0 %v2246
        %2367 = vmatprep.subr.mxu0 0.0
        %2368 = vmatpush1.msra.mxu0 %v2247
        %2369 = vmatprep.subr.mxu0 0.0
        %2370 = vmatpush1.msra.mxu0 %v2248
        %2371 = vmatprep.subr.mxu0 0.0
        %2372 = vmatpush1.msra.mxu0 %v2249
        %2373 = vmatprep.subr.mxu0 0.0
        %2374 = vmatpush1.msra.mxu0 0.0
        %2375 = vmatprep.subr.mxu0 0.0
        %2376 = vmatpush1.msra.mxu0 0.0
        %2377 = vmatprep.subr.mxu0 0.0
        %2378 = vmatpush1.msra.mxu0 0.0
        %2379 = vmatprep.subr.mxu0 0.0
        %2380 = vmatpush1.msra.mxu0 0.0
        %2381 = vmatprep.subr.mxu0 0.0
        %2382 = vmatpush1.msra.mxu0 0.0
        %2383 = vmatprep.subr.mxu0 0.0
        %2384 = vmatpush1.msra.mxu0 0.0
        %2385 = vmatprep.subr.mxu0 0.0
        %2386 = vmatpush1.msra.mxu0 0.0
        %2387 = vmatprep.subr.mxu0 0.0
        %2388 = vmatpush1.msra.mxu0 0.0
        %2389 = vmatprep.subr.mxu0 0.0
        %2390 = vmatpush1.msra.mxu0 0.0
        %2391 = vmatprep.subr.mxu0 0.0
        %2392 = vmatpush1.msra.mxu0 0.0
        %2393 = vmatprep.subr.mxu0 0.0
        %2394 = vmatpush1.msra.mxu0 0.0
        %2395 = vmatprep.subr.mxu0 0.0
        %2396 = vmatpush1.msra.mxu0 0.0
        %2397 = vmatprep.subr.mxu0 0.0
        %2398 = vmatpush1.msra.mxu0 0.0
        %2399 = vmatprep.subr.mxu0 0.0
        %2400 = vmatpush1.msra.mxu0 0.0
        %2401 = vmatprep.subr.mxu0 0.0
        %2402 = vmatpush1.msra.mxu0 0.0
        %2403 = vmatprep.subr.mxu0 0.0
        %2404 = vmatpush1.msra.mxu0 0.0
        %2405 = vmatprep.subr.mxu0 0.0
        %2406 = vmatpush1.msra.mxu0 0.0
        %2407 = vmatprep.subr.mxu0 0.0
        %2408 = vmatpush1.msra.mxu0 0.0
        %2409 = vmatprep.subr.mxu0 0.0
        %2410 = vmatpush1.msra.mxu0 0.0
        %2411 = vmatprep.subr.mxu0 0.0
        %2412 = vmatpush1.msra.mxu0 0.0
        %2413 = vmatprep.subr.mxu0 0.0
        %2414 = vmatpush1.msra.mxu0 0.0
        %2415 = vmatprep.subr.mxu0 0.0
        %2416 = vmatpush1.msra.mxu0 0.0
        %2417 = vmatprep.subr.mxu0 0.0
        %2418 = vmatpush1.msra.mxu0 0.0
        %2419 = vmatprep.subr.mxu0 0.0
        %2420 = vmatpush1.msra.mxu0 0.0
        %2421 = vmatprep.mubr.f32.mxu0 0.0
        %2422 = vmatmul.mubr.f32.gmra.mrb[0].mxu0 %v2352
        %v2423 = vpop.f32.mrb[0].mxu0
        %v2424 = vadd.f32 %v2343, %v2423
        %v2425 = vpop.f32.mrb[0].mxu0
        %2426 = vmatprep.mubr.f32.mxu0 0.0
        %2427 = vmatmul.mubr.f32.gmra.mrb[0].mxu0 %v2355
        %v2428 = vpop.f32.mrb[0].mxu0
        %v2429 = vadd.f32 %v2348, %v2428
        %v2430 = vpop.f32.mrb[0].mxu0
        %2431 = vdwg.mxu0
        %v2432 = vld [vmem:[#allocation2 + $0x2] sm:$0xff]
        %v2433 = vld [vmem:[#allocation2 + $0xa] sm:$0xff]
        %v2435 = vsel %vm762, %v2432, 0
        %v2438 = vsel %vm762, %v2433, 0
        %2440 = vmatprep.subr.mxu0 0.0
        %2441 = vmatpush1.msra.mxu0 %v2258
        %2442 = vmatprep.subr.mxu0 0.0
        %2443 = vmatpush1.msra.mxu0 %v2259
        %2444 = vmatprep.subr.mxu0 0.0
        %2445 = vmatpush1.msra.mxu0 %v2260
        %2446 = vmatprep.subr.mxu0 0.0
        %2447 = vmatpush1.msra.mxu0 %v2261
        %2448 = vmatprep.subr.mxu0 0.0
        %2449 = vmatpush1.msra.mxu0 %v2262
        %2450 = vmatprep.subr.mxu0 0.0
        %2451 = vmatpush1.msra.mxu0 %v2263
        %2452 = vmatprep.subr.mxu0 0.0
        %2453 = vmatpush1.msra.mxu0 %v2264
        %2454 = vmatprep.subr.mxu0 0.0
        %2455 = vmatpush1.msra.mxu0 %v2265
        %2456 = vmatprep.subr.mxu0 0.0
        %2457 = vmatpush1.msra.mxu0 0.0
        %2458 = vmatprep.subr.mxu0 0.0
        %2459 = vmatpush1.msra.mxu0 0.0
        %2460 = vmatprep.subr.mxu0 0.0
        %2461 = vmatpush1.msra.mxu0 0.0
        %2462 = vmatprep.subr.mxu0 0.0
        %2463 = vmatpush1.msra.mxu0 0.0
        %2464 = vmatprep.subr.mxu0 0.0
        %2465 = vmatpush1.msra.mxu0 0.0
        %2466 = vmatprep.subr.mxu0 0.0
        %2467 = vmatpush1.msra.mxu0 0.0
        %2468 = vmatprep.subr.mxu0 0.0
        %2469 = vmatpush1.msra.mxu0 0.0
        %2470 = vmatprep.subr.mxu0 0.0
        %2471 = vmatpush1.msra.mxu0 0.0
        %2472 = vmatprep.subr.mxu0 0.0
        %2473 = vmatpush1.msra.mxu0 0.0
        %2474 = vmatprep.subr.mxu0 0.0
        %2475 = vmatpush1.msra.mxu0 0.0
        %2476 = vmatprep.subr.mxu0 0.0
        %2477 = vmatpush1.msra.mxu0 0.0
        %2478 = vmatprep.subr.mxu0 0.0
        %2479 = vmatpush1.msra.mxu0 0.0
        %2480 = vmatprep.subr.mxu0 0.0
        %2481 = vmatpush1.msra.mxu0 0.0
        %2482 = vmatprep.subr.mxu0 0.0
        %2483 = vmatpush1.msra.mxu0 0.0
        %2484 = vmatprep.subr.mxu0 0.0
        %2485 = vmatpush1.msra.mxu0 0.0
        %2486 = vmatprep.subr.mxu0 0.0
        %2487 = vmatpush1.msra.mxu0 0.0
        %2488 = vmatprep.subr.mxu0 0.0
        %2489 = vmatpush1.msra.mxu0 0.0
        %2490 = vmatprep.subr.mxu0 0.0
        %2491 = vmatpush1.msra.mxu0 0.0
        %2492 = vmatprep.subr.mxu0 0.0
        %2493 = vmatpush1.msra.mxu0 0.0
        %2494 = vmatprep.subr.mxu0 0.0
        %2495 = vmatpush1.msra.mxu0 0.0
        %2496 = vmatprep.subr.mxu0 0.0
        %2497 = vmatpush1.msra.mxu0 0.0
        %2498 = vmatprep.subr.mxu0 0.0
        %2499 = vmatpush1.msra.mxu0 0.0
        %2500 = vmatprep.subr.mxu0 0.0
        %2501 = vmatpush1.msra.mxu0 0.0
        %2502 = vmatprep.subr.mxu0 0.0
        %2503 = vmatpush1.msra.mxu0 0.0
        %2504 = vmatprep.mubr.f32.mxu0 0.0
        %2505 = vmatmul.mubr.f32.gmra.mrb[0].mxu0 %v2435
        %v2506 = vpop.f32.mrb[0].mxu0
        %v2507 = vadd.f32 0.0, %v2506
        %v2508 = vpop.f32.mrb[0].mxu0
        %2509 = vmatprep.mubr.f32.mxu0 0.0
        %2510 = vmatmul.mubr.f32.gmra.mrb[0].mxu0 %v2438
        %v2511 = vpop.f32.mrb[0].mxu0
        %v2512 = vadd.f32 0.0, %v2511
        %v2513 = vpop.f32.mrb[0].mxu0
        %2514 = vdwg.mxu0
        %v2515 = vadd.f32 %v2424, %v2507
        %v2516 = vadd.f32 %v2429, %v2512
        %v2517 = vld [vmem:[%s4 + $0x5] sm:$0x1]
        %v2518 = vlaneseq
        %v2519 = vshrl.u32 %v2518, 7
        %v2520 = vsub.s32 0, %v2519
        %v2521 = vrot.slane %v2517, %v2520
        %v2522 = vadd.f32 %v2515, %v2521
        %v2523 = vadd.f32 %v2516, %v2521
        %vm2524 = vcmp.ge.f32.partialorder %v2522, 0.0
        %vm2525 = vcmp.ge.f32.partialorder %v2523, 0.0
        %v2526 = vmul.f32 %v2522, 0.1
        %v2527 = vmul.f32 %v2523, 0.1
        %v2528 = vsel %vm2524, %v2522, %v2526
        %v2529 = vsel %vm2525, %v2523, %v2527
        %v2530 = vadd.f32 %v1946, %v2528
        %v2531 = vadd.f32 %v1947, %v2529
        %2532 = vst.msk [vmem:[#allocation2 + $0x1] sm:$0xff] %vm762, %v2530
        %2533 = vst.msk [vmem:[#allocation2 + $0x9] sm:$0xff] %vm762, %v2531
        %v2534 = vld [vmem:[#allocation2] sm:$0xff]
        %v2535 = vld [vmem:[#allocation2 + $0x8] sm:$0xff]
        %v2536 = vld [vmem:[#allocation2 + $0x10] sm:$0xff]
        %v2537 = vld [vmem:[#allocation2 + $0x18] sm:$0xff]
        %v2538 = vld [vmem:[#allocation2 + $0x20] sm:$0xff]
        %v2539 = vld [vmem:[#allocation2 + $0x28] sm:$0xff]
        %v2540 = vld [vmem:[#allocation2 + $0x30] sm:$0xff]
        %v2541 = vld [vmem:[#allocation2 + $0x38] sm:$0xff]
        %v2542 = vld [vmem:[#allocation2 + $0x40] sm:$0xff]
        %v2543 = vld [vmem:[#allocation2 + $0x48] sm:$0xff]
        %v2544 = vld [vmem:[#allocation2 + $0x50] sm:$0xff]
        %v2545 = vld [vmem:[#allocation2 + $0x58] sm:$0xff]
        %v2546 = vld [vmem:[#allocation2 + $0x60] sm:$0xff]
        %v2547 = vld [vmem:[#allocation2 + $0x68] sm:$0xff]
        %v2548 = vld [vmem:[#allocation2 + $0x70] sm:$0xff]
        %v2549 = vld [vmem:[#allocation2 + $0x78] sm:$0xff]
        %v2550 = vld [vmem:[#allocation2 + $0x1] sm:$0xff]
        %v2551 = vld [vmem:[#allocation2 + $0x9] sm:$0xff]
        %v2552 = vld [vmem:[#allocation2 + $0x11] sm:$0xff]
        %v2553 = vld [vmem:[#allocation2 + $0x19] sm:$0xff]
        %v2554 = vld [vmem:[#allocation2 + $0x21] sm:$0xff]
        %v2555 = vld [vmem:[#allocation2 + $0x29] sm:$0xff]
        %v2556 = vld [vmem:[#allocation2 + $0x31] sm:$0xff]
        %v2557 = vld [vmem:[#allocation2 + $0x39] sm:$0xff]
        %v2558 = vld [vmem:[#allocation2 + $0x41] sm:$0xff]
        %v2559 = vld [vmem:[#allocation2 + $0x49] sm:$0xff]
        %v2560 = vld [vmem:[#allocation2 + $0x51] sm:$0xff]
        %v2561 = vld [vmem:[#allocation2 + $0x59] sm:$0xff]
        %v2562 = vld [vmem:[#allocation2 + $0x61] sm:$0xff]
        %v2563 = vld [vmem:[#allocation2 + $0x69] sm:$0xff]
        %v2564 = vld [vmem:[#allocation2 + $0x71] sm:$0xff]
        %v2565 = vld [vmem:[#allocation2 + $0x79] sm:$0xff]
        %v2566 = vld [vmem:[#allocation2 + $0x2] sm:$0xff]
        %v2567 = vld [vmem:[#allocation2 + $0xa] sm:$0xff]
        %v2568 = vld [vmem:[#allocation2 + $0x12] sm:$0xff]
        %v2569 = vld [vmem:[#allocation2 + $0x1a] sm:$0xff]
        %v2570 = vld [vmem:[#allocation2 + $0x22] sm:$0xff]
        %v2571 = vld [vmem:[#allocation2 + $0x2a] sm:$0xff]
        %v2572 = vld [vmem:[#allocation2 + $0x32] sm:$0xff]
        %v2573 = vld [vmem:[#allocation2 + $0x3a] sm:$0xff]
        %v2574 = vld [vmem:[#allocation2 + $0x42] sm:$0xff]
        %v2575 = vld [vmem:[#allocation2 + $0x4a] sm:$0xff]
        %v2576 = vld [vmem:[#allocation2 + $0x52] sm:$0xff]
        %v2577 = vld [vmem:[#allocation2 + $0x5a] sm:$0xff]
        %v2578 = vld [vmem:[#allocation2 + $0x62] sm:$0xff]
        %v2579 = vld [vmem:[#allocation2 + $0x6a] sm:$0xff]
        %v2580 = vld [vmem:[#allocation2 + $0x72] sm:$0xff]
        %v2581 = vld [vmem:[#allocation2 + $0x7a] sm:$0xff]
        %2598 = vrot.lane.b32.xlu0 %v2550, 64
        %v2599 = vpop.permute.xlu0 %2598
        %2600 = vrot.lane.b32.xlu0 %v2551, 64
        %v2601 = vpop.permute.xlu0 %2600
        %2602 = vrot.lane.b32.xlu0 %v2552, 64
        %v2603 = vpop.permute.xlu0 %2602
        %2604 = vrot.lane.b32.xlu0 %v2553, 64
        %v2605 = vpop.permute.xlu0 %2604
        %2606 = vrot.lane.b32.xlu0 %v2554, 64
        %v2607 = vpop.permute.xlu0 %2606
        %2608 = vrot.lane.b32.xlu0 %v2555, 64
        %v2609 = vpop.permute.xlu0 %2608
        %2610 = vrot.lane.b32.xlu0 %v2556, 64
        %v2611 = vpop.permute.xlu0 %2610
        %2612 = vrot.lane.b32.xlu0 %v2557, 64
        %v2613 = vpop.permute.xlu0 %2612
        %2614 = vrot.lane.b32.xlu0 %v2558, 64
        %v2615 = vpop.permute.xlu0 %2614
        %2616 = vrot.lane.b32.xlu0 %v2559, 64
        %v2617 = vpop.permute.xlu0 %2616
        %2618 = vrot.lane.b32.xlu0 %v2560, 64
        %v2619 = vpop.permute.xlu0 %2618
        %2620 = vrot.lane.b32.xlu0 %v2561, 64
        %v2621 = vpop.permute.xlu0 %2620
        %2622 = vrot.lane.b32.xlu0 %v2562, 64
        %v2623 = vpop.permute.xlu0 %2622
        %2624 = vrot.lane.b32.xlu0 %v2563, 64
        %v2625 = vpop.permute.xlu0 %2624
        %2626 = vrot.lane.b32.xlu0 %v2564, 64
        %v2627 = vpop.permute.xlu0 %2626
        %2628 = vrot.lane.b32.xlu0 %v2565, 64
        %v2629 = vpop.permute.xlu0 %2628
        %v2646 = vsel %vm762, %v2534, %v2599
        %v2647 = vsel %vm762, %v2535, %v2601
        %v2648 = vsel %vm762, %v2536, %v2603
        %v2649 = vsel %vm762, %v2537, %v2605
        %v2650 = vsel %vm762, %v2538, %v2607
        %v2651 = vsel %vm762, %v2539, %v2609
        %v2652 = vsel %vm762, %v2540, %v2611
        %v2653 = vsel %vm762, %v2541, %v2613
        %v2654 = vsel %vm762, %v2542, %v2615
        %v2655 = vsel %vm762, %v2543, %v2617
        %v2656 = vsel %vm762, %v2544, %v2619
        %v2657 = vsel %vm762, %v2545, %v2621
        %v2658 = vsel %vm762, %v2546, %v2623
        %v2659 = vsel %vm762, %v2547, %v2625
        %v2660 = vsel %vm762, %v2548, %v2627
        %v2661 = vsel %vm762, %v2549, %v2629
        %2662 = vxpose.xlu0.b32.start [1/16] %v2646, 128
        %2663 = vxpose.xlu0.b32.cont [2/16] %v2647, 128
        %2664 = vxpose.xlu0.b32.cont [3/16] %v2648, 128
        %2665 = vxpose.xlu0.b32.cont [4/16] %v2649, 128
        %2666 = vxpose.xlu0.b32.cont [5/16] %v2650, 128
        %2667 = vxpose.xlu0.b32.cont [6/16] %v2651, 128
        %2668 = vxpose.xlu0.b32.cont [7/16] %v2652, 128
        %2669 = vxpose.xlu0.b32.cont [8/16] %v2653, 128
        %2670 = vxpose.xlu0.b32.cont [9/16] %v2654, 128
        %2671 = vxpose.xlu0.b32.cont [10/16] %v2655, 128
        %2672 = vxpose.xlu0.b32.cont [11/16] %v2656, 128
        %2673 = vxpose.xlu0.b32.cont [12/16] %v2657, 128
        %2674 = vxpose.xlu0.b32.cont [13/16] %v2658, 128
        %2675 = vxpose.xlu0.b32.cont [14/16] %v2659, 128
        %2676 = vxpose.xlu0.b32.cont [15/16] %v2660, 128
        %2677 = vxpose.xlu0.b32.end [16/16] %v2661, 128
        %v2678 = vpop.trf.xlu0
        %v2679 = vpop.trf.xlu0
        %v2680 = vpop.trf.xlu0
        %v2681 = vpop.trf.xlu0
        %v2682 = vpop.trf.xlu0
        %v2683 = vpop.trf.xlu0
        %v2684 = vpop.trf.xlu0
        %v2685 = vpop.trf.xlu0
        %v2686 = vpop.trf.xlu0
        %v2687 = vpop.trf.xlu0
        %v2688 = vpop.trf.xlu0
        %v2689 = vpop.trf.xlu0
        %v2690 = vpop.trf.xlu0
        %v2691 = vpop.trf.xlu0
        %v2692 = vpop.trf.xlu0
        %v2693 = vpop.trf.xlu0
        %2694 = vxpose.xlu0.b32.start [1/16] %v2566, 128
        %2695 = vxpose.xlu0.b32.cont [2/16] %v2567, 128
        %2696 = vxpose.xlu0.b32.cont [3/16] %v2568, 128
        %2697 = vxpose.xlu0.b32.cont [4/16] %v2569, 128
        %2698 = vxpose.xlu0.b32.cont [5/16] %v2570, 128
        %2699 = vxpose.xlu0.b32.cont [6/16] %v2571, 128
        %2700 = vxpose.xlu0.b32.cont [7/16] %v2572, 128
        %2701 = vxpose.xlu0.b32.cont [8/16] %v2573, 128
        %2702 = vxpose.xlu0.b32.cont [9/16] %v2574, 128
        %2703 = vxpose.xlu0.b32.cont [10/16] %v2575, 128
        %2704 = vxpose.xlu0.b32.cont [11/16] %v2576, 128
        %2705 = vxpose.xlu0.b32.cont [12/16] %v2577, 128
        %2706 = vxpose.xlu0.b32.cont [13/16] %v2578, 128
        %2707 = vxpose.xlu0.b32.cont [14/16] %v2579, 128
        %2708 = vxpose.xlu0.b32.cont [15/16] %v2580, 128
        %2709 = vxpose.xlu0.b32.end [16/16] %v2581, 128
        %v2710 = vpop.trf.xlu0
        %v2711 = vpop.trf.xlu0
        %v2712 = vpop.trf.xlu0
        %v2713 = vpop.trf.xlu0
        %v2714 = vpop.trf.xlu0
        %v2715 = vpop.trf.xlu0
        %v2716 = vpop.trf.xlu0
        %v2717 = vpop.trf.xlu0
        %v2718 = vpop.trf.xlu0
        %v2719 = vpop.trf.xlu0
        %v2720 = vpop.trf.xlu0
        %v2721 = vpop.trf.xlu0
        %v2722 = vpop.trf.xlu0
        %v2723 = vpop.trf.xlu0
        %v2724 = vpop.trf.xlu0
        %v2725 = vpop.trf.xlu0
        %2726 = vst [vmem:[%s302] sm:$0xff] %v2678
        %2727 = vst [vmem:[%s302 + $0x8] sm:$0xff] %v2679
        %2728 = vst [vmem:[%s302 + $0x10] sm:$0xff] %v2680
        %2729 = vst [vmem:[%s302 + $0x18] sm:$0xff] %v2681
        %2730 = vst [vmem:[%s302 + $0x20] sm:$0xff] %v2682
        %2731 = vst [vmem:[%s302 + $0x28] sm:$0xff] %v2683
        %2732 = vst [vmem:[%s302 + $0x30] sm:$0xff] %v2684
        %2733 = vst [vmem:[%s302 + $0x38] sm:$0xff] %v2685
        %2734 = vst [vmem:[%s302 + $0x40] sm:$0xff] %v2686
        %2735 = vst [vmem:[%s302 + $0x48] sm:$0xff] %v2687
        %2736 = vst [vmem:[%s302 + $0x50] sm:$0xff] %v2688
        %2737 = vst [vmem:[%s302 + $0x58] sm:$0xff] %v2689
        %2738 = vst [vmem:[%s302 + $0x60] sm:$0xff] %v2690
        %2739 = vst [vmem:[%s302 + $0x68] sm:$0xff] %v2691
        %2740 = vst [vmem:[%s302 + $0x70] sm:$0xff] %v2692
        %2741 = vst [vmem:[%s302 + $0x78] sm:$0xff] %v2693
        %2742 = vst [vmem:[%s302 + $0x80] sm:$0xff] %v2710
        %2743 = vst [vmem:[%s302 + $0x88] sm:$0xff] %v2711
        %2744 = vst [vmem:[%s302 + $0x90] sm:$0xff] %v2712
        %2745 = vst [vmem:[%s302 + $0x98] sm:$0xff] %v2713
        %2746 = vst [vmem:[%s302 + $0xa0] sm:$0xff] %v2714
        %2747 = vst [vmem:[%s302 + $0xa8] sm:$0xff] %v2715
        %2748 = vst [vmem:[%s302 + $0xb0] sm:$0xff] %v2716
        %2749 = vst [vmem:[%s302 + $0xb8] sm:$0xff] %v2717
        %v2750 = vld [vmem:[%s5] sm:$0xff]
        %v2751 = vld [vmem:[%s5 + $0x8] sm:$0xff]
        %v2752 = vld [vmem:[%s6] sm:$0xff]
        %2754 = vset.pattern.permute.xlu0 0
        %2755 = vperm.xlu0 %2754, %v2752
        %v2756 = vpop.permute.xlu0 %2755
        %v2759 = vsel %vm762, %v2751, 0
        %2761 = vmatprep.subr.mxu0 0.0
        %2762 = vmatpush1.msra.mxu0 %v2678
        %2763 = vmatprep.subr.mxu0 0.0
        %2764 = vmatpush1.msra.mxu0 %v2679
        %2765 = vmatprep.subr.mxu0 0.0
        %2766 = vmatpush1.msra.mxu0 %v2680
        %2767 = vmatprep.subr.mxu0 0.0
        %2768 = vmatpush1.msra.mxu0 %v2681
        %2769 = vmatprep.subr.mxu0 0.0
        %2770 = vmatpush1.msra.mxu0 %v2682
        %2771 = vmatprep.subr.mxu0 0.0
        %2772 = vmatpush1.msra.mxu0 %v2683
        %2773 = vmatprep.subr.mxu0 0.0
        %2774 = vmatpush1.msra.mxu0 %v2684
        %2775 = vmatprep.subr.mxu0 0.0
        %2776 = vmatpush1.msra.mxu0 %v2685
        %2777 = vmatprep.subr.mxu0 0.0
        %2778 = vmatpush1.msra.mxu0 %v2686
        %2779 = vmatprep.subr.mxu0 0.0
        %2780 = vmatpush1.msra.mxu0 %v2687
        %2781 = vmatprep.subr.mxu0 0.0
        %2782 = vmatpush1.msra.mxu0 %v2688
        %2783 = vmatprep.subr.mxu0 0.0
        %2784 = vmatpush1.msra.mxu0 %v2689
        %2785 = vmatprep.subr.mxu0 0.0
        %2786 = vmatpush1.msra.mxu0 %v2690
        %2787 = vmatprep.subr.mxu0 0.0
        %2788 = vmatpush1.msra.mxu0 %v2691
        %2789 = vmatprep.subr.mxu0 0.0
        %2790 = vmatpush1.msra.mxu0 %v2692
        %2791 = vmatprep.subr.mxu0 0.0
        %2792 = vmatpush1.msra.mxu0 %v2693
        %2793 = vmatprep.subr.mxu0 0.0
        %2794 = vmatpush1.msra.mxu0 %v2710
        %2795 = vmatprep.subr.mxu0 0.0
        %2796 = vmatpush1.msra.mxu0 %v2711
        %2797 = vmatprep.subr.mxu0 0.0
        %2798 = vmatpush1.msra.mxu0 %v2712
        %2799 = vmatprep.subr.mxu0 0.0
        %2800 = vmatpush1.msra.mxu0 %v2713
        %2801 = vmatprep.subr.mxu0 0.0
        %2802 = vmatpush1.msra.mxu0 %v2714
        %2803 = vmatprep.subr.mxu0 0.0
        %2804 = vmatpush1.msra.mxu0 %v2715
        %2805 = vmatprep.subr.mxu0 0.0
        %2806 = vmatpush1.msra.mxu0 %v2716
        %2807 = vmatprep.subr.mxu0 0.0
        %2808 = vmatpush1.msra.mxu0 %v2717
        %2809 = vmatprep.subr.mxu0 0.0
        %2810 = vmatpush1.msra.mxu0 0.0
        %2811 = vmatprep.subr.mxu0 0.0
        %2812 = vmatpush1.msra.mxu0 0.0
        %2813 = vmatprep.subr.mxu0 0.0
        %2814 = vmatpush1.msra.mxu0 0.0
        %2815 = vmatprep.subr.mxu0 0.0
        %2816 = vmatpush1.msra.mxu0 0.0
        %2817 = vmatprep.subr.mxu0 0.0
        %2818 = vmatpush1.msra.mxu0 0.0
        %2819 = vmatprep.subr.mxu0 0.0
        %2820 = vmatpush1.msra.mxu0 0.0
        %2821 = vmatprep.subr.mxu0 0.0
        %2822 = vmatpush1.msra.mxu0 0.0
        %2823 = vmatprep.subr.mxu0 0.0
        %2824 = vmatpush1.msra.mxu0 0.0
        %2825 = vmatprep.mubr.f32.mxu0 %v2759
        %2826 = vmatmul.mubr.f32.gmra.mrb[0].mxu0 %v2750
        %v2827 = vpop.f32.mrb[0].mxu0
        %v2828 = vadd.f32 %v2756, %v2827
        %v2829 = vpop.f32.mrb[0].mxu0
        %2830 = vdwg.mxu0
        %2831 = vst [vmem:[%s309] sm:$0xff] %v2828
        %s2832 = sand.u32 %s186, 1
        %s2833 = scalar_lea.sflag [#allocation4], %s2832
        %s2834 = sand.u32 %s186, 1
        %s2835 = smul.addr %s2834, 192
        %s2836 = scalar_lea.vmem [#allocation3], %s2835
        %s2837 = sand.u32 %s212, 1
        %s2838 = scalar_lea.sflag [#allocation6], %s2837
        %s2839 = sand.u32 %s212, 1
        %s2840 = smul.addr %s2839, 8
        %s2841 = scalar_lea.vmem [#allocation5], %s2840
        // Predicated region
        $region49: #{tpu_custom_call.1} parent=47 // pred_check
          %p2842 = pneg %p196
        $region50: #{tpu_custom_call.1} parent=47 // pred_check_branch
          %2844 = sbr.rel (%p2842) target = $region52
        $region51: #{tpu_custom_call.1} parent=47 // pred_region
          %s2846 = ssub.s32 3072, 3072
          %2847 = vsyncadd %s2833, %s2846
          %s2848 = smul.addr %s26, 24
          %s2849 = smul.addr %s2848, 128
          %s2850 = scalar_lea.hbm %s7, %s2849
          %s2851 = sshll.u32 %s2836, 4
          %s2852 = int_to_ptr.vmem [resolvable:$true] %s2851
          %2857 = dma.vmem_to_hbm [thread:$0]  %s2852, 3072, %s2850, %s2833, 128, 128, 8
        $region52: #{tpu_custom_call.1} parent=47 // pred_fallthru
          _
        // Predicated region
        $region53: #{tpu_custom_call.1} parent=47 // pred_check
          %p2858 = pneg %p222
        $region54: #{tpu_custom_call.1} parent=47 // pred_check_branch
          %2860 = sbr.rel (%p2858) target = $region56
        $region55: #{tpu_custom_call.1} parent=47 // pred_region
          %s2862 = ssub.s32 128, 128
          %2863 = vsyncadd %s2838, %s2862
          %s2864 = smul.addr %s26, 128
          %s2865 = scalar_lea.hbm %s8, %s2864
          %s2867 = sshll.u32 %s2841, 4
          %s2868 = int_to_ptr.vmem [resolvable:$true] %s2867
          %2870 = dma.vmem_to_hbm [thread:$0]  %s2868, 128, %s2865, %s2838
        $region56: #{tpu_custom_call.1} parent=47 // pred_fallthru
          _
      $region48: #{tpu_custom_call.1} parent=5 // pred_fallthru
        _
      %p2871 = scmp.le.s32.totalorder 2, %s21
      // Predicated region
      $region57: #{tpu_custom_call.1} parent=5 // pred_check
        %p2872 = pneg %p2871
      $region58: #{tpu_custom_call.1} parent=5 // pred_check_branch
        %2874 = sbr.rel (%p2872) target = $region60
      $region59: #{tpu_custom_call.1} parent=5 // pred_region
        %s2875 = ssub.s32 %s21, 2
        // Predicated region
        $region61: #{tpu_custom_call.1} parent=59 // pred_check
          %p2876 = pneg %p202
        $region62: #{tpu_custom_call.1} parent=59 // pred_check_branch
          %2878 = sbr.rel (%p2876) target = $region64
        $region63: #{tpu_custom_call.1} parent=59 // pred_region
          %s2879 = sand.u32 %s187, 1
          %s2880 = scalar_lea.sflag [#allocation4], %s2879
          %s2881 = sand.u32 %s187, 1
          %s2882 = smul.addr %s2881, 192
          %s2883 = scalar_lea.vmem [#allocation3], %s2882
          %2884 = dma.done %s2880, 3072
        $region64: #{tpu_custom_call.1} parent=59 // pred_fallthru
          _
        // Predicated region
        $region65: #{tpu_custom_call.1} parent=59 // pred_check
          %p2885 = pneg %p228
        $region66: #{tpu_custom_call.1} parent=59 // pred_check_branch
          %2887 = sbr.rel (%p2885) target = $region68
        $region67: #{tpu_custom_call.1} parent=59 // pred_region
          %s2888 = sand.u32 %s213, 1
          %s2889 = scalar_lea.sflag [#allocation6], %s2888
          %s2890 = sand.u32 %s213, 1
          %s2891 = smul.addr %s2890, 8
          %s2892 = scalar_lea.vmem [#allocation5], %s2891
          %2893 = dma.done %s2889, 128
        $region68: #{tpu_custom_call.1} parent=59 // pred_fallthru
          _
      $region60: #{tpu_custom_call.1} parent=5 // pred_fallthru
        _
    $region6: #{tpu_custom_call.1} parent=1 // loop_footer
      %s25 = sadd.s32 1, %s21
    $region7: #{tpu_custom_call.1} parent=1 // loop_footer_branch
      %20 = sbr.rel target = $region3
    $region8: #{tpu_custom_call.1} parent=1 // loop_exit
      _
    %2894 = vsyncpa [#allocation4], 1
    %s2895 = scalar_lea.sflag [#allocation4], 1
    %2896 = vsyncpa %s2895, 1
    %2897 = vsyncpa [#allocation6], 1
    %s2898 = scalar_lea.sflag [#allocation6], 1
    %2899 = vsyncpa %s2898, 1

</llo_original>
